<compile_context>
chip_gen: v7x
topology: tpu7x:2x2x1
jax: 0.10.0
libtpu: 0.0.40
codegen_flags: <defaults>
</compile_context>

<pallas_src>
import jax
import jax.numpy as jnp
from jax.experimental import pallas as pl
from jax.experimental.pallas import tpu as pltpu

# ---- model hyper-parameters (consistent with the module) --------------------
LATENT_DIM = 100
PAD_LATENT = 128                      # latent padded to a lane-aligned width
CHANNELS = 1
IMG_SIZE = 16
IMG_SHAPE = (CHANNELS, IMG_SIZE, IMG_SIZE)
IMG_PROD = CHANNELS * IMG_SIZE * IMG_SIZE        # 256
HIDDEN = (128, 256, 512, 1024)

BN_EPS = 0.8          # nn.BatchNorm1d(n_out, 0.8) -> eps = 0.8
LRELU_SLOPE = 0.2

HEAD_CHUNK = 128      # w5 split into two (1024, 128) column halves
PACK_W = 1024         # packed small-param array: f32[16, 1024]
PACK_ROWS = 16
# packed rows: 0:g1 1:be1 2:g2 3:be2 4:g3 5:be3 6:g4 7:be4 8:b5 9:s4 10:s5


def _bn_train_lrelu(x, gamma, beta):
    """BatchNorm1d training mode (full-batch, biased var) folded into one
    scale/shift, followed by LeakyReLU(0.2).  One reduction pass over x.
    (E[x^2]-E[x]^2 is safe here: eps=0.8 and near-zero-mean activations.)"""
    mean = jnp.mean(x, axis=0, keepdims=True)
    mean_sq = jnp.mean(x * x, axis=0, keepdims=True)
    var = mean_sq - mean * mean
    s = gamma * jax.lax.rsqrt(var + BN_EPS)
    t = beta - mean * s
    y = x * s + t
    return jnp.maximum(y, LRELU_SLOPE * y)


def generator_kernel(z_ref, w1_ref, w2_ref, w3_ref, p_ref,
                     w4_hbm, w5_hbm,
                     out_ref,
                     w4_vmem, w5_vmem, dma_sem):
    # Kick off the big-weight DMAs immediately; they stream behind blocks 1-3
    # and are awaited right before their dots.
    cp4 = pltpu.make_async_copy(w4_hbm, w4_vmem, dma_sem.at[0])
    cp5a = pltpu.make_async_copy(w5_hbm.at[0], w5_vmem.at[0], dma_sem.at[1])
    cp5b = pltpu.make_async_copy(w5_hbm.at[1], w5_vmem.at[1], dma_sem.at[2])
    cp4.start()
    cp5a.start()
    cp5b.start()

    # One load of the packed small parameters; static slices afterwards.
    p = p_ref[...]                                   # (16, 1024) f32
    g1, be1 = p[0:1, :HIDDEN[0]], p[1:2, :HIDDEN[0]]
    g2, be2 = p[2:3, :HIDDEN[1]], p[3:4, :HIDDEN[1]]
    g3, be3 = p[4:5, :HIDDEN[2]], p[5:6, :HIDDEN[2]]
    g4, be4 = p[6:7, :HIDDEN[3]], p[7:8, :HIDDEN[3]]
    b5 = p[8:9, :IMG_PROD]
    s4 = p[9:10, :HIDDEN[3]]                         # per-column scale of w4
    s5 = p[10:11, :IMG_PROD]                         # per-column scale of w5

    # block 1: 128(padded from 100) -> 128   (bias cancelled by BN)
    h = jnp.dot(z_ref[...].astype(jnp.bfloat16), w1_ref[...],
                preferred_element_type=jnp.float32)
    h = _bn_train_lrelu(h, g1, be1)
    # block 2: 128 -> 256
    h = jnp.dot(h.astype(jnp.bfloat16), w2_ref[...],
                preferred_element_type=jnp.float32)
    h = _bn_train_lrelu(h, g2, be2)
    # block 3: 256 -> 512
    h = jnp.dot(h.astype(jnp.bfloat16), w3_ref[...],
                preferred_element_type=jnp.float32)
    h = _bn_train_lrelu(h, g3, be3)

    # block 4: 512 -> 1024   (int8 weight, dequant in VMEM, scale on output;
    #                          the w4 dequant/dot overlaps the w5 DMA stream)
    cp4.wait()
    w4 = w4_vmem[...].astype(jnp.bfloat16)
    h = jnp.dot(h.astype(jnp.bfloat16), w4,
                preferred_element_type=jnp.float32) * s4
    h = _bn_train_lrelu(h, g4, be4)
    h16 = h.astype(jnp.bfloat16)

    # head: 1024 -> C*H*W, per 128-column chunk as each w5 half lands.
    cp5a.wait()
    r0 = jnp.dot(h16, w5_vmem[0].astype(jnp.bfloat16),
                 preferred_element_type=jnp.float32)
    out_ref[:, 0:HEAD_CHUNK] = jnp.tanh(
        r0 * s5[:, 0:HEAD_CHUNK] + b5[:, 0:HEAD_CHUNK])

    cp5b.wait()
    r1 = jnp.dot(h16, w5_vmem[1].astype(jnp.bfloat16),
                 preferred_element_type=jnp.float32)
    out_ref[:, HEAD_CHUNK:IMG_PROD] = jnp.tanh(
        r1 * s5[:, HEAD_CHUNK:IMG_PROD] + b5[:, HEAD_CHUNK:IMG_PROD])


def _quantize_cols_int8(w):
    """Per-output-column symmetric int8 quantization; returns (q, scale)."""
    amax = jnp.max(jnp.abs(w), axis=0, keepdims=True)        # (1, N)
    scale = jnp.maximum(amax, 1e-8) / 127.0
    q = jnp.clip(jnp.round(w / scale), -127.0, 127.0).astype(jnp.int8)
    return q, scale


def init_params(key):
    """Deterministic init mimicking PyTorch defaults:
       Linear: W ~ U(-1/sqrt(fan_in), 1/sqrt(fan_in)); BN: gamma=1, beta=0.
       Weights are stored transposed as (in, out).  Hidden-layer linear biases
       are omitted (exactly cancelled by BN mean subtraction).  w4/w5 are
       stored int8 with per-column scales; small vectors are packed into one
       f32[16, 1024] array."""
    keys = jax.random.split(key, 6)

    def lin_w(k, n_in, n_out):
        bound = 1.0 / (n_in ** 0.5)
        return jax.random.uniform(k, (n_in, n_out), jnp.float32, -bound, bound)

    w1 = lin_w(keys[0], LATENT_DIM, HIDDEN[0])
    w1 = jnp.pad(w1, ((0, PAD_LATENT - LATENT_DIM), (0, 0))).astype(jnp.bfloat16)
    w2 = lin_w(keys[1], HIDDEN[0], HIDDEN[1]).astype(jnp.bfloat16)
    w3 = lin_w(keys[2], HIDDEN[1], HIDDEN[2]).astype(jnp.bfloat16)
    w4_f = lin_w(keys[3], HIDDEN[2], HIDDEN[3])
    w5_f = lin_w(keys[4], HIDDEN[3], IMG_PROD)
    b5 = jax.random.uniform(keys[5], (IMG_PROD,), jnp.float32,
                            -1.0 / (HIDDEN[3] ** 0.5), 1.0 / (HIDDEN[3] ** 0.5))

    w4_q, s4 = _quantize_cols_int8(w4_f)                      # (512,1024) int8
    w5_q, s5 = _quantize_cols_int8(w5_f)                      # (1024,256) int8
    # pre-split w5 into two contiguous column halves -> contiguous DMAs
    w5_q = jnp.stack([w5_q[:, :HEAD_CHUNK], w5_q[:, HEAD_CHUNK:]], axis=0)

    def row(vec):
        v = vec.reshape(-1).astype(jnp.float32)
        return jnp.zeros((PACK_W,), jnp.float32).at[: v.shape[0]].set(v)

    rows = []
    for n in HIDDEN:                                   # gamma=1, beta=0
        rows.append(row(jnp.ones((n,), jnp.float32)))
        rows.append(row(jnp.zeros((n,), jnp.float32)))
    rows += [row(b5), row(s4), row(s5)]
    while len(rows) < PACK_ROWS:
        rows.append(jnp.zeros((PACK_W,), jnp.float32))
    packed = jnp.stack(rows, axis=0)                   # (16, 1024) f32

    return (w1, w2, w3, packed, w4_q, w5_q)


@jax.jit
def generator_forward(z, params):
    w1, w2, w3, packed, w4_q, w5_q = params
    batch = z.shape[0]
    # pad latent 100 -> 128 (zero columns hit zero weight rows: exact no-op)
    z_pad = jnp.pad(z, ((0, 0), (0, PAD_LATENT - LATENT_DIM)))

    vmem = pl.BlockSpec(memory_space=pltpu.MemorySpace.VMEM)
    hbm = pl.BlockSpec(memory_space=pl.ANY)     # w4/w5 stay in HBM, manual DMA

    flat_img = pl.pallas_call(
        generator_kernel,
        out_shape=jax.ShapeDtypeStruct((batch, IMG_PROD), jnp.float32),
        in_specs=[
            vmem,                    # z (padded)
            vmem, vmem, vmem,        # w1, w2, w3 (bf16)
            vmem,                    # packed small params (one DMA)
            hbm, hbm,                # w4_q, w5_q (int8, HBM, manual DMA)
        ],
        out_specs=vmem,
        scratch_shapes=[
            pltpu.VMEM((HIDDEN[2], HIDDEN[3]), jnp.int8),          # w4 staging
            pltpu.VMEM((2, HIDDEN[3], HEAD_CHUNK), jnp.int8),      # w5 staging
            pltpu.SemaphoreType.DMA((3,)),
        ],
        compiler_params=pltpu.CompilerParams(vmem_limit_bytes=16 << 20),
    )(z_pad, w1, w2, w3, packed, w4_q, w5_q)

    # img.view(B, C, H, W)  (NCHW, identical to the PyTorch view)
    return flat_img.reshape(batch, *IMG_SHAPE)
    # Note: BN uses full-batch statistics, so the batch is NOT tiled across a
    # grid; larger batches are nearly free throughput on this HBM-bound kernel.


if __name__ == "__main__":
    key = jax.random.PRNGKey(0)
    k_params, k_z = jax.random.split(key)
    params = init_params(k_params)

    # Batch 128: fills the MXU row dimension while activations stay tiny
    # (128 x 1024 x 4 B = 512 KiB), far inside VMEM on v5e/v6e/v7x.
    batch = 128
    z = jax.random.normal(k_z, (batch, LATENT_DIM), jnp.float32)

    img = generator_forward(z, params)
    jax.block_until_ready(img)

    assert img.shape == (batch, CHANNELS, IMG_SIZE, IMG_SIZE)
    assert bool(jnp.all(jnp.isfinite(img)))
    assert bool(jnp.all(jnp.abs(img) <= 1.0))      # tanh output range
    print("KERNEL_OK")
</pallas_src>

<mosaic_0001>
module attributes {stable_mosaic.version = 11 : i64} {
  func.func @generator_kernel(%arg0: memref<128x128xf32, #tpu.memory_space<vmem>>, %arg1: memref<128x128xbf16, #tpu.memory_space<vmem>>, %arg2: memref<128x256xbf16, #tpu.memory_space<vmem>>, %arg3: memref<256x512xbf16, #tpu.memory_space<vmem>>, %arg4: memref<16x1024xf32, #tpu.memory_space<vmem>>, %arg5: memref<512x1024xi8, #tpu.memory_space<any>>, %arg6: memref<2x1024x128xi8, #tpu.memory_space<any>>, %arg7: memref<128x256xf32, #tpu.memory_space<vmem>>, %arg8: memref<512x1024xi8, #tpu.memory_space<vmem>>, %arg9: memref<2x1024x128xi8, #tpu.memory_space<vmem>>, %arg10: memref<3x!tpu.dma_semaphore, #tpu.memory_space<semaphore_mem>>) attributes {dimension_semantics = [], scalar_prefetch = 0 : i64, scratch_operands = 3 : i64, tpu.core_type = #tpu.core_type<tc>} {
    %c0_i32 = arith.constant 0 : i32
    %0 = tpu.memref_slice %arg10[%c0_i32] : memref<3x!tpu.dma_semaphore, #tpu.memory_space<semaphore_mem>> -> memref<1x!tpu.dma_semaphore, #tpu.memory_space<semaphore_mem>>
    %1 = tpu.memref_squeeze %0 : memref<1x!tpu.dma_semaphore, #tpu.memory_space<semaphore_mem>> -> memref<!tpu.dma_semaphore, #tpu.memory_space<semaphore_mem>>
    tpu.enqueue_dma source(%arg5 : memref<512x1024xi8, #tpu.memory_space<any>>) target(%arg8 : memref<512x1024xi8, #tpu.memory_space<vmem>>) target_semaphore(%1 : memref<!tpu.dma_semaphore, #tpu.memory_space<semaphore_mem>>)
    %c0_i32_0 = arith.constant 0 : i32
    %c0_i32_1 = arith.constant 0 : i32
    %c1_i32 = arith.constant 1 : i32
    %c0_i32_2 = arith.constant 0 : i32
    %c0_i32_3 = arith.constant 0 : i32
    %2 = tpu.memref_slice %arg6[%c0_i32_0, %c0_i32_2, %c0_i32_3] : memref<2x1024x128xi8, #tpu.memory_space<any>> -> memref<1x1024x128xi8, #tpu.memory_space<any>>
    %3 = tpu.memref_squeeze %2 : memref<1x1024x128xi8, #tpu.memory_space<any>> -> memref<1024x128xi8, #tpu.memory_space<any>>
    %c0_i32_4 = arith.constant 0 : i32
    %c0_i32_5 = arith.constant 0 : i32
    %4 = tpu.memref_slice %arg9[%c0_i32_1, %c0_i32_4, %c0_i32_5] : memref<2x1024x128xi8, #tpu.memory_space<vmem>> -> memref<1x1024x128xi8, #tpu.memory_space<vmem>>
    %5 = tpu.memref_squeeze %4 : memref<1x1024x128xi8, #tpu.memory_space<vmem>> -> memref<1024x128xi8, #tpu.memory_space<vmem>>
    %6 = tpu.memref_slice %arg10[%c1_i32] : memref<3x!tpu.dma_semaphore, #tpu.memory_space<semaphore_mem>> -> memref<1x!tpu.dma_semaphore, #tpu.memory_space<semaphore_mem>>
    %7 = tpu.memref_squeeze %6 : memref<1x!tpu.dma_semaphore, #tpu.memory_space<semaphore_mem>> -> memref<!tpu.dma_semaphore, #tpu.memory_space<semaphore_mem>>
    tpu.enqueue_dma source(%3 : memref<1024x128xi8, #tpu.memory_space<any>>) target(%5 : memref<1024x128xi8, #tpu.memory_space<vmem>>) target_semaphore(%7 : memref<!tpu.dma_semaphore, #tpu.memory_space<semaphore_mem>>)
    %c1_i32_6 = arith.constant 1 : i32
    %c1_i32_7 = arith.constant 1 : i32
    %c2_i32 = arith.constant 2 : i32
    %c0_i32_8 = arith.constant 0 : i32
    %c0_i32_9 = arith.constant 0 : i32
    %8 = tpu.memref_slice %arg6[%c1_i32_6, %c0_i32_8, %c0_i32_9] : memref<2x1024x128xi8, #tpu.memory_space<any>> -> memref<1x1024x128xi8, #tpu.memory_space<any>>
    %9 = tpu.memref_squeeze %8 : memref<1x1024x128xi8, #tpu.memory_space<any>> -> memref<1024x128xi8, #tpu.memory_space<any>>
    %c0_i32_10 = arith.constant 0 : i32
    %c0_i32_11 = arith.constant 0 : i32
    %10 = tpu.memref_slice %arg9[%c1_i32_7, %c0_i32_10, %c0_i32_11] : memref<2x1024x128xi8, #tpu.memory_space<vmem>> -> memref<1x1024x128xi8, #tpu.memory_space<vmem>>
    %11 = tpu.memref_squeeze %10 : memref<1x1024x128xi8, #tpu.memory_space<vmem>> -> memref<1024x128xi8, #tpu.memory_space<vmem>>
    %12 = tpu.memref_slice %arg10[%c2_i32] : memref<3x!tpu.dma_semaphore, #tpu.memory_space<semaphore_mem>> -> memref<1x!tpu.dma_semaphore, #tpu.memory_space<semaphore_mem>>
    %13 = tpu.memref_squeeze %12 : memref<1x!tpu.dma_semaphore, #tpu.memory_space<semaphore_mem>> -> memref<!tpu.dma_semaphore, #tpu.memory_space<semaphore_mem>>
    tpu.enqueue_dma source(%9 : memref<1024x128xi8, #tpu.memory_space<any>>) target(%11 : memref<1024x128xi8, #tpu.memory_space<vmem>>) target_semaphore(%13 : memref<!tpu.dma_semaphore, #tpu.memory_space<semaphore_mem>>)
    %c0 = arith.constant 0 : index
    %c0_12 = arith.constant 0 : index
    %14 = vector.load %arg4[%c0, %c0_12] : memref<16x1024xf32, #tpu.memory_space<vmem>>, vector<16x1024xf32>
    %15 = vector.extract_strided_slice %14 {offsets = [0, 0], sizes = [1, 128], strides = [1, 1]} : vector<16x1024xf32> to vector<1x128xf32>
    %16 = vector.extract_strided_slice %14 {offsets = [1, 0], sizes = [1, 128], strides = [1, 1]} : vector<16x1024xf32> to vector<1x128xf32>
    %17 = vector.extract_strided_slice %14 {offsets = [2, 0], sizes = [1, 256], strides = [1, 1]} : vector<16x1024xf32> to vector<1x256xf32>
    %18 = vector.extract_strided_slice %14 {offsets = [3, 0], sizes = [1, 256], strides = [1, 1]} : vector<16x1024xf32> to vector<1x256xf32>
    %19 = vector.extract_strided_slice %14 {offsets = [4, 0], sizes = [1, 512], strides = [1, 1]} : vector<16x1024xf32> to vector<1x512xf32>
    %20 = vector.extract_strided_slice %14 {offsets = [5, 0], sizes = [1, 512], strides = [1, 1]} : vector<16x1024xf32> to vector<1x512xf32>
    %21 = vector.extract_strided_slice %14 {offsets = [6, 0], sizes = [1, 1024], strides = [1, 1]} : vector<16x1024xf32> to vector<1x1024xf32>
    %22 = vector.extract_strided_slice %14 {offsets = [7, 0], sizes = [1, 1024], strides = [1, 1]} : vector<16x1024xf32> to vector<1x1024xf32>
    %23 = vector.extract_strided_slice %14 {offsets = [8, 0], sizes = [1, 256], strides = [1, 1]} : vector<16x1024xf32> to vector<1x256xf32>
    %24 = vector.extract_strided_slice %14 {offsets = [9, 0], sizes = [1, 1024], strides = [1, 1]} : vector<16x1024xf32> to vector<1x1024xf32>
    %25 = vector.extract_strided_slice %14 {offsets = [10, 0], sizes = [1, 256], strides = [1, 1]} : vector<16x1024xf32> to vector<1x256xf32>
    %c0_13 = arith.constant 0 : index
    %c0_14 = arith.constant 0 : index
    %26 = vector.load %arg0[%c0_13, %c0_14] : memref<128x128xf32, #tpu.memory_space<vmem>>, vector<128x128xf32>
    %27 = arith.truncf %26 : vector<128x128xf32> to vector<128x128xbf16>
    %c0_15 = arith.constant 0 : index
    %c0_16 = arith.constant 0 : index
    %28 = vector.load %arg1[%c0_15, %c0_16] : memref<128x128xbf16, #tpu.memory_space<vmem>>, vector<128x128xbf16>
    %cst = arith.constant dense<0.000000e+00> : vector<128x128xf32>
    %29 = tpu.matmul %27, %28, %cst {dimension_numbers = #tpu.dot_dimension_numbers<[1], [0], [0], [1], [0, 0, 1, 1], [], []>} : vector<128x128xbf16>, vector<128x128xbf16>, vector<128x128xf32> -> vector<128x128xf32>
    %cst_17 = arith.constant dense<0.000000e+00> : vector<128xf32>
    %30 = vector.multi_reduction <add>, %29, %cst_17 [0] : vector<128x128xf32> to vector<128xf32>
    %31 = vector.shape_cast %30 : vector<128xf32> to vector<1x128xf32>
    %cst_18 = arith.constant 1.280000e+02 : f32
    %32 = vector.broadcast %cst_18 : f32 to vector<1x128xf32>
    %33 = arith.divf %31, %32 : vector<1x128xf32>
    %34 = arith.mulf %29, %29 : vector<128x128xf32>
    %cst_19 = arith.constant dense<0.000000e+00> : vector<128xf32>
    %35 = vector.multi_reduction <add>, %34, %cst_19 [0] : vector<128x128xf32> to vector<128xf32>
    %36 = vector.shape_cast %35 : vector<128xf32> to vector<1x128xf32>
    %cst_20 = arith.constant 1.280000e+02 : f32
    %37 = vector.broadcast %cst_20 : f32 to vector<1x128xf32>
    %38 = arith.divf %36, %37 : vector<1x128xf32>
    %39 = arith.mulf %33, %33 : vector<1x128xf32>
    %40 = arith.subf %38, %39 : vector<1x128xf32>
    %cst_21 = arith.constant 8.000000e-01 : f32
    %41 = vector.broadcast %cst_21 : f32 to vector<1x128xf32>
    %42 = arith.addf %40, %41 : vector<1x128xf32>
    %43 = math.rsqrt %42 : vector<1x128xf32>
    %44 = arith.mulf %15, %43 : vector<1x128xf32>
    %45 = arith.mulf %33, %44 : vector<1x128xf32>
    %46 = arith.subf %16, %45 : vector<1x128xf32>
    %47 = vector.broadcast %44 : vector<1x128xf32> to vector<128x128xf32>
    %48 = arith.mulf %29, %47 : vector<128x128xf32>
    %49 = vector.broadcast %46 : vector<1x128xf32> to vector<128x128xf32>
    %50 = arith.addf %48, %49 : vector<128x128xf32>
    %cst_22 = arith.constant 2.000000e-01 : f32
    %51 = vector.broadcast %cst_22 : f32 to vector<128x128xf32>
    %52 = arith.mulf %51, %50 : vector<128x128xf32>
    %53 = arith.maximumf %50, %52 : vector<128x128xf32>
    %54 = arith.truncf %53 : vector<128x128xf32> to vector<128x128xbf16>
    %c0_23 = arith.constant 0 : index
    %c0_24 = arith.constant 0 : index
    %55 = vector.load %arg2[%c0_23, %c0_24] : memref<128x256xbf16, #tpu.memory_space<vmem>>, vector<128x256xbf16>
    %cst_25 = arith.constant dense<0.000000e+00> : vector<128x256xf32>
    %56 = tpu.matmul %54, %55, %cst_25 {dimension_numbers = #tpu.dot_dimension_numbers<[1], [0], [0], [1], [0, 0, 1, 1], [], []>} : vector<128x128xbf16>, vector<128x256xbf16>, vector<128x256xf32> -> vector<128x256xf32>
    %cst_26 = arith.constant dense<0.000000e+00> : vector<256xf32>
    %57 = vector.multi_reduction <add>, %56, %cst_26 [0] : vector<128x256xf32> to vector<256xf32>
    %58 = vector.shape_cast %57 : vector<256xf32> to vector<1x256xf32>
    %cst_27 = arith.constant 1.280000e+02 : f32
    %59 = vector.broadcast %cst_27 : f32 to vector<1x256xf32>
    %60 = arith.divf %58, %59 : vector<1x256xf32>
    %61 = arith.mulf %56, %56 : vector<128x256xf32>
    %cst_28 = arith.constant dense<0.000000e+00> : vector<256xf32>
    %62 = vector.multi_reduction <add>, %61, %cst_28 [0] : vector<128x256xf32> to vector<256xf32>
    %63 = vector.shape_cast %62 : vector<256xf32> to vector<1x256xf32>
    %cst_29 = arith.constant 1.280000e+02 : f32
    %64 = vector.broadcast %cst_29 : f32 to vector<1x256xf32>
    %65 = arith.divf %63, %64 : vector<1x256xf32>
    %66 = arith.mulf %60, %60 : vector<1x256xf32>
    %67 = arith.subf %65, %66 : vector<1x256xf32>
    %cst_30 = arith.constant 8.000000e-01 : f32
    %68 = vector.broadcast %cst_30 : f32 to vector<1x256xf32>
    %69 = arith.addf %67, %68 : vector<1x256xf32>
    %70 = math.rsqrt %69 : vector<1x256xf32>
    %71 = arith.mulf %17, %70 : vector<1x256xf32>
    %72 = arith.mulf %60, %71 : vector<1x256xf32>
    %73 = arith.subf %18, %72 : vector<1x256xf32>
    %74 = vector.broadcast %71 : vector<1x256xf32> to vector<128x256xf32>
    %75 = arith.mulf %56, %74 : vector<128x256xf32>
    %76 = vector.broadcast %73 : vector<1x256xf32> to vector<128x256xf32>
    %77 = arith.addf %75, %76 : vector<128x256xf32>
    %cst_31 = arith.constant 2.000000e-01 : f32
    %78 = vector.broadcast %cst_31 : f32 to vector<128x256xf32>
    %79 = arith.mulf %78, %77 : vector<128x256xf32>
    %80 = arith.maximumf %77, %79 : vector<128x256xf32>
    %81 = arith.truncf %80 : vector<128x256xf32> to vector<128x256xbf16>
    %c0_32 = arith.constant 0 : index
    %c0_33 = arith.constant 0 : index
    %82 = vector.load %arg3[%c0_32, %c0_33] : memref<256x512xbf16, #tpu.memory_space<vmem>>, vector<256x512xbf16>
    %cst_34 = arith.constant dense<0.000000e+00> : vector<128x512xf32>
    %83 = tpu.matmul %81, %82, %cst_34 {dimension_numbers = #tpu.dot_dimension_numbers<[1], [0], [0], [1], [0, 0, 1, 1], [], []>} : vector<128x256xbf16>, vector<256x512xbf16>, vector<128x512xf32> -> vector<128x512xf32>
    %cst_35 = arith.constant dense<0.000000e+00> : vector<512xf32>
    %84 = vector.multi_reduction <add>, %83, %cst_35 [0] : vector<128x512xf32> to vector<512xf32>
    %85 = vector.shape_cast %84 : vector<512xf32> to vector<1x512xf32>
    %cst_36 = arith.constant 1.280000e+02 : f32
    %86 = vector.broadcast %cst_36 : f32 to vector<1x512xf32>
    %87 = arith.divf %85, %86 : vector<1x512xf32>
    %88 = arith.mulf %83, %83 : vector<128x512xf32>
    %cst_37 = arith.constant dense<0.000000e+00> : vector<512xf32>
    %89 = vector.multi_reduction <add>, %88, %cst_37 [0] : vector<128x512xf32> to vector<512xf32>
    %90 = vector.shape_cast %89 : vector<512xf32> to vector<1x512xf32>
    %cst_38 = arith.constant 1.280000e+02 : f32
    %91 = vector.broadcast %cst_38 : f32 to vector<1x512xf32>
    %92 = arith.divf %90, %91 : vector<1x512xf32>
    %93 = arith.mulf %87, %87 : vector<1x512xf32>
    %94 = arith.subf %92, %93 : vector<1x512xf32>
    %cst_39 = arith.constant 8.000000e-01 : f32
    %95 = vector.broadcast %cst_39 : f32 to vector<1x512xf32>
    %96 = arith.addf %94, %95 : vector<1x512xf32>
    %97 = math.rsqrt %96 : vector<1x512xf32>
    %98 = arith.mulf %19, %97 : vector<1x512xf32>
    %99 = arith.mulf %87, %98 : vector<1x512xf32>
    %100 = arith.subf %20, %99 : vector<1x512xf32>
    %101 = vector.broadcast %98 : vector<1x512xf32> to vector<128x512xf32>
    %102 = arith.mulf %83, %101 : vector<128x512xf32>
    %103 = vector.broadcast %100 : vector<1x512xf32> to vector<128x512xf32>
    %104 = arith.addf %102, %103 : vector<128x512xf32>
    %cst_40 = arith.constant 2.000000e-01 : f32
    %105 = vector.broadcast %cst_40 : f32 to vector<128x512xf32>
    %106 = arith.mulf %105, %104 : vector<128x512xf32>
    %107 = arith.maximumf %104, %106 : vector<128x512xf32>
    %c0_i32_41 = arith.constant 0 : i32
    %108 = tpu.memref_slice %arg10[%c0_i32_41] : memref<3x!tpu.dma_semaphore, #tpu.memory_space<semaphore_mem>> -> memref<1x!tpu.dma_semaphore, #tpu.memory_space<semaphore_mem>>
    %109 = tpu.memref_squeeze %108 : memref<1x!tpu.dma_semaphore, #tpu.memory_space<semaphore_mem>> -> memref<!tpu.dma_semaphore, #tpu.memory_space<semaphore_mem>>
    tpu.wait_dma2 semaphore(%109 : memref<!tpu.dma_semaphore, #tpu.memory_space<semaphore_mem>>) src(%arg5 : memref<512x1024xi8, #tpu.memory_space<any>>) dst(%arg8 : memref<512x1024xi8, #tpu.memory_space<vmem>>)
    %c0_42 = arith.constant 0 : index
    %c0_43 = arith.constant 0 : index
    %110 = vector.load %arg8[%c0_42, %c0_43] : memref<512x1024xi8, #tpu.memory_space<vmem>>, vector<512x1024xi8>
    %111 = arith.sitofp %110 : vector<512x1024xi8> to vector<512x1024xbf16>
    %112 = arith.truncf %107 : vector<128x512xf32> to vector<128x512xbf16>
    %cst_44 = arith.constant dense<0.000000e+00> : vector<128x1024xf32>
    %113 = tpu.matmul %112, %111, %cst_44 {dimension_numbers = #tpu.dot_dimension_numbers<[1], [0], [0], [1], [0, 0, 1, 1], [], []>} : vector<128x512xbf16>, vector<512x1024xbf16>, vector<128x1024xf32> -> vector<128x1024xf32>
    %114 = vector.broadcast %24 : vector<1x1024xf32> to vector<128x1024xf32>
    %115 = arith.mulf %113, %114 : vector<128x1024xf32>
    %cst_45 = arith.constant dense<0.000000e+00> : vector<1024xf32>
    %116 = vector.multi_reduction <add>, %115, %cst_45 [0] : vector<128x1024xf32> to vector<1024xf32>
    %117 = vector.shape_cast %116 : vector<1024xf32> to vector<1x1024xf32>
    %cst_46 = arith.constant 1.280000e+02 : f32
    %118 = vector.broadcast %cst_46 : f32 to vector<1x1024xf32>
    %119 = arith.divf %117, %118 : vector<1x1024xf32>
    %120 = arith.mulf %115, %115 : vector<128x1024xf32>
    %cst_47 = arith.constant dense<0.000000e+00> : vector<1024xf32>
    %121 = vector.multi_reduction <add>, %120, %cst_47 [0] : vector<128x1024xf32> to vector<1024xf32>
    %122 = vector.shape_cast %121 : vector<1024xf32> to vector<1x1024xf32>
    %cst_48 = arith.constant 1.280000e+02 : f32
    %123 = vector.broadcast %cst_48 : f32 to vector<1x1024xf32>
    %124 = arith.divf %122, %123 : vector<1x1024xf32>
    %125 = arith.mulf %119, %119 : vector<1x1024xf32>
    %126 = arith.subf %124, %125 : vector<1x1024xf32>
    %cst_49 = arith.constant 8.000000e-01 : f32
    %127 = vector.broadcast %cst_49 : f32 to vector<1x1024xf32>
    %128 = arith.addf %126, %127 : vector<1x1024xf32>
    %129 = math.rsqrt %128 : vector<1x1024xf32>
    %130 = arith.mulf %21, %129 : vector<1x1024xf32>
    %131 = arith.mulf %119, %130 : vector<1x1024xf32>
    %132 = arith.subf %22, %131 : vector<1x1024xf32>
    %133 = vector.broadcast %130 : vector<1x1024xf32> to vector<128x1024xf32>
    %134 = arith.mulf %115, %133 : vector<128x1024xf32>
    %135 = vector.broadcast %132 : vector<1x1024xf32> to vector<128x1024xf32>
    %136 = arith.addf %134, %135 : vector<128x1024xf32>
    %cst_50 = arith.constant 2.000000e-01 : f32
    %137 = vector.broadcast %cst_50 : f32 to vector<128x1024xf32>
    %138 = arith.mulf %137, %136 : vector<128x1024xf32>
    %139 = arith.maximumf %136, %138 : vector<128x1024xf32>
    %140 = arith.truncf %139 : vector<128x1024xf32> to vector<128x1024xbf16>
    %c0_i32_51 = arith.constant 0 : i32
    %c0_i32_52 = arith.constant 0 : i32
    %c1_i32_53 = arith.constant 1 : i32
    %c0_i32_54 = arith.constant 0 : i32
    %c0_i32_55 = arith.constant 0 : i32
    %141 = tpu.memref_slice %arg6[%c0_i32_51, %c0_i32_54, %c0_i32_55] : memref<2x1024x128xi8, #tpu.memory_space<any>> -> memref<1x1024x128xi8, #tpu.memory_space<any>>
    %142 = tpu.memref_squeeze %141 : memref<1x1024x128xi8, #tpu.memory_space<any>> -> memref<1024x128xi8, #tpu.memory_space<any>>
    %c0_i32_56 = arith.constant 0 : i32
    %c0_i32_57 = arith.constant 0 : i32
    %143 = tpu.memref_slice %arg9[%c0_i32_52, %c0_i32_56, %c0_i32_57] : memref<2x1024x128xi8, #tpu.memory_space<vmem>> -> memref<1x1024x128xi8, #tpu.memory_space<vmem>>
    %144 = tpu.memref_squeeze %143 : memref<1x1024x128xi8, #tpu.memory_space<vmem>> -> memref<1024x128xi8, #tpu.memory_space<vmem>>
    %145 = tpu.memref_slice %arg10[%c1_i32_53] : memref<3x!tpu.dma_semaphore, #tpu.memory_space<semaphore_mem>> -> memref<1x!tpu.dma_semaphore, #tpu.memory_space<semaphore_mem>>
    %146 = tpu.memref_squeeze %145 : memref<1x!tpu.dma_semaphore, #tpu.memory_space<semaphore_mem>> -> memref<!tpu.dma_semaphore, #tpu.memory_space<semaphore_mem>>
    tpu.wait_dma2 semaphore(%146 : memref<!tpu.dma_semaphore, #tpu.memory_space<semaphore_mem>>) src(%142 : memref<1024x128xi8, #tpu.memory_space<any>>) dst(%144 : memref<1024x128xi8, #tpu.memory_space<vmem>>)
    %c0_58 = arith.constant 0 : index
    %c0_59 = arith.constant 0 : index
    %c0_60 = arith.constant 0 : index
    %147 = vector.load %arg9[%c0_58, %c0_59, %c0_60] : memref<2x1024x128xi8, #tpu.memory_space<vmem>>, vector<1x1024x128xi8>
    %148 = vector.shape_cast %147 : vector<1x1024x128xi8> to vector<1024x128xi8>
    %149 = arith.sitofp %148 : vector<1024x128xi8> to vector<1024x128xbf16>
    %cst_61 = arith.constant dense<0.000000e+00> : vector<128x128xf32>
    %150 = tpu.matmul %140, %149, %cst_61 {dimension_numbers = #tpu.dot_dimension_numbers<[1], [0], [0], [1], [0, 0, 1, 1], [], []>} : vector<128x1024xbf16>, vector<1024x128xbf16>, vector<128x128xf32> -> vector<128x128xf32>
    %151 = vector.extract_strided_slice %25 {offsets = [0, 0], sizes = [1, 128], strides = [1, 1]} : vector<1x256xf32> to vector<1x128xf32>
    %152 = vector.broadcast %151 : vector<1x128xf32> to vector<128x128xf32>
    %153 = arith.mulf %150, %152 : vector<128x128xf32>
    %154 = vector.extract_strided_slice %23 {offsets = [0, 0], sizes = [1, 128], strides = [1, 1]} : vector<1x256xf32> to vector<1x128xf32>
    %155 = vector.broadcast %154 : vector<1x128xf32> to vector<128x128xf32>
    %156 = arith.addf %153, %155 : vector<128x128xf32>
    %157 = math.tanh %156 : vector<128x128xf32>
    %c0_62 = arith.constant 0 : index
    %c0_63 = arith.constant 0 : index
    %158 = vector.load %arg7[%c0_62, %c0_63] : memref<128x256xf32, #tpu.memory_space<vmem>>, vector<128x128xf32>
    tpu.vector_store %arg7[%c0_62, %c0_63], %157 {strides = array<i32>} : memref<128x256xf32, #tpu.memory_space<vmem>>, vector<128x128xf32>,
    %c1_i32_64 = arith.constant 1 : i32
    %c1_i32_65 = arith.constant 1 : i32
    %c2_i32_66 = arith.constant 2 : i32
    %c0_i32_67 = arith.constant 0 : i32
    %c0_i32_68 = arith.constant 0 : i32
    %159 = tpu.memref_slice %arg6[%c1_i32_64, %c0_i32_67, %c0_i32_68] : memref<2x1024x128xi8, #tpu.memory_space<any>> -> memref<1x1024x128xi8, #tpu.memory_space<any>>
    %160 = tpu.memref_squeeze %159 : memref<1x1024x128xi8, #tpu.memory_space<any>> -> memref<1024x128xi8, #tpu.memory_space<any>>
    %c0_i32_69 = arith.constant 0 : i32
    %c0_i32_70 = arith.constant 0 : i32
    %161 = tpu.memref_slice %arg9[%c1_i32_65, %c0_i32_69, %c0_i32_70] : memref<2x1024x128xi8, #tpu.memory_space<vmem>> -> memref<1x1024x128xi8, #tpu.memory_space<vmem>>
    %162 = tpu.memref_squeeze %161 : memref<1x1024x128xi8, #tpu.memory_space<vmem>> -> memref<1024x128xi8, #tpu.memory_space<vmem>>
    %163 = tpu.memref_slice %arg10[%c2_i32_66] : memref<3x!tpu.dma_semaphore, #tpu.memory_space<semaphore_mem>> -> memref<1x!tpu.dma_semaphore, #tpu.memory_space<semaphore_mem>>
    %164 = tpu.memref_squeeze %163 : memref<1x!tpu.dma_semaphore, #tpu.memory_space<semaphore_mem>> -> memref<!tpu.dma_semaphore, #tpu.memory_space<semaphore_mem>>
    tpu.wait_dma2 semaphore(%164 : memref<!tpu.dma_semaphore, #tpu.memory_space<semaphore_mem>>) src(%160 : memref<1024x128xi8, #tpu.memory_space<any>>) dst(%162 : memref<1024x128xi8, #tpu.memory_space<vmem>>)
    %c1 = arith.constant 1 : index
    %c0_71 = arith.constant 0 : index
    %c0_72 = arith.constant 0 : index
    %165 = vector.load %arg9[%c1, %c0_71, %c0_72] : memref<2x1024x128xi8, #tpu.memory_space<vmem>>, vector<1x1024x128xi8>
    %166 = vector.shape_cast %165 : vector<1x1024x128xi8> to vector<1024x128xi8>
    %167 = arith.sitofp %166 : vector<1024x128xi8> to vector<1024x128xbf16>
    %cst_73 = arith.constant dense<0.000000e+00> : vector<128x128xf32>
    %168 = tpu.matmul %140, %167, %cst_73 {dimension_numbers = #tpu.dot_dimension_numbers<[1], [0], [0], [1], [0, 0, 1, 1], [], []>} : vector<128x1024xbf16>, vector<1024x128xbf16>, vector<128x128xf32> -> vector<128x128xf32>
    %169 = vector.extract_strided_slice %25 {offsets = [0, 128], sizes = [1, 128], strides = [1, 1]} : vector<1x256xf32> to vector<1x128xf32>
    %170 = vector.broadcast %169 : vector<1x128xf32> to vector<128x128xf32>
    %171 = arith.mulf %168, %170 : vector<128x128xf32>
    %172 = vector.extract_strided_slice %23 {offsets = [0, 128], sizes = [1, 128], strides = [1, 1]} : vector<1x256xf32> to vector<1x128xf32>
    %173 = vector.broadcast %172 : vector<1x128xf32> to vector<128x128xf32>
    %174 = arith.addf %171, %173 : vector<128x128xf32>
    %175 = math.tanh %174 : vector<128x128xf32>
    %c0_74 = arith.constant 0 : index
    %c128 = arith.constant 128 : index
    %176 = vector.load %arg7[%c0_74, %c128] : memref<128x256xf32, #tpu.memory_space<vmem>>, vector<128x128xf32>
    tpu.vector_store %arg7[%c0_74, %c128], %175 {strides = array<i32>} : memref<128x256xf32, #tpu.memory_space<vmem>>, vector<128x128xf32>,
    return
  }
}

</mosaic_0001>

<llo_original>
// kernel: generator_forward.1
$region0: #{generator_forward.1}
  #allocation0 [shape = 'u32[]', space=smem, size = 0x4, offset = 0x4, fixed_abs, tag = 'smem constant byte address 0x4 - core index']
  #allocation1 [shape = 'u32[144,128]{1,0:T(1,128)}', space=vmem, size = 0x12000, scoped, tag = 'internal scratch']
  #allocation2 [shape = 's8[512,1024]{1,0:T(32,128)(4,1)}', space=vmem, size = 0x80000, scoped, tag = 'scratch operand']
  #allocation3 [shape = 's8[2,1024,128]{2,1,0:T(32,128)(4,1)}', space=vmem, size = 0x40000, scoped, tag = 'scratch operand']
  #allocation4 [shape = 's32[3]{0}', space=sflag, size = 0xc, scoped, tag = 'scratch operand']
  #allocation7 [shape = 's32[]', space=sflag, size = 0x4, offset = 0, fixed_abs, tag = 'sflag constant byte address 0x0 - dummy sync flag']
  #allocation8 [shape = 's32[]', space=sflag, size = 0x4, offset = 0, fixed_abs, tag = 'sflag constant byte address 0x0 - dummy sync flag']
  #allocation9 [shape = 'u32[]', space=smem, size = 0x4, offset = 0x44, fixed_abs, tag = 'smem constant byte address 0x44 - assertion arg 0']
  #allocation10 [shape = 'u32[]', space=smem, size = 0x4, offset = 0x48, fixed_abs, tag = 'smem constant byte address 0x48 - assertion arg 1']
  #allocation11 [shape = 's32[]', space=sflag, size = 0x4, offset = 0, fixed_abs, tag = 'sflag constant byte address 0x0 - dummy sync flag']
  #allocation12 [shape = 's32[]', space=sflag, size = 0x4, offset = 0, fixed_abs, tag = 'sflag constant byte address 0x0 - dummy sync flag']
  #allocation13 [shape = 's32[]', space=sflag, size = 0x4, offset = 0, fixed_abs, tag = 'sflag constant byte address 0x0 - dummy sync flag']
  #allocation14 [shape = 's32[]', space=sflag, size = 0x4, offset = 0, fixed_abs, tag = 'sflag constant byte address 0x0 - dummy sync flag']
  %s0 = inlined_call_operand.vmem [shape: f32[128,128], index: 0, kind: input, shape index: {}]
  %s1 = inlined_call_operand.vmem [shape: bf16[128,128], index: 1, kind: input, shape index: {}]
  %s2 = inlined_call_operand.vmem [shape: bf16[128,256], index: 2, kind: input, shape index: {}]
  %s3 = inlined_call_operand.hbm [shape: bf16[256,512], index: 3, kind: input, shape index: {}]
  %s4 = inlined_call_operand.vmem [shape: f32[16,1024], index: 4, kind: input, shape index: {}]
  %s5 = inlined_call_operand.hbm [shape: s8[512,1024], index: 5, kind: input, shape index: {}]
  %s6 = inlined_call_operand.hbm [shape: s8[2,1024,128], index: 6, kind: input, shape index: {}]
  %s7 = inlined_call_operand.vmem [shape: f32[128,256], index: 7, kind: output, shape index: {}]
  %s8 = sld [smem:[#allocation0]]
  $region46: #{generator_forward.1} parent=0
    _
  %s10 = ssub.s32 1, %s8
  %s11 = scalar_select 0, %s10, %s8
  $region1: #{generator_forward.1} parent=0
    #allocation5 [shape = 'u8[262144]{0}', space=vmem, size = 0x40000, scoped, tag = 'input window, operand 3, single buffered']
    #allocation6 [shape = 's32[1]{0}', space=sflag, size = 0x4, scoped, tag = 'scoped memory for generator_forward.1']
    %12 = vsyncpa [#allocation6], 0
    // Predicated region
    $region2: #{generator_forward.1} parent=1 // pred_check
      _
    $region3: #{generator_forward.1} parent=1 // pred_check_branch
      %14 = sbr.rel (0) target = $region5
    $region4: #{generator_forward.1} parent=1 // pred_region
      _
    $region5: #{generator_forward.1} parent=1 // pred_fallthru
      _
    // Predicated region
    $region6: #{generator_forward.1} parent=1 // pred_check
      _
    $region7: #{generator_forward.1} parent=1 // pred_check_branch
      %16 = sbr.rel (0) target = $region9
    $region8: #{generator_forward.1} parent=1 // pred_region
      _
    $region9: #{generator_forward.1} parent=1 // pred_fallthru
      _
    // Predicated region
    $region10: #{generator_forward.1} parent=1 // pred_check
      _
    $region11: #{generator_forward.1} parent=1 // pred_check_branch
      %18 = sbr.rel (0) target = $region13
    $region12: #{generator_forward.1} parent=1 // pred_region
      _
    $region13: #{generator_forward.1} parent=1 // pred_fallthru
      _
    // Predicated region
    $region14: #{generator_forward.1} parent=1 // pred_check
      _
    $region15: #{generator_forward.1} parent=1 // pred_check_branch
      %20 = sbr.rel (0) target = $region17
    $region16: #{generator_forward.1} parent=1 // pred_region
      %s22 = ssub.s32 8192, 8192
      %23 = vsyncadd [#allocation6], %s22
      %s24 = sshll.u32 [#allocation5], 4
      %s25 = int_to_ptr.vmem [resolvable:$true] %s24
      %30 = dma.hbm_to_vmem [thread:$0]  %s3, 8192, %s25, [#allocation6], 256, 256, 16
    $region17: #{generator_forward.1} parent=1 // pred_fallthru
      _
    // Predicated region
    $region18: #{generator_forward.1} parent=1 // pred_check
      _
    $region19: #{generator_forward.1} parent=1 // pred_check_branch
      %32 = sbr.rel (0) target = $region21
    $region20: #{generator_forward.1} parent=1 // pred_region
      _
    $region21: #{generator_forward.1} parent=1 // pred_fallthru
      _
    // Predicated region
    $region22: #{generator_forward.1} parent=1 // pred_check
      _
    $region23: #{generator_forward.1} parent=1 // pred_check_branch
      %34 = sbr.rel (0) target = $region25
    $region24: #{generator_forward.1} parent=1 // pred_region
      %35 = dma.done [#allocation6], 8192
    $region25: #{generator_forward.1} parent=1 // pred_fallthru
      _
    // Predicated region
    $region26: #{generator_forward.1} parent=1 // pred_check
      _
    $region27: #{generator_forward.1} parent=1 // pred_check_branch
      %38 = sbr.rel target = $region29
    $region28: #{generator_forward.1} parent=1 // pred_region
      %39 = sst [smem:[#allocation9]] [#allocation8]
      %40 = sst [smem:[#allocation10]] [#allocation7]
    $region29: #{generator_forward.1} parent=1 // pred_fallthru
      _
    %42 = shalt.err (0)
    %s44 = sshll.u32 [#allocation2], 4
    %s45 = int_to_ptr.vmem [resolvable:$true] %s44
    %47 = dma.hbm_to_vmem [thread:$0]  %s5, 16384, %s45, [#allocation4]
    %s48 = scalar_lea.sflag [#allocation4], 1
    // Predicated region
    $region30: #{generator_forward.1} parent=1 // pred_check
      _
    $region31: #{generator_forward.1} parent=1 // pred_check_branch
      %50 = sbr.rel target = $region33
    $region32: #{generator_forward.1} parent=1 // pred_region
      %51 = sst [smem:[#allocation9]] [#allocation12]
      %52 = sst [smem:[#allocation10]] [#allocation11]
    $region33: #{generator_forward.1} parent=1 // pred_fallthru
      _
    %54 = shalt.err (0)
    %s56 = sshll.u32 [#allocation3], 4
    %s57 = int_to_ptr.vmem [resolvable:$true] %s56
    %59 = dma.hbm_to_vmem [thread:$0]  %s6, 4096, %s57, %s48
    %s60 = scalar_lea.hbm %s6, 4096
    %s61 = scalar_lea.vmem [#allocation3], 256
    %s62 = scalar_lea.sflag [#allocation4], 2
    // Predicated region
    $region34: #{generator_forward.1} parent=1 // pred_check
      _
    $region35: #{generator_forward.1} parent=1 // pred_check_branch
      %64 = sbr.rel target = $region37
    $region36: #{generator_forward.1} parent=1 // pred_region
      %65 = sst [smem:[#allocation9]] [#allocation14]
      %66 = sst [smem:[#allocation10]] [#allocation13]
    $region37: #{generator_forward.1} parent=1 // pred_fallthru
      _
    %68 = shalt.err (0)
    %s70 = sshll.u32 %s61, 4
    %s71 = int_to_ptr.vmem [resolvable:$true] %s70
    %73 = dma.hbm_to_vmem [thread:$0]  %s60, 4096, %s71, %s62
    %v74 = vld [vmem:[%s4] sm:$0xff]
    %v75 = vld [vmem:[%s4 + $0x8] sm:$0xff]
    %v76 = vld [vmem:[%s4 + $0x10] sm:$0xff]
    %v77 = vld [vmem:[%s4 + $0x18] sm:$0xff]
    %v78 = vld [vmem:[%s4 + $0x20] sm:$0xff]
    %v79 = vld [vmem:[%s4 + $0x28] sm:$0xff]
    %v80 = vld [vmem:[%s4 + $0x30] sm:$0xff]
    %v81 = vld [vmem:[%s4 + $0x38] sm:$0xff]
    %v82 = vld [vmem:[%s4 + $0x40] sm:$0xff]
    %v83 = vld [vmem:[%s4 + $0x48] sm:$0xff]
    %v84 = vld [vmem:[%s4 + $0x50] sm:$0xff]
    %v85 = vld [vmem:[%s4 + $0x58] sm:$0xff]
    %v86 = vld [vmem:[%s4 + $0x60] sm:$0xff]
    %v87 = vld [vmem:[%s4 + $0x68] sm:$0xff]
    %v88 = vld [vmem:[%s4 + $0x70] sm:$0xff]
    %v89 = vld [vmem:[%s4 + $0x78] sm:$0xff]
    %v90 = vld [vmem:[%s0] sm:$0xff]
    %v91 = vld [vmem:[%s0 + $0x8] sm:$0xff]
    %v92 = vld [vmem:[%s0 + $0x10] sm:$0xff]
    %v93 = vld [vmem:[%s0 + $0x18] sm:$0xff]
    %v94 = vld [vmem:[%s0 + $0x20] sm:$0xff]
    %v95 = vld [vmem:[%s0 + $0x28] sm:$0xff]
    %v96 = vld [vmem:[%s0 + $0x30] sm:$0xff]
    %v97 = vld [vmem:[%s0 + $0x38] sm:$0xff]
    %v98 = vld [vmem:[%s0 + $0x40] sm:$0xff]
    %v99 = vld [vmem:[%s0 + $0x48] sm:$0xff]
    %v100 = vld [vmem:[%s0 + $0x50] sm:$0xff]
    %v101 = vld [vmem:[%s0 + $0x58] sm:$0xff]
    %v102 = vld [vmem:[%s0 + $0x60] sm:$0xff]
    %v103 = vld [vmem:[%s0 + $0x68] sm:$0xff]
    %v104 = vld [vmem:[%s0 + $0x70] sm:$0xff]
    %v105 = vld [vmem:[%s0 + $0x78] sm:$0xff]
    %v106 = vpack.c.bf16 %v91, %v90
    %v107 = vpack.c.bf16 %v93, %v92
    %v108 = vpack.c.bf16 %v95, %v94
    %v109 = vpack.c.bf16 %v97, %v96
    %v110 = vpack.c.bf16 %v99, %v98
    %v111 = vpack.c.bf16 %v101, %v100
    %v112 = vpack.c.bf16 %v103, %v102
    %v113 = vpack.c.bf16 %v105, %v104
    %v114 = vld [vmem:[%s1] sm:$0xf]
    %v115 = vld [vmem:[%s1 + $0x4] sm:$0xf]
    %v116 = vld [vmem:[%s1 + $0x8] sm:$0xf]
    %v117 = vld [vmem:[%s1 + $0xc] sm:$0xf]
    %v118 = vld [vmem:[%s1 + $0x10] sm:$0xf]
    %v119 = vld [vmem:[%s1 + $0x14] sm:$0xf]
    %v120 = vld [vmem:[%s1 + $0x18] sm:$0xf]
    %v121 = vld [vmem:[%s1 + $0x1c] sm:$0xf]
    %v122 = vld [vmem:[%s1 + $0x20] sm:$0xf]
    %v123 = vld [vmem:[%s1 + $0x24] sm:$0xf]
    %v124 = vld [vmem:[%s1 + $0x28] sm:$0xf]
    %v125 = vld [vmem:[%s1 + $0x2c] sm:$0xf]
    %v126 = vld [vmem:[%s1 + $0x30] sm:$0xf]
    %v127 = vld [vmem:[%s1 + $0x34] sm:$0xf]
    %v128 = vld [vmem:[%s1 + $0x38] sm:$0xf]
    %v129 = vld [vmem:[%s1 + $0x3c] sm:$0xf]
    %v146 = vunpack.c.l.b16 %v114
    %v147 = vunpack.c.l.b16 %v115
    %v148 = vunpack.c.l.b16 %v116
    %v149 = vunpack.c.l.b16 %v117
    %v150 = vunpack.c.l.b16 %v118
    %v151 = vunpack.c.l.b16 %v119
    %v152 = vunpack.c.l.b16 %v120
    %v153 = vunpack.c.l.b16 %v121
    %v154 = vunpack.c.l.b16 %v122
    %v155 = vunpack.c.l.b16 %v123
    %v156 = vunpack.c.l.b16 %v124
    %v157 = vunpack.c.l.b16 %v125
    %v158 = vunpack.c.l.b16 %v126
    %v159 = vunpack.c.l.b16 %v127
    %v160 = vunpack.c.l.b16 %v128
    %v161 = vunpack.c.l.b16 %v129
    %v162 = vpack.c.b16 %v147, %v146
    %v163 = vpack.c.b16 %v149, %v148
    %v164 = vpack.c.b16 %v151, %v150
    %v165 = vpack.c.b16 %v153, %v152
    %v166 = vpack.c.b16 %v155, %v154
    %v167 = vpack.c.b16 %v157, %v156
    %v168 = vpack.c.b16 %v159, %v158
    %v169 = vpack.c.b16 %v161, %v160
    %178 = vmatprep.subr.bf16.mxu0 0
    %179 = vmatpush1.bf16.msra.mxu0 %v162
    %180 = vmatprep.subr.bf16.mxu0 0
    %181 = vmatpush1.bf16.msra.mxu0 %v163
    %182 = vmatprep.subr.bf16.mxu0 0
    %183 = vmatpush1.bf16.msra.mxu0 %v164
    %184 = vmatprep.subr.bf16.mxu0 0
    %185 = vmatpush1.bf16.msra.mxu0 %v165
    %186 = vmatprep.subr.bf16.mxu0 0
    %187 = vmatpush1.bf16.msra.mxu0 %v166
    %188 = vmatprep.subr.bf16.mxu0 0
    %189 = vmatpush1.bf16.msra.mxu0 %v167
    %190 = vmatprep.subr.bf16.mxu0 0
    %191 = vmatpush1.bf16.msra.mxu0 %v168
    %192 = vmatprep.subr.bf16.mxu0 0
    %193 = vmatpush1.bf16.msra.mxu0 %v169
    %194 = vmatprep.subr.bf16.mxu0 0
    %195 = vmatpush1.bf16.msra.mxu0 0
    %196 = vmatprep.subr.bf16.mxu0 0
    %197 = vmatpush1.bf16.msra.mxu0 0
    %198 = vmatprep.subr.bf16.mxu0 0
    %199 = vmatpush1.bf16.msra.mxu0 0
    %200 = vmatprep.subr.bf16.mxu0 0
    %201 = vmatpush1.bf16.msra.mxu0 0
    %202 = vmatprep.subr.bf16.mxu0 0
    %203 = vmatpush1.bf16.msra.mxu0 0
    %204 = vmatprep.subr.bf16.mxu0 0
    %205 = vmatpush1.bf16.msra.mxu0 0
    %206 = vmatprep.subr.bf16.mxu0 0
    %207 = vmatpush1.bf16.msra.mxu0 0
    %208 = vmatprep.subr.bf16.mxu0 0
    %209 = vmatpush1.bf16.msra.mxu0 0
    %210 = vmatprep.mubr.bf16.mxu0 0
    %211 = vmatmul.mubr.bf16.gmra.mrb[0].mxu0 %v106
    %v212 = vpop.f32.mrb[0].mxu0
    %v213 = vadd.f32 0.0, %v212
    %v214 = vpop.f32.mrb[0].mxu0
    %v215 = vpop.f32.mrb[0].mxu0
    %v216 = vadd.f32 0.0, %v215
    %v217 = vpop.f32.mrb[0].mxu0
    %218 = vmatprep.mubr.bf16.mxu0 0
    %219 = vmatmul.mubr.bf16.gmra.mrb[0].mxu0 %v107
    %v220 = vpop.f32.mrb[0].mxu0
    %v221 = vadd.f32 0.0, %v220
    %v222 = vpop.f32.mrb[0].mxu0
    %v223 = vpop.f32.mrb[0].mxu0
    %v224 = vadd.f32 0.0, %v223
    %v225 = vpop.f32.mrb[0].mxu0
    %226 = vmatprep.mubr.bf16.mxu0 0
    %227 = vmatmul.mubr.bf16.gmra.mrb[0].mxu0 %v108
    %v228 = vpop.f32.mrb[0].mxu0
    %v229 = vadd.f32 0.0, %v228
    %v230 = vpop.f32.mrb[0].mxu0
    %v231 = vpop.f32.mrb[0].mxu0
    %v232 = vadd.f32 0.0, %v231
    %v233 = vpop.f32.mrb[0].mxu0
    %234 = vmatprep.mubr.bf16.mxu0 0
    %235 = vmatmul.mubr.bf16.gmra.mrb[0].mxu0 %v109
    %v236 = vpop.f32.mrb[0].mxu0
    %v237 = vadd.f32 0.0, %v236
    %v238 = vpop.f32.mrb[0].mxu0
    %v239 = vpop.f32.mrb[0].mxu0
    %v240 = vadd.f32 0.0, %v239
    %v241 = vpop.f32.mrb[0].mxu0
    %242 = vmatprep.mubr.bf16.mxu0 0
    %243 = vmatmul.mubr.bf16.gmra.mrb[0].mxu0 %v110
    %v244 = vpop.f32.mrb[0].mxu0
    %v245 = vadd.f32 0.0, %v244
    %v246 = vpop.f32.mrb[0].mxu0
    %v247 = vpop.f32.mrb[0].mxu0
    %v248 = vadd.f32 0.0, %v247
    %v249 = vpop.f32.mrb[0].mxu0
    %250 = vmatprep.mubr.bf16.mxu0 0
    %251 = vmatmul.mubr.bf16.gmra.mrb[0].mxu0 %v111
    %v252 = vpop.f32.mrb[0].mxu0
    %v253 = vadd.f32 0.0, %v252
    %v254 = vpop.f32.mrb[0].mxu0
    %v255 = vpop.f32.mrb[0].mxu0
    %v256 = vadd.f32 0.0, %v255
    %v257 = vpop.f32.mrb[0].mxu0
    %258 = vmatprep.mubr.bf16.mxu0 0
    %259 = vmatmul.mubr.bf16.gmra.mrb[0].mxu0 %v112
    %v260 = vpop.f32.mrb[0].mxu0
    %v261 = vadd.f32 0.0, %v260
    %v262 = vpop.f32.mrb[0].mxu0
    %v263 = vpop.f32.mrb[0].mxu0
    %v264 = vadd.f32 0.0, %v263
    %v265 = vpop.f32.mrb[0].mxu0
    %266 = vmatprep.mubr.bf16.mxu0 0
    %267 = vmatmul.mubr.bf16.gmra.mrb[0].mxu0 %v113
    %v268 = vpop.f32.mrb[0].mxu0
    %v269 = vadd.f32 0.0, %v268
    %v270 = vpop.f32.mrb[0].mxu0
    %v271 = vpop.f32.mrb[0].mxu0
    %v272 = vadd.f32 0.0, %v271
    %v273 = vpop.f32.mrb[0].mxu0
    %274 = vdwg.mxu0
    %v275 = vadd.f32 %v213, %v216
    %v276 = vadd.f32 %v275, %v221
    %v277 = vadd.f32 %v276, %v224
    %v278 = vadd.f32 %v277, %v229
    %v279 = vadd.f32 %v278, %v232
    %v280 = vadd.f32 %v279, %v237
    %v281 = vadd.f32 %v280, %v240
    %v282 = vadd.f32 %v281, %v245
    %v283 = vadd.f32 %v282, %v248
    %v284 = vadd.f32 %v283, %v253
    %v285 = vadd.f32 %v284, %v256
    %v286 = vadd.f32 %v285, %v261
    %v287 = vadd.f32 %v286, %v264
    %v288 = vadd.f32 %v287, %v269
    %v289 = vadd.f32 %v288, %v272
    %v290 = vrot.slane %v289, 4
    %v291 = vadd.f32 %v289, %v290
    %v292 = vrot.slane %v291, 2
    %v293 = vadd.f32 %v291, %v292
    %v294 = vrot.slane %v293, 1
    %v295 = vadd.f32 %v293, %v294
    %v296 = vrcp.pop 128.0
    %v297 = vmul.f32 %v295, %v296
    %v298 = vmul.f32 %v213, %v213
    %v299 = vmul.f32 %v216, %v216
    %v300 = vmul.f32 %v221, %v221
    %v301 = vmul.f32 %v224, %v224
    %v302 = vmul.f32 %v229, %v229
    %v303 = vmul.f32 %v232, %v232
    %v304 = vmul.f32 %v237, %v237
    %v305 = vmul.f32 %v240, %v240
    %v306 = vmul.f32 %v245, %v245
    %v307 = vmul.f32 %v248, %v248
    %v308 = vmul.f32 %v253, %v253
    %v309 = vmul.f32 %v256, %v256
    %v310 = vmul.f32 %v261, %v261
    %v311 = vmul.f32 %v264, %v264
    %v312 = vmul.f32 %v269, %v269
    %v313 = vmul.f32 %v272, %v272
    %v314 = vadd.f32 %v298, %v299
    %v315 = vadd.f32 %v314, %v300
    %v316 = vadd.f32 %v315, %v301
    %v317 = vadd.f32 %v316, %v302
    %v318 = vadd.f32 %v317, %v303
    %v319 = vadd.f32 %v318, %v304
    %v320 = vadd.f32 %v319, %v305
    %v321 = vadd.f32 %v320, %v306
    %v322 = vadd.f32 %v321, %v307
    %v323 = vadd.f32 %v322, %v308
    %v324 = vadd.f32 %v323, %v309
    %v325 = vadd.f32 %v324, %v310
    %v326 = vadd.f32 %v325, %v311
    %v327 = vadd.f32 %v326, %v312
    %v328 = vadd.f32 %v327, %v313
    %v329 = vrot.slane %v328, 4
    %v330 = vadd.f32 %v328, %v329
    %v331 = vrot.slane %v330, 2
    %v332 = vadd.f32 %v330, %v331
    %v333 = vrot.slane %v332, 1
    %v334 = vadd.f32 %v332, %v333
    %v335 = vmul.f32 %v334, %v296
    %v336 = vmul.f32 %v297, %v297
    %v337 = vsub.f32 %v335, %v336
    %v338 = vadd.f32 %v337, 0.8
    %v339 = vrsqrt.pop %v338
    %v340 = vmul.f32 %v74, %v339
    %v341 = vmul.f32 %v297, %v340
    %v343 = vrot.slane %v341, 7
    %v345 = vsub.f32 %v74, %v343
    %v346 = vlaneseq
    %v347 = vshrl.u32 %v346, 7
    %v348 = vsub.s32 0, %v347
    %v349 = vrot.slane %v340, %v348
    %v350 = vmul.f32 %v213, %v349
    %v351 = vmul.f32 %v216, %v349
    %v352 = vmul.f32 %v221, %v349
    %v353 = vmul.f32 %v224, %v349
    %v354 = vmul.f32 %v229, %v349
    %v355 = vmul.f32 %v232, %v349
    %v356 = vmul.f32 %v237, %v349
    %v357 = vmul.f32 %v240, %v349
    %v358 = vmul.f32 %v245, %v349
    %v359 = vmul.f32 %v248, %v349
    %v360 = vmul.f32 %v253, %v349
    %v361 = vmul.f32 %v256, %v349
    %v362 = vmul.f32 %v261, %v349
    %v363 = vmul.f32 %v264, %v349
    %v364 = vmul.f32 %v269, %v349
    %v365 = vmul.f32 %v272, %v349
    %v366 = vlaneseq
    %v367 = vshrl.u32 %v366, 7
    %v368 = vsub.s32 1, %v367
    %v369 = vrot.slane %v345, %v368
    %v370 = vadd.f32 %v350, %v369
    %v371 = vadd.f32 %v351, %v369
    %v372 = vadd.f32 %v352, %v369
    %v373 = vadd.f32 %v353, %v369
    %v374 = vadd.f32 %v354, %v369
    %v375 = vadd.f32 %v355, %v369
    %v376 = vadd.f32 %v356, %v369
    %v377 = vadd.f32 %v357, %v369
    %v378 = vadd.f32 %v358, %v369
    %v379 = vadd.f32 %v359, %v369
    %v380 = vadd.f32 %v360, %v369
    %v381 = vadd.f32 %v361, %v369
    %v382 = vadd.f32 %v362, %v369
    %v383 = vadd.f32 %v363, %v369
    %v384 = vadd.f32 %v364, %v369
    %v385 = vadd.f32 %v365, %v369
    %v386 = vmul.f32 %v370, 0.2
    %v387 = vmul.f32 %v371, 0.2
    %v388 = vmul.f32 %v372, 0.2
    %v389 = vmul.f32 %v373, 0.2
    %v390 = vmul.f32 %v374, 0.2
    %v391 = vmul.f32 %v375, 0.2
    %v392 = vmul.f32 %v376, 0.2
    %v393 = vmul.f32 %v377, 0.2
    %v394 = vmul.f32 %v378, 0.2
    %v395 = vmul.f32 %v379, 0.2
    %v396 = vmul.f32 %v380, 0.2
    %v397 = vmul.f32 %v381, 0.2
    %v398 = vmul.f32 %v382, 0.2
    %v399 = vmul.f32 %v383, 0.2
    %v400 = vmul.f32 %v384, 0.2
    %v401 = vmul.f32 %v385, 0.2
    %v402 = vmax.f32 %v370, %v386
    %v403 = vmax.f32 %v371, %v387
    %v404 = vmax.f32 %v372, %v388
    %v405 = vmax.f32 %v373, %v389
    %v406 = vmax.f32 %v374, %v390
    %v407 = vmax.f32 %v375, %v391
    %v408 = vmax.f32 %v376, %v392
    %v409 = vmax.f32 %v377, %v393
    %v410 = vmax.f32 %v378, %v394
    %v411 = vmax.f32 %v379, %v395
    %v412 = vmax.f32 %v380, %v396
    %v413 = vmax.f32 %v381, %v397
    %v414 = vmax.f32 %v382, %v398
    %v415 = vmax.f32 %v383, %v399
    %v416 = vmax.f32 %v384, %v400
    %v417 = vmax.f32 %v385, %v401
    %v418 = vpack.c.bf16 %v403, %v402
    %v419 = vpack.c.bf16 %v405, %v404
    %v420 = vpack.c.bf16 %v407, %v406
    %v421 = vpack.c.bf16 %v409, %v408
    %v422 = vpack.c.bf16 %v411, %v410
    %v423 = vpack.c.bf16 %v413, %v412
    %v424 = vpack.c.bf16 %v415, %v414
    %v425 = vpack.c.bf16 %v417, %v416
    %v426 = vld [vmem:[%s2] sm:$0xff]
    %v427 = vld [vmem:[%s2 + $0x8] sm:$0xff]
    %v428 = vld [vmem:[%s2 + $0x10] sm:$0xff]
    %v429 = vld [vmem:[%s2 + $0x18] sm:$0xff]
    %v430 = vld [vmem:[%s2 + $0x20] sm:$0xff]
    %v431 = vld [vmem:[%s2 + $0x28] sm:$0xff]
    %v432 = vld [vmem:[%s2 + $0x30] sm:$0xff]
    %v433 = vld [vmem:[%s2 + $0x38] sm:$0xff]
    %v434 = vld [vmem:[%s2 + $0x40] sm:$0xff]
    %v435 = vld [vmem:[%s2 + $0x48] sm:$0xff]
    %v436 = vld [vmem:[%s2 + $0x50] sm:$0xff]
    %v437 = vld [vmem:[%s2 + $0x58] sm:$0xff]
    %v438 = vld [vmem:[%s2 + $0x60] sm:$0xff]
    %v439 = vld [vmem:[%s2 + $0x68] sm:$0xff]
    %v440 = vld [vmem:[%s2 + $0x70] sm:$0xff]
    %v441 = vld [vmem:[%s2 + $0x78] sm:$0xff]
    %v458 = vunpack.c.l.b16 %v426
    %v459 = vunpack.c.h.b16 %v426
    %v460 = vunpack.c.l.b16 %v427
    %v461 = vunpack.c.h.b16 %v427
    %v462 = vunpack.c.l.b16 %v428
    %v463 = vunpack.c.h.b16 %v428
    %v464 = vunpack.c.l.b16 %v429
    %v465 = vunpack.c.h.b16 %v429
    %v466 = vunpack.c.l.b16 %v430
    %v467 = vunpack.c.h.b16 %v430
    %v468 = vunpack.c.l.b16 %v431
    %v469 = vunpack.c.h.b16 %v431
    %v470 = vunpack.c.l.b16 %v432
    %v471 = vunpack.c.h.b16 %v432
    %v472 = vunpack.c.l.b16 %v433
    %v473 = vunpack.c.h.b16 %v433
    %v474 = vunpack.c.l.b16 %v434
    %v475 = vunpack.c.h.b16 %v434
    %v476 = vunpack.c.l.b16 %v435
    %v477 = vunpack.c.h.b16 %v435
    %v478 = vunpack.c.l.b16 %v436
    %v479 = vunpack.c.h.b16 %v436
    %v480 = vunpack.c.l.b16 %v437
    %v481 = vunpack.c.h.b16 %v437
    %v482 = vunpack.c.l.b16 %v438
    %v483 = vunpack.c.h.b16 %v438
    %v484 = vunpack.c.l.b16 %v439
    %v485 = vunpack.c.h.b16 %v439
    %v486 = vunpack.c.l.b16 %v440
    %v487 = vunpack.c.h.b16 %v440
    %v488 = vunpack.c.l.b16 %v441
    %v489 = vunpack.c.h.b16 %v441
    %v490 = vpack.c.b16 %v460, %v458
    %v491 = vpack.c.b16 %v461, %v459
    %v492 = vpack.c.b16 %v464, %v462
    %v493 = vpack.c.b16 %v465, %v463
    %v494 = vpack.c.b16 %v468, %v466
    %v495 = vpack.c.b16 %v469, %v467
    %v496 = vpack.c.b16 %v472, %v470
    %v497 = vpack.c.b16 %v473, %v471
    %v498 = vpack.c.b16 %v476, %v474
    %v499 = vpack.c.b16 %v477, %v475
    %v500 = vpack.c.b16 %v480, %v478
    %v501 = vpack.c.b16 %v481, %v479
    %v502 = vpack.c.b16 %v484, %v482
    %v503 = vpack.c.b16 %v485, %v483
    %v504 = vpack.c.b16 %v488, %v486
    %v505 = vpack.c.b16 %v489, %v487
    %522 = vmatprep.subr.bf16.mxu0 %v491
    %523 = vmatpush1.bf16.msra.mxu0 %v490
    %524 = vmatprep.subr.bf16.mxu0 %v493
    %525 = vmatpush1.bf16.msra.mxu0 %v492
    %526 = vmatprep.subr.bf16.mxu0 %v495
    %527 = vmatpush1.bf16.msra.mxu0 %v494
    %528 = vmatprep.subr.bf16.mxu0 %v497
    %529 = vmatpush1.bf16.msra.mxu0 %v496
    %530 = vmatprep.subr.bf16.mxu0 %v499
    %531 = vmatpush1.bf16.msra.mxu0 %v498
    %532 = vmatprep.subr.bf16.mxu0 %v501
    %533 = vmatpush1.bf16.msra.mxu0 %v500
    %534 = vmatprep.subr.bf16.mxu0 %v503
    %535 = vmatpush1.bf16.msra.mxu0 %v502
    %536 = vmatprep.subr.bf16.mxu0 %v505
    %537 = vmatpush1.bf16.msra.mxu0 %v504
    %538 = vmatprep.subr.bf16.mxu0 0
    %539 = vmatpush1.bf16.msra.mxu0 0
    %540 = vmatprep.subr.bf16.mxu0 0
    %541 = vmatpush1.bf16.msra.mxu0 0
    %542 = vmatprep.subr.bf16.mxu0 0
    %543 = vmatpush1.bf16.msra.mxu0 0
    %544 = vmatprep.subr.bf16.mxu0 0
    %545 = vmatpush1.bf16.msra.mxu0 0
    %546 = vmatprep.subr.bf16.mxu0 0
    %547 = vmatpush1.bf16.msra.mxu0 0
    %548 = vmatprep.subr.bf16.mxu0 0
    %549 = vmatpush1.bf16.msra.mxu0 0
    %550 = vmatprep.subr.bf16.mxu0 0
    %551 = vmatpush1.bf16.msra.mxu0 0
    %552 = vmatprep.subr.bf16.mxu0 0
    %553 = vmatpush1.bf16.msra.mxu0 0
    %554 = vmatprep.mubr.bf16.mxu0 0
    %555 = vmatmul.mubr.bf16.gmra.mrb[0].mxu0 %v418
    %v556 = vpop.f32.mrb[0].mxu0
    %v557 = vadd.f32 0.0, %v556
    %v558 = vpop.f32.mrb[0].mxu0
    %v559 = vadd.f32 0.0, %v558
    %v560 = vpop.f32.mrb[0].mxu0
    %v561 = vadd.f32 0.0, %v560
    %v562 = vpop.f32.mrb[0].mxu0
    %v563 = vadd.f32 0.0, %v562
    %564 = vmatprep.mubr.bf16.mxu0 0
    %565 = vmatmul.mubr.bf16.gmra.mrb[0].mxu0 %v419
    %v566 = vpop.f32.mrb[0].mxu0
    %v567 = vadd.f32 0.0, %v566
    %v568 = vpop.f32.mrb[0].mxu0
    %v569 = vadd.f32 0.0, %v568
    %v570 = vpop.f32.mrb[0].mxu0
    %v571 = vadd.f32 0.0, %v570
    %v572 = vpop.f32.mrb[0].mxu0
    %v573 = vadd.f32 0.0, %v572
    %574 = vmatprep.mubr.bf16.mxu0 0
    %575 = vmatmul.mubr.bf16.gmra.mrb[0].mxu0 %v420
    %v576 = vpop.f32.mrb[0].mxu0
    %v577 = vadd.f32 0.0, %v576
    %v578 = vpop.f32.mrb[0].mxu0
    %v579 = vadd.f32 0.0, %v578
    %v580 = vpop.f32.mrb[0].mxu0
    %v581 = vadd.f32 0.0, %v580
    %v582 = vpop.f32.mrb[0].mxu0
    %v583 = vadd.f32 0.0, %v582
    %584 = vmatprep.mubr.bf16.mxu0 0
    %585 = vmatmul.mubr.bf16.gmra.mrb[0].mxu0 %v421
    %v586 = vpop.f32.mrb[0].mxu0
    %v587 = vadd.f32 0.0, %v586
    %v588 = vpop.f32.mrb[0].mxu0
    %v589 = vadd.f32 0.0, %v588
    %v590 = vpop.f32.mrb[0].mxu0
    %v591 = vadd.f32 0.0, %v590
    %v592 = vpop.f32.mrb[0].mxu0
    %v593 = vadd.f32 0.0, %v592
    %594 = vmatprep.mubr.bf16.mxu0 0
    %595 = vmatmul.mubr.bf16.gmra.mrb[0].mxu0 %v422
    %v596 = vpop.f32.mrb[0].mxu0
    %v597 = vadd.f32 0.0, %v596
    %v598 = vpop.f32.mrb[0].mxu0
    %v599 = vadd.f32 0.0, %v598
    %v600 = vpop.f32.mrb[0].mxu0
    %v601 = vadd.f32 0.0, %v600
    %v602 = vpop.f32.mrb[0].mxu0
    %v603 = vadd.f32 0.0, %v602
    %604 = vmatprep.mubr.bf16.mxu0 0
    %605 = vmatmul.mubr.bf16.gmra.mrb[0].mxu0 %v423
    %v606 = vpop.f32.mrb[0].mxu0
    %v607 = vadd.f32 0.0, %v606
    %v608 = vpop.f32.mrb[0].mxu0
    %v609 = vadd.f32 0.0, %v608
    %v610 = vpop.f32.mrb[0].mxu0
    %v611 = vadd.f32 0.0, %v610
    %v612 = vpop.f32.mrb[0].mxu0
    %v613 = vadd.f32 0.0, %v612
    %614 = vmatprep.mubr.bf16.mxu0 0
    %615 = vmatmul.mubr.bf16.gmra.mrb[0].mxu0 %v424
    %v616 = vpop.f32.mrb[0].mxu0
    %v617 = vadd.f32 0.0, %v616
    %v618 = vpop.f32.mrb[0].mxu0
    %v619 = vadd.f32 0.0, %v618
    %v620 = vpop.f32.mrb[0].mxu0
    %v621 = vadd.f32 0.0, %v620
    %v622 = vpop.f32.mrb[0].mxu0
    %v623 = vadd.f32 0.0, %v622
    %624 = vmatprep.mubr.bf16.mxu0 0
    %625 = vmatmul.mubr.bf16.gmra.mrb[0].mxu0 %v425
    %v626 = vpop.f32.mrb[0].mxu0
    %v627 = vadd.f32 0.0, %v626
    %v628 = vpop.f32.mrb[0].mxu0
    %v629 = vadd.f32 0.0, %v628
    %v630 = vpop.f32.mrb[0].mxu0
    %v631 = vadd.f32 0.0, %v630
    %v632 = vpop.f32.mrb[0].mxu0
    %v633 = vadd.f32 0.0, %v632
    %634 = vdwg.mxu0
    %v635 = vadd.f32 %v557, %v561
    %v636 = vadd.f32 %v635, %v567
    %v637 = vadd.f32 %v636, %v571
    %v638 = vadd.f32 %v637, %v577
    %v639 = vadd.f32 %v638, %v581
    %v640 = vadd.f32 %v639, %v587
    %v641 = vadd.f32 %v640, %v591
    %v642 = vadd.f32 %v641, %v597
    %v643 = vadd.f32 %v642, %v601
    %v644 = vadd.f32 %v643, %v607
    %v645 = vadd.f32 %v644, %v611
    %v646 = vadd.f32 %v645, %v617
    %v647 = vadd.f32 %v646, %v621
    %v648 = vadd.f32 %v647, %v627
    %v649 = vadd.f32 %v648, %v631
    %v650 = vrot.slane %v649, 4
    %v651 = vadd.f32 %v649, %v650
    %v652 = vrot.slane %v651, 2
    %v653 = vadd.f32 %v651, %v652
    %v654 = vrot.slane %v653, 1
    %v655 = vadd.f32 %v653, %v654
    %v656 = vadd.f32 %v559, %v563
    %v657 = vadd.f32 %v656, %v569
    %v658 = vadd.f32 %v657, %v573
    %v659 = vadd.f32 %v658, %v579
    %v660 = vadd.f32 %v659, %v583
    %v661 = vadd.f32 %v660, %v589
    %v662 = vadd.f32 %v661, %v593
    %v663 = vadd.f32 %v662, %v599
    %v664 = vadd.f32 %v663, %v603
    %v665 = vadd.f32 %v664, %v609
    %v666 = vadd.f32 %v665, %v613
    %v667 = vadd.f32 %v666, %v619
    %v668 = vadd.f32 %v667, %v623
    %v669 = vadd.f32 %v668, %v629
    %v670 = vadd.f32 %v669, %v633
    %v671 = vrot.slane %v670, 4
    %v672 = vadd.f32 %v670, %v671
    %v673 = vrot.slane %v672, 2
    %v674 = vadd.f32 %v672, %v673
    %v675 = vrot.slane %v674, 1
    %v676 = vadd.f32 %v674, %v675
    %v677 = vmul.f32 %v655, %v296
    %v678 = vmul.f32 %v676, %v296
    %v679 = vmul.f32 %v557, %v557
    %v680 = vmul.f32 %v559, %v559
    %v681 = vmul.f32 %v561, %v561
    %v682 = vmul.f32 %v563, %v563
    %v683 = vmul.f32 %v567, %v567
    %v684 = vmul.f32 %v569, %v569
    %v685 = vmul.f32 %v571, %v571
    %v686 = vmul.f32 %v573, %v573
    %v687 = vmul.f32 %v577, %v577
    %v688 = vmul.f32 %v579, %v579
    %v689 = vmul.f32 %v581, %v581
    %v690 = vmul.f32 %v583, %v583
    %v691 = vmul.f32 %v587, %v587
    %v692 = vmul.f32 %v589, %v589
    %v693 = vmul.f32 %v591, %v591
    %v694 = vmul.f32 %v593, %v593
    %v695 = vmul.f32 %v597, %v597
    %v696 = vmul.f32 %v599, %v599
    %v697 = vmul.f32 %v601, %v601
    %v698 = vmul.f32 %v603, %v603
    %v699 = vmul.f32 %v607, %v607
    %v700 = vmul.f32 %v609, %v609
    %v701 = vmul.f32 %v611, %v611
    %v702 = vmul.f32 %v613, %v613
    %v703 = vmul.f32 %v617, %v617
    %v704 = vmul.f32 %v619, %v619
    %v705 = vmul.f32 %v621, %v621
    %v706 = vmul.f32 %v623, %v623
    %v707 = vmul.f32 %v627, %v627
    %v708 = vmul.f32 %v629, %v629
    %v709 = vmul.f32 %v631, %v631
    %v710 = vmul.f32 %v633, %v633
    %v711 = vadd.f32 %v679, %v681
    %v712 = vadd.f32 %v711, %v683
    %v713 = vadd.f32 %v712, %v685
    %v714 = vadd.f32 %v713, %v687
    %v715 = vadd.f32 %v714, %v689
    %v716 = vadd.f32 %v715, %v691
    %v717 = vadd.f32 %v716, %v693
    %v718 = vadd.f32 %v717, %v695
    %v719 = vadd.f32 %v718, %v697
    %v720 = vadd.f32 %v719, %v699
    %v721 = vadd.f32 %v720, %v701
    %v722 = vadd.f32 %v721, %v703
    %v723 = vadd.f32 %v722, %v705
    %v724 = vadd.f32 %v723, %v707
    %v725 = vadd.f32 %v724, %v709
    %v726 = vrot.slane %v725, 4
    %v727 = vadd.f32 %v725, %v726
    %v728 = vrot.slane %v727, 2
    %v729 = vadd.f32 %v727, %v728
    %v730 = vrot.slane %v729, 1
    %v731 = vadd.f32 %v729, %v730
    %v732 = vadd.f32 %v680, %v682
    %v733 = vadd.f32 %v732, %v684
    %v734 = vadd.f32 %v733, %v686
    %v735 = vadd.f32 %v734, %v688
    %v736 = vadd.f32 %v735, %v690
    %v737 = vadd.f32 %v736, %v692
    %v738 = vadd.f32 %v737, %v694
    %v739 = vadd.f32 %v738, %v696
    %v740 = vadd.f32 %v739, %v698
    %v741 = vadd.f32 %v740, %v700
    %v742 = vadd.f32 %v741, %v702
    %v743 = vadd.f32 %v742, %v704
    %v744 = vadd.f32 %v743, %v706
    %v745 = vadd.f32 %v744, %v708
    %v746 = vadd.f32 %v745, %v710
    %v747 = vrot.slane %v746, 4
    %v748 = vadd.f32 %v746, %v747
    %v749 = vrot.slane %v748, 2
    %v750 = vadd.f32 %v748, %v749
    %v751 = vrot.slane %v750, 1
    %v752 = vadd.f32 %v750, %v751
    %v753 = vmul.f32 %v731, %v296
    %v754 = vmul.f32 %v752, %v296
    %v755 = vmul.f32 %v677, %v677
    %v756 = vmul.f32 %v678, %v678
    %v757 = vsub.f32 %v753, %v755
    %v758 = vsub.f32 %v754, %v756
    %v759 = vadd.f32 %v757, 0.8
    %v760 = vadd.f32 %v758, 0.8
    %v761 = vrsqrt.pop %v759
    %v762 = vrsqrt.pop %v760
    %v763 = vmul.f32 %v74, %v761
    %v764 = vmul.f32 %v75, %v762
    %v765 = vmul.f32 %v677, %v763
    %v766 = vmul.f32 %v678, %v764
    %v769 = vrot.slane %v765, 7
    %v770 = vrot.slane %v766, 7
    %v773 = vsub.f32 %v74, %v769
    %v774 = vsub.f32 %v75, %v770
    %v775 = vlaneseq
    %v776 = vshrl.u32 %v775, 7
    %v777 = vsub.s32 2, %v776
    %v778 = vrot.slane %v763, %v777
    %v779 = vlaneseq
    %v780 = vshrl.u32 %v779, 7
    %v781 = vsub.s32 2, %v780
    %v782 = vrot.slane %v764, %v781
    %v783 = vmul.f32 %v557, %v778
    %v784 = vmul.f32 %v559, %v782
    %v785 = vmul.f32 %v561, %v778
    %v786 = vmul.f32 %v563, %v782
    %v787 = vmul.f32 %v567, %v778
    %v788 = vmul.f32 %v569, %v782
    %v789 = vmul.f32 %v571, %v778
    %v790 = vmul.f32 %v573, %v782
    %v791 = vmul.f32 %v577, %v778
    %v792 = vmul.f32 %v579, %v782
    %v793 = vmul.f32 %v581, %v778
    %v794 = vmul.f32 %v583, %v782
    %v795 = vmul.f32 %v587, %v778
    %v796 = vmul.f32 %v589, %v782
    %v797 = vmul.f32 %v591, %v778
    %v798 = vmul.f32 %v593, %v782
    %v799 = vmul.f32 %v597, %v778
    %v800 = vmul.f32 %v599, %v782
    %v801 = vmul.f32 %v601, %v778
    %v802 = vmul.f32 %v603, %v782
    %v803 = vmul.f32 %v607, %v778
    %v804 = vmul.f32 %v609, %v782
    %v805 = vmul.f32 %v611, %v778
    %v806 = vmul.f32 %v613, %v782
    %v807 = vmul.f32 %v617, %v778
    %v808 = vmul.f32 %v619, %v782
    %v809 = vmul.f32 %v621, %v778
    %v810 = vmul.f32 %v623, %v782
    %v811 = vmul.f32 %v627, %v778
    %v812 = vmul.f32 %v629, %v782
    %v813 = vmul.f32 %v631, %v778
    %v814 = vmul.f32 %v633, %v782
    %v815 = vlaneseq
    %v816 = vshrl.u32 %v815, 7
    %v817 = vsub.s32 3, %v816
    %v818 = vrot.slane %v773, %v817
    %v819 = vlaneseq
    %v820 = vshrl.u32 %v819, 7
    %v821 = vsub.s32 3, %v820
    %v822 = vrot.slane %v774, %v821
    %v823 = vadd.f32 %v783, %v818
    %v824 = vadd.f32 %v784, %v822
    %v825 = vadd.f32 %v785, %v818
    %v826 = vadd.f32 %v786, %v822
    %v827 = vadd.f32 %v787, %v818
    %v828 = vadd.f32 %v788, %v822
    %v829 = vadd.f32 %v789, %v818
    %v830 = vadd.f32 %v790, %v822
    %v831 = vadd.f32 %v791, %v818
    %v832 = vadd.f32 %v792, %v822
    %v833 = vadd.f32 %v793, %v818
    %v834 = vadd.f32 %v794, %v822
    %v835 = vadd.f32 %v795, %v818
    %v836 = vadd.f32 %v796, %v822
    %v837 = vadd.f32 %v797, %v818
    %v838 = vadd.f32 %v798, %v822
    %v839 = vadd.f32 %v799, %v818
    %v840 = vadd.f32 %v800, %v822
    %v841 = vadd.f32 %v801, %v818
    %v842 = vadd.f32 %v802, %v822
    %v843 = vadd.f32 %v803, %v818
    %v844 = vadd.f32 %v804, %v822
    %v845 = vadd.f32 %v805, %v818
    %v846 = vadd.f32 %v806, %v822
    %v847 = vadd.f32 %v807, %v818
    %v848 = vadd.f32 %v808, %v822
    %v849 = vadd.f32 %v809, %v818
    %v850 = vadd.f32 %v810, %v822
    %v851 = vadd.f32 %v811, %v818
    %v852 = vadd.f32 %v812, %v822
    %v853 = vadd.f32 %v813, %v818
    %v854 = vadd.f32 %v814, %v822
    %v855 = vmul.f32 %v823, 0.2
    %v856 = vmul.f32 %v824, 0.2
    %v857 = vmul.f32 %v825, 0.2
    %v858 = vmul.f32 %v826, 0.2
    %v859 = vmul.f32 %v827, 0.2
    %v860 = vmul.f32 %v828, 0.2
    %v861 = vmul.f32 %v829, 0.2
    %v862 = vmul.f32 %v830, 0.2
    %v863 = vmul.f32 %v831, 0.2
    %v864 = vmul.f32 %v832, 0.2
    %v865 = vmul.f32 %v833, 0.2
    %v866 = vmul.f32 %v834, 0.2
    %v867 = vmul.f32 %v835, 0.2
    %v868 = vmul.f32 %v836, 0.2
    %v869 = vmul.f32 %v837, 0.2
    %v870 = vmul.f32 %v838, 0.2
    %v871 = vmul.f32 %v839, 0.2
    %v872 = vmul.f32 %v840, 0.2
    %v873 = vmul.f32 %v841, 0.2
    %v874 = vmul.f32 %v842, 0.2
    %v875 = vmul.f32 %v843, 0.2
    %v876 = vmul.f32 %v844, 0.2
    %v877 = vmul.f32 %v845, 0.2
    %v878 = vmul.f32 %v846, 0.2
    %v879 = vmul.f32 %v847, 0.2
    %v880 = vmul.f32 %v848, 0.2
    %v881 = vmul.f32 %v849, 0.2
    %v882 = vmul.f32 %v850, 0.2
    %v883 = vmul.f32 %v851, 0.2
    %v884 = vmul.f32 %v852, 0.2
    %v885 = vmul.f32 %v853, 0.2
    %v886 = vmul.f32 %v854, 0.2
    %v887 = vmax.f32 %v823, %v855
    %v888 = vmax.f32 %v824, %v856
    %v889 = vmax.f32 %v825, %v857
    %v890 = vmax.f32 %v826, %v858
    %v891 = vmax.f32 %v827, %v859
    %v892 = vmax.f32 %v828, %v860
    %v893 = vmax.f32 %v829, %v861
    %v894 = vmax.f32 %v830, %v862
    %v895 = vmax.f32 %v831, %v863
    %v896 = vmax.f32 %v832, %v864
    %v897 = vmax.f32 %v833, %v865
    %v898 = vmax.f32 %v834, %v866
    %v899 = vmax.f32 %v835, %v867
    %v900 = vmax.f32 %v836, %v868
    %v901 = vmax.f32 %v837, %v869
    %v902 = vmax.f32 %v838, %v870
    %v903 = vmax.f32 %v839, %v871
    %v904 = vmax.f32 %v840, %v872
    %v905 = vmax.f32 %v841, %v873
    %v906 = vmax.f32 %v842, %v874
    %v907 = vmax.f32 %v843, %v875
    %v908 = vmax.f32 %v844, %v876
    %v909 = vmax.f32 %v845, %v877
    %v910 = vmax.f32 %v846, %v878
    %v911 = vmax.f32 %v847, %v879
    %v912 = vmax.f32 %v848, %v880
    %v913 = vmax.f32 %v849, %v881
    %v914 = vmax.f32 %v850, %v882
    %v915 = vmax.f32 %v851, %v883
    %v916 = vmax.f32 %v852, %v884
    %v917 = vmax.f32 %v853, %v885
    %v918 = vmax.f32 %v854, %v886
    %v919 = vpack.c.bf16 %v889, %v887
    %v920 = vpack.c.bf16 %v890, %v888
    %v921 = vpack.c.bf16 %v893, %v891
    %v922 = vpack.c.bf16 %v894, %v892
    %v923 = vpack.c.bf16 %v897, %v895
    %v924 = vpack.c.bf16 %v898, %v896
    %v925 = vpack.c.bf16 %v901, %v899
    %v926 = vpack.c.bf16 %v902, %v900
    %v927 = vpack.c.bf16 %v905, %v903
    %v928 = vpack.c.bf16 %v906, %v904
    %v929 = vpack.c.bf16 %v909, %v907
    %v930 = vpack.c.bf16 %v910, %v908
    %v931 = vpack.c.bf16 %v913, %v911
    %v932 = vpack.c.bf16 %v914, %v912
    %v933 = vpack.c.bf16 %v917, %v915
    %v934 = vpack.c.bf16 %v918, %v916
    %v935 = vld [vmem:[#allocation5] sm:$0xff]
    %v936 = vld [vmem:[#allocation5 + $0x8] sm:$0xff]
    %v937 = vld [vmem:[#allocation5 + $0x10] sm:$0xff]
    %v938 = vld [vmem:[#allocation5 + $0x18] sm:$0xff]
    %v939 = vld [vmem:[#allocation5 + $0x20] sm:$0xff]
    %v940 = vld [vmem:[#allocation5 + $0x28] sm:$0xff]
    %v941 = vld [vmem:[#allocation5 + $0x30] sm:$0xff]
    %v942 = vld [vmem:[#allocation5 + $0x38] sm:$0xff]
    %v943 = vld [vmem:[#allocation5 + $0x40] sm:$0xff]
    %v944 = vld [vmem:[#allocation5 + $0x48] sm:$0xff]
    %v945 = vld [vmem:[#allocation5 + $0x50] sm:$0xff]
    %v946 = vld [vmem:[#allocation5 + $0x58] sm:$0xff]
    %v947 = vld [vmem:[#allocation5 + $0x60] sm:$0xff]
    %v948 = vld [vmem:[#allocation5 + $0x68] sm:$0xff]
    %v949 = vld [vmem:[#allocation5 + $0x70] sm:$0xff]
    %v950 = vld [vmem:[#allocation5 + $0x78] sm:$0xff]
    %v951 = vld [vmem:[#allocation5 + $0x80] sm:$0xff]
    %v952 = vld [vmem:[#allocation5 + $0x88] sm:$0xff]
    %v953 = vld [vmem:[#allocation5 + $0x90] sm:$0xff]
    %v954 = vld [vmem:[#allocation5 + $0x98] sm:$0xff]
    %v955 = vld [vmem:[#allocation5 + $0xa0] sm:$0xff]
    %v956 = vld [vmem:[#allocation5 + $0xa8] sm:$0xff]
    %v957 = vld [vmem:[#allocation5 + $0xb0] sm:$0xff]
    %v958 = vld [vmem:[#allocation5 + $0xb8] sm:$0xff]
    %v959 = vld [vmem:[#allocation5 + $0xc0] sm:$0xff]
    %v960 = vld [vmem:[#allocation5 + $0xc8] sm:$0xff]
    %v961 = vld [vmem:[#allocation5 + $0xd0] sm:$0xff]
    %v962 = vld [vmem:[#allocation5 + $0xd8] sm:$0xff]
    %v963 = vld [vmem:[#allocation5 + $0xe0] sm:$0xff]
    %v964 = vld [vmem:[#allocation5 + $0xe8] sm:$0xff]
    %v965 = vld [vmem:[#allocation5 + $0xf0] sm:$0xff]
    %v966 = vld [vmem:[#allocation5 + $0xf8] sm:$0xff]
    %v967 = vld [vmem:[#allocation5 + $0x100] sm:$0xff]
    %v968 = vld [vmem:[#allocation5 + $0x108] sm:$0xff]
    %v969 = vld [vmem:[#allocation5 + $0x110] sm:$0xff]
    %v970 = vld [vmem:[#allocation5 + $0x118] sm:$0xff]
    %v971 = vld [vmem:[#allocation5 + $0x120] sm:$0xff]
    %v972 = vld [vmem:[#allocation5 + $0x128] sm:$0xff]
    %v973 = vld [vmem:[#allocation5 + $0x130] sm:$0xff]
    %v974 = vld [vmem:[#allocation5 + $0x138] sm:$0xff]
    %v975 = vld [vmem:[#allocation5 + $0x140] sm:$0xff]
    %v976 = vld [vmem:[#allocation5 + $0x148] sm:$0xff]
    %v977 = vld [vmem:[#allocation5 + $0x150] sm:$0xff]
    %v978 = vld [vmem:[#allocation5 + $0x158] sm:$0xff]
    %v979 = vld [vmem:[#allocation5 + $0x160] sm:$0xff]
    %v980 = vld [vmem:[#allocation5 + $0x168] sm:$0xff]
    %v981 = vld [vmem:[#allocation5 + $0x170] sm:$0xff]
    %v982 = vld [vmem:[#allocation5 + $0x178] sm:$0xff]
    %v983 = vld [vmem:[#allocation5 + $0x180] sm:$0xff]
    %v984 = vld [vmem:[#allocation5 + $0x188] sm:$0xff]
    %v985 = vld [vmem:[#allocation5 + $0x190] sm:$0xff]
    %v986 = vld [vmem:[#allocation5 + $0x198] sm:$0xff]
    %v987 = vld [vmem:[#allocation5 + $0x1a0] sm:$0xff]
    %v988 = vld [vmem:[#allocation5 + $0x1a8] sm:$0xff]
    %v989 = vld [vmem:[#allocation5 + $0x1b0] sm:$0xff]
    %v990 = vld [vmem:[#allocation5 + $0x1b8] sm:$0xff]
    %v991 = vld [vmem:[#allocation5 + $0x1c0] sm:$0xff]
    %v992 = vld [vmem:[#allocation5 + $0x1c8] sm:$0xff]
    %v993 = vld [vmem:[#allocation5 + $0x1d0] sm:$0xff]
    %v994 = vld [vmem:[#allocation5 + $0x1d8] sm:$0xff]
    %v995 = vld [vmem:[#allocation5 + $0x1e0] sm:$0xff]
    %v996 = vld [vmem:[#allocation5 + $0x1e8] sm:$0xff]
    %v997 = vld [vmem:[#allocation5 + $0x1f0] sm:$0xff]
    %v998 = vld [vmem:[#allocation5 + $0x1f8] sm:$0xff]
    %v1063 = vunpack.c.l.b16 %v935
    %v1064 = vunpack.c.h.b16 %v935
    %v1065 = vunpack.c.l.b16 %v936
    %v1066 = vunpack.c.h.b16 %v936
    %v1067 = vunpack.c.l.b16 %v937
    %v1068 = vunpack.c.h.b16 %v937
    %v1069 = vunpack.c.l.b16 %v938
    %v1070 = vunpack.c.h.b16 %v938
    %v1071 = vunpack.c.l.b16 %v939
    %v1072 = vunpack.c.h.b16 %v939
    %v1073 = vunpack.c.l.b16 %v940
    %v1074 = vunpack.c.h.b16 %v940
    %v1075 = vunpack.c.l.b16 %v941
    %v1076 = vunpack.c.h.b16 %v941
    %v1077 = vunpack.c.l.b16 %v942
    %v1078 = vunpack.c.h.b16 %v942
    %v1079 = vunpack.c.l.b16 %v943
    %v1080 = vunpack.c.h.b16 %v943
    %v1081 = vunpack.c.l.b16 %v944
    %v1082 = vunpack.c.h.b16 %v944
    %v1083 = vunpack.c.l.b16 %v945
    %v1084 = vunpack.c.h.b16 %v945
    %v1085 = vunpack.c.l.b16 %v946
    %v1086 = vunpack.c.h.b16 %v946
    %v1087 = vunpack.c.l.b16 %v947
    %v1088 = vunpack.c.h.b16 %v947
    %v1089 = vunpack.c.l.b16 %v948
    %v1090 = vunpack.c.h.b16 %v948
    %v1091 = vunpack.c.l.b16 %v949
    %v1092 = vunpack.c.h.b16 %v949
    %v1093 = vunpack.c.l.b16 %v950
    %v1094 = vunpack.c.h.b16 %v950
    %v1095 = vunpack.c.l.b16 %v951
    %v1096 = vunpack.c.h.b16 %v951
    %v1097 = vunpack.c.l.b16 %v952
    %v1098 = vunpack.c.h.b16 %v952
    %v1099 = vunpack.c.l.b16 %v953
    %v1100 = vunpack.c.h.b16 %v953
    %v1101 = vunpack.c.l.b16 %v954
    %v1102 = vunpack.c.h.b16 %v954
    %v1103 = vunpack.c.l.b16 %v955
    %v1104 = vunpack.c.h.b16 %v955
    %v1105 = vunpack.c.l.b16 %v956
    %v1106 = vunpack.c.h.b16 %v956
    %v1107 = vunpack.c.l.b16 %v957
    %v1108 = vunpack.c.h.b16 %v957
    %v1109 = vunpack.c.l.b16 %v958
    %v1110 = vunpack.c.h.b16 %v958
    %v1111 = vunpack.c.l.b16 %v959
    %v1112 = vunpack.c.h.b16 %v959
    %v1113 = vunpack.c.l.b16 %v960
    %v1114 = vunpack.c.h.b16 %v960
    %v1115 = vunpack.c.l.b16 %v961
    %v1116 = vunpack.c.h.b16 %v961
    %v1117 = vunpack.c.l.b16 %v962
    %v1118 = vunpack.c.h.b16 %v962
    %v1119 = vunpack.c.l.b16 %v963
    %v1120 = vunpack.c.h.b16 %v963
    %v1121 = vunpack.c.l.b16 %v964
    %v1122 = vunpack.c.h.b16 %v964
    %v1123 = vunpack.c.l.b16 %v965
    %v1124 = vunpack.c.h.b16 %v965
    %v1125 = vunpack.c.l.b16 %v966
    %v1126 = vunpack.c.h.b16 %v966
    %v1127 = vunpack.c.l.b16 %v967
    %v1128 = vunpack.c.h.b16 %v967
    %v1129 = vunpack.c.l.b16 %v968
    %v1130 = vunpack.c.h.b16 %v968
    %v1131 = vunpack.c.l.b16 %v969
    %v1132 = vunpack.c.h.b16 %v969
    %v1133 = vunpack.c.l.b16 %v970
    %v1134 = vunpack.c.h.b16 %v970
    %v1135 = vunpack.c.l.b16 %v971
    %v1136 = vunpack.c.h.b16 %v971
    %v1137 = vunpack.c.l.b16 %v972
    %v1138 = vunpack.c.h.b16 %v972
    %v1139 = vunpack.c.l.b16 %v973
    %v1140 = vunpack.c.h.b16 %v973
    %v1141 = vunpack.c.l.b16 %v974
    %v1142 = vunpack.c.h.b16 %v974
    %v1143 = vunpack.c.l.b16 %v975
    %v1144 = vunpack.c.h.b16 %v975
    %v1145 = vunpack.c.l.b16 %v976
    %v1146 = vunpack.c.h.b16 %v976
    %v1147 = vunpack.c.l.b16 %v977
    %v1148 = vunpack.c.h.b16 %v977
    %v1149 = vunpack.c.l.b16 %v978
    %v1150 = vunpack.c.h.b16 %v978
    %v1151 = vunpack.c.l.b16 %v979
    %v1152 = vunpack.c.h.b16 %v979
    %v1153 = vunpack.c.l.b16 %v980
    %v1154 = vunpack.c.h.b16 %v980
    %v1155 = vunpack.c.l.b16 %v981
    %v1156 = vunpack.c.h.b16 %v981
    %v1157 = vunpack.c.l.b16 %v982
    %v1158 = vunpack.c.h.b16 %v982
    %v1159 = vunpack.c.l.b16 %v983
    %v1160 = vunpack.c.h.b16 %v983
    %v1161 = vunpack.c.l.b16 %v984
    %v1162 = vunpack.c.h.b16 %v984
    %v1163 = vunpack.c.l.b16 %v985
    %v1164 = vunpack.c.h.b16 %v985
    %v1165 = vunpack.c.l.b16 %v986
    %v1166 = vunpack.c.h.b16 %v986
    %v1167 = vunpack.c.l.b16 %v987
    %v1168 = vunpack.c.h.b16 %v987
    %v1169 = vunpack.c.l.b16 %v988
    %v1170 = vunpack.c.h.b16 %v988
    %v1171 = vunpack.c.l.b16 %v989
    %v1172 = vunpack.c.h.b16 %v989
    %v1173 = vunpack.c.l.b16 %v990
    %v1174 = vunpack.c.h.b16 %v990
    %v1175 = vunpack.c.l.b16 %v991
    %v1176 = vunpack.c.h.b16 %v991
    %v1177 = vunpack.c.l.b16 %v992
    %v1178 = vunpack.c.h.b16 %v992
    %v1179 = vunpack.c.l.b16 %v993
    %v1180 = vunpack.c.h.b16 %v993
    %v1181 = vunpack.c.l.b16 %v994
    %v1182 = vunpack.c.h.b16 %v994
    %v1183 = vunpack.c.l.b16 %v995
    %v1184 = vunpack.c.h.b16 %v995
    %v1185 = vunpack.c.l.b16 %v996
    %v1186 = vunpack.c.h.b16 %v996
    %v1187 = vunpack.c.l.b16 %v997
    %v1188 = vunpack.c.h.b16 %v997
    %v1189 = vunpack.c.l.b16 %v998
    %v1190 = vunpack.c.h.b16 %v998
    %v1191 = vpack.c.b16 %v1067, %v1063
    %v1192 = vpack.c.b16 %v1068, %v1064
    %v1193 = vpack.c.b16 %v1069, %v1065
    %v1194 = vpack.c.b16 %v1070, %v1066
    %v1195 = vpack.c.b16 %v1075, %v1071
    %v1196 = vpack.c.b16 %v1076, %v1072
    %v1197 = vpack.c.b16 %v1077, %v1073
    %v1198 = vpack.c.b16 %v1078, %v1074
    %v1199 = vpack.c.b16 %v1083, %v1079
    %v1200 = vpack.c.b16 %v1084, %v1080
    %v1201 = vpack.c.b16 %v1085, %v1081
    %v1202 = vpack.c.b16 %v1086, %v1082
    %v1203 = vpack.c.b16 %v1091, %v1087
    %v1204 = vpack.c.b16 %v1092, %v1088
    %v1205 = vpack.c.b16 %v1093, %v1089
    %v1206 = vpack.c.b16 %v1094, %v1090
    %v1207 = vpack.c.b16 %v1099, %v1095
    %v1208 = vpack.c.b16 %v1100, %v1096
    %v1209 = vpack.c.b16 %v1101, %v1097
    %v1210 = vpack.c.b16 %v1102, %v1098
    %v1211 = vpack.c.b16 %v1107, %v1103
    %v1212 = vpack.c.b16 %v1108, %v1104
    %v1213 = vpack.c.b16 %v1109, %v1105
    %v1214 = vpack.c.b16 %v1110, %v1106
    %v1215 = vpack.c.b16 %v1115, %v1111
    %v1216 = vpack.c.b16 %v1116, %v1112
    %v1217 = vpack.c.b16 %v1117, %v1113
    %v1218 = vpack.c.b16 %v1118, %v1114
    %v1219 = vpack.c.b16 %v1123, %v1119
    %v1220 = vpack.c.b16 %v1124, %v1120
    %v1221 = vpack.c.b16 %v1125, %v1121
    %v1222 = vpack.c.b16 %v1126, %v1122
    %v1223 = vpack.c.b16 %v1131, %v1127
    %v1224 = vpack.c.b16 %v1132, %v1128
    %v1225 = vpack.c.b16 %v1133, %v1129
    %v1226 = vpack.c.b16 %v1134, %v1130
    %v1227 = vpack.c.b16 %v1139, %v1135
    %v1228 = vpack.c.b16 %v1140, %v1136
    %v1229 = vpack.c.b16 %v1141, %v1137
    %v1230 = vpack.c.b16 %v1142, %v1138
    %v1231 = vpack.c.b16 %v1147, %v1143
    %v1232 = vpack.c.b16 %v1148, %v1144
    %v1233 = vpack.c.b16 %v1149, %v1145
    %v1234 = vpack.c.b16 %v1150, %v1146
    %v1235 = vpack.c.b16 %v1155, %v1151
    %v1236 = vpack.c.b16 %v1156, %v1152
    %v1237 = vpack.c.b16 %v1157, %v1153
    %v1238 = vpack.c.b16 %v1158, %v1154
    %v1239 = vpack.c.b16 %v1163, %v1159
    %v1240 = vpack.c.b16 %v1164, %v1160
    %v1241 = vpack.c.b16 %v1165, %v1161
    %v1242 = vpack.c.b16 %v1166, %v1162
    %v1243 = vpack.c.b16 %v1171, %v1167
    %v1244 = vpack.c.b16 %v1172, %v1168
    %v1245 = vpack.c.b16 %v1173, %v1169
    %v1246 = vpack.c.b16 %v1174, %v1170
    %v1247 = vpack.c.b16 %v1179, %v1175
    %v1248 = vpack.c.b16 %v1180, %v1176
    %v1249 = vpack.c.b16 %v1181, %v1177
    %v1250 = vpack.c.b16 %v1182, %v1178
    %v1251 = vpack.c.b16 %v1187, %v1183
    %v1252 = vpack.c.b16 %v1188, %v1184
    %v1253 = vpack.c.b16 %v1189, %v1185
    %v1254 = vpack.c.b16 %v1190, %v1186
    %1319 = vmatprep.subr.bf16.mxu0 %v1192
    %1320 = vmatpush1.bf16.msra.mxu0 %v1191
    %1321 = vmatprep.subr.bf16.mxu0 %v1196
    %1322 = vmatpush1.bf16.msra.mxu0 %v1195
    %1323 = vmatprep.subr.bf16.mxu0 %v1200
    %1324 = vmatpush1.bf16.msra.mxu0 %v1199
    %1325 = vmatprep.subr.bf16.mxu0 %v1204
    %1326 = vmatpush1.bf16.msra.mxu0 %v1203
    %1327 = vmatprep.subr.bf16.mxu0 %v1208
    %1328 = vmatpush1.bf16.msra.mxu0 %v1207
    %1329 = vmatprep.subr.bf16.mxu0 %v1212
    %1330 = vmatpush1.bf16.msra.mxu0 %v1211
    %1331 = vmatprep.subr.bf16.mxu0 %v1216
    %1332 = vmatpush1.bf16.msra.mxu0 %v1215
    %1333 = vmatprep.subr.bf16.mxu0 %v1220
    %1334 = vmatpush1.bf16.msra.mxu0 %v1219
    %1335 = vmatprep.subr.bf16.mxu0 %v1224
    %1336 = vmatpush1.bf16.msra.mxu0 %v1223
    %1337 = vmatprep.subr.bf16.mxu0 %v1228
    %1338 = vmatpush1.bf16.msra.mxu0 %v1227
    %1339 = vmatprep.subr.bf16.mxu0 %v1232
    %1340 = vmatpush1.bf16.msra.mxu0 %v1231
    %1341 = vmatprep.subr.bf16.mxu0 %v1236
    %1342 = vmatpush1.bf16.msra.mxu0 %v1235
    %1343 = vmatprep.subr.bf16.mxu0 %v1240
    %1344 = vmatpush1.bf16.msra.mxu0 %v1239
    %1345 = vmatprep.subr.bf16.mxu0 %v1244
    %1346 = vmatpush1.bf16.msra.mxu0 %v1243
    %1347 = vmatprep.subr.bf16.mxu0 %v1248
    %1348 = vmatpush1.bf16.msra.mxu0 %v1247
    %1349 = vmatprep.subr.bf16.mxu0 %v1252
    %1350 = vmatpush1.bf16.msra.mxu0 %v1251
    %1351 = vmatprep.mubr.bf16.mxu0 %v920
    %1352 = vmatmul.mubr.bf16.gmra.mrb[0].mxu0 %v919
    %v1353 = vpop.f32.mrb[0].mxu0
    %v1354 = vadd.f32 0.0, %v1353
    %v1355 = vpop.f32.mrb[0].mxu0
    %v1356 = vadd.f32 0.0, %v1355
    %v1357 = vpop.f32.mrb[0].mxu0
    %v1358 = vadd.f32 0.0, %v1357
    %v1359 = vpop.f32.mrb[0].mxu0
    %v1360 = vadd.f32 0.0, %v1359
    %1361 = vmatprep.mubr.bf16.mxu0 %v922
    %1362 = vmatmul.mubr.bf16.gmra.mrb[0].mxu0 %v921
    %v1363 = vpop.f32.mrb[0].mxu0
    %v1364 = vadd.f32 0.0, %v1363
    %v1365 = vpop.f32.mrb[0].mxu0
    %v1366 = vadd.f32 0.0, %v1365
    %v1367 = vpop.f32.mrb[0].mxu0
    %v1368 = vadd.f32 0.0, %v1367
    %v1369 = vpop.f32.mrb[0].mxu0
    %v1370 = vadd.f32 0.0, %v1369
    %1371 = vmatprep.mubr.bf16.mxu0 %v924
    %1372 = vmatmul.mubr.bf16.gmra.mrb[0].mxu0 %v923
    %v1373 = vpop.f32.mrb[0].mxu0
    %v1374 = vadd.f32 0.0, %v1373
    %v1375 = vpop.f32.mrb[0].mxu0
    %v1376 = vadd.f32 0.0, %v1375
    %v1377 = vpop.f32.mrb[0].mxu0
    %v1378 = vadd.f32 0.0, %v1377
    %v1379 = vpop.f32.mrb[0].mxu0
    %v1380 = vadd.f32 0.0, %v1379
    %1381 = vmatprep.mubr.bf16.mxu0 %v926
    %1382 = vmatmul.mubr.bf16.gmra.mrb[0].mxu0 %v925
    %v1383 = vpop.f32.mrb[0].mxu0
    %v1384 = vadd.f32 0.0, %v1383
    %v1385 = vpop.f32.mrb[0].mxu0
    %v1386 = vadd.f32 0.0, %v1385
    %v1387 = vpop.f32.mrb[0].mxu0
    %v1388 = vadd.f32 0.0, %v1387
    %v1389 = vpop.f32.mrb[0].mxu0
    %v1390 = vadd.f32 0.0, %v1389
    %1391 = vmatprep.mubr.bf16.mxu0 %v928
    %1392 = vmatmul.mubr.bf16.gmra.mrb[0].mxu0 %v927
    %v1393 = vpop.f32.mrb[0].mxu0
    %v1394 = vadd.f32 0.0, %v1393
    %v1395 = vpop.f32.mrb[0].mxu0
    %v1396 = vadd.f32 0.0, %v1395
    %v1397 = vpop.f32.mrb[0].mxu0
    %v1398 = vadd.f32 0.0, %v1397
    %v1399 = vpop.f32.mrb[0].mxu0
    %v1400 = vadd.f32 0.0, %v1399
    %1401 = vmatprep.mubr.bf16.mxu0 %v930
    %1402 = vmatmul.mubr.bf16.gmra.mrb[0].mxu0 %v929
    %v1403 = vpop.f32.mrb[0].mxu0
    %v1404 = vadd.f32 0.0, %v1403
    %v1405 = vpop.f32.mrb[0].mxu0
    %v1406 = vadd.f32 0.0, %v1405
    %v1407 = vpop.f32.mrb[0].mxu0
    %v1408 = vadd.f32 0.0, %v1407
    %v1409 = vpop.f32.mrb[0].mxu0
    %v1410 = vadd.f32 0.0, %v1409
    %1411 = vmatprep.mubr.bf16.mxu0 %v932
    %1412 = vmatmul.mubr.bf16.gmra.mrb[0].mxu0 %v931
    %v1413 = vpop.f32.mrb[0].mxu0
    %v1414 = vadd.f32 0.0, %v1413
    %v1415 = vpop.f32.mrb[0].mxu0
    %v1416 = vadd.f32 0.0, %v1415
    %v1417 = vpop.f32.mrb[0].mxu0
    %v1418 = vadd.f32 0.0, %v1417
    %v1419 = vpop.f32.mrb[0].mxu0
    %v1420 = vadd.f32 0.0, %v1419
    %1421 = vmatprep.mubr.bf16.mxu0 %v934
    %1422 = vmatmul.mubr.bf16.gmra.mrb[0].mxu0 %v933
    %v1423 = vpop.f32.mrb[0].mxu0
    %v1424 = vadd.f32 0.0, %v1423
    %v1425 = vpop.f32.mrb[0].mxu0
    %v1426 = vadd.f32 0.0, %v1425
    %v1427 = vpop.f32.mrb[0].mxu0
    %v1428 = vadd.f32 0.0, %v1427
    %v1429 = vpop.f32.mrb[0].mxu0
    %v1430 = vadd.f32 0.0, %v1429
    %1431 = vdwg.mxu0
    %1432 = vmatprep.subr.bf16.mxu0 %v1194
    %1433 = vmatpush1.bf16.msra.mxu0 %v1193
    %1434 = vmatprep.subr.bf16.mxu0 %v1198
    %1435 = vmatpush1.bf16.msra.mxu0 %v1197
    %1436 = vmatprep.subr.bf16.mxu0 %v1202
    %1437 = vmatpush1.bf16.msra.mxu0 %v1201
    %1438 = vmatprep.subr.bf16.mxu0 %v1206
    %1439 = vmatpush1.bf16.msra.mxu0 %v1205
    %1440 = vmatprep.subr.bf16.mxu0 %v1210
    %1441 = vmatpush1.bf16.msra.mxu0 %v1209
    %1442 = vmatprep.subr.bf16.mxu0 %v1214
    %1443 = vmatpush1.bf16.msra.mxu0 %v1213
    %1444 = vmatprep.subr.bf16.mxu0 %v1218
    %1445 = vmatpush1.bf16.msra.mxu0 %v1217
    %1446 = vmatprep.subr.bf16.mxu0 %v1222
    %1447 = vmatpush1.bf16.msra.mxu0 %v1221
    %1448 = vmatprep.subr.bf16.mxu0 %v1226
    %1449 = vmatpush1.bf16.msra.mxu0 %v1225
    %1450 = vmatprep.subr.bf16.mxu0 %v1230
    %1451 = vmatpush1.bf16.msra.mxu0 %v1229
    %1452 = vmatprep.subr.bf16.mxu0 %v1234
    %1453 = vmatpush1.bf16.msra.mxu0 %v1233
    %1454 = vmatprep.subr.bf16.mxu0 %v1238
    %1455 = vmatpush1.bf16.msra.mxu0 %v1237
    %1456 = vmatprep.subr.bf16.mxu0 %v1242
    %1457 = vmatpush1.bf16.msra.mxu0 %v1241
    %1458 = vmatprep.subr.bf16.mxu0 %v1246
    %1459 = vmatpush1.bf16.msra.mxu0 %v1245
    %1460 = vmatprep.subr.bf16.mxu0 %v1250
    %1461 = vmatpush1.bf16.msra.mxu0 %v1249
    %1462 = vmatprep.subr.bf16.mxu0 %v1254
    %1463 = vmatpush1.bf16.msra.mxu0 %v1253
    %1464 = vmatprep.mubr.bf16.mxu0 %v920
    %1465 = vmatmul.mubr.bf16.gmra.mrb[0].mxu0 %v919
    %v1466 = vpop.f32.mrb[0].mxu0
    %v1467 = vadd.f32 0.0, %v1466
    %v1468 = vpop.f32.mrb[0].mxu0
    %v1469 = vadd.f32 0.0, %v1468
    %v1470 = vpop.f32.mrb[0].mxu0
    %v1471 = vadd.f32 0.0, %v1470
    %v1472 = vpop.f32.mrb[0].mxu0
    %v1473 = vadd.f32 0.0, %v1472
    %1474 = vmatprep.mubr.bf16.mxu0 %v922
    %1475 = vmatmul.mubr.bf16.gmra.mrb[0].mxu0 %v921
    %v1476 = vpop.f32.mrb[0].mxu0
    %v1477 = vadd.f32 0.0, %v1476
    %v1478 = vpop.f32.mrb[0].mxu0
    %v1479 = vadd.f32 0.0, %v1478
    %v1480 = vpop.f32.mrb[0].mxu0
    %v1481 = vadd.f32 0.0, %v1480
    %v1482 = vpop.f32.mrb[0].mxu0
    %v1483 = vadd.f32 0.0, %v1482
    %1484 = vmatprep.mubr.bf16.mxu0 %v924
    %1485 = vmatmul.mubr.bf16.gmra.mrb[0].mxu0 %v923
    %v1486 = vpop.f32.mrb[0].mxu0
    %v1487 = vadd.f32 0.0, %v1486
    %v1488 = vpop.f32.mrb[0].mxu0
    %v1489 = vadd.f32 0.0, %v1488
    %v1490 = vpop.f32.mrb[0].mxu0
    %v1491 = vadd.f32 0.0, %v1490
    %v1492 = vpop.f32.mrb[0].mxu0
    %v1493 = vadd.f32 0.0, %v1492
    %1494 = vmatprep.mubr.bf16.mxu0 %v926
    %1495 = vmatmul.mubr.bf16.gmra.mrb[0].mxu0 %v925
    %v1496 = vpop.f32.mrb[0].mxu0
    %v1497 = vadd.f32 0.0, %v1496
    %v1498 = vpop.f32.mrb[0].mxu0
    %v1499 = vadd.f32 0.0, %v1498
    %v1500 = vpop.f32.mrb[0].mxu0
    %v1501 = vadd.f32 0.0, %v1500
    %v1502 = vpop.f32.mrb[0].mxu0
    %v1503 = vadd.f32 0.0, %v1502
    %1504 = vmatprep.mubr.bf16.mxu0 %v928
    %1505 = vmatmul.mubr.bf16.gmra.mrb[0].mxu0 %v927
    %v1506 = vpop.f32.mrb[0].mxu0
    %v1507 = vadd.f32 0.0, %v1506
    %v1508 = vpop.f32.mrb[0].mxu0
    %v1509 = vadd.f32 0.0, %v1508
    %v1510 = vpop.f32.mrb[0].mxu0
    %v1511 = vadd.f32 0.0, %v1510
    %v1512 = vpop.f32.mrb[0].mxu0
    %v1513 = vadd.f32 0.0, %v1512
    %1514 = vmatprep.mubr.bf16.mxu0 %v930
    %1515 = vmatmul.mubr.bf16.gmra.mrb[0].mxu0 %v929
    %v1516 = vpop.f32.mrb[0].mxu0
    %v1517 = vadd.f32 0.0, %v1516
    %v1518 = vpop.f32.mrb[0].mxu0
    %v1519 = vadd.f32 0.0, %v1518
    %v1520 = vpop.f32.mrb[0].mxu0
    %v1521 = vadd.f32 0.0, %v1520
    %v1522 = vpop.f32.mrb[0].mxu0
    %v1523 = vadd.f32 0.0, %v1522
    %1524 = vmatprep.mubr.bf16.mxu0 %v932
    %1525 = vmatmul.mubr.bf16.gmra.mrb[0].mxu0 %v931
    %v1526 = vpop.f32.mrb[0].mxu0
    %v1527 = vadd.f32 0.0, %v1526
    %v1528 = vpop.f32.mrb[0].mxu0
    %v1529 = vadd.f32 0.0, %v1528
    %v1530 = vpop.f32.mrb[0].mxu0
    %v1531 = vadd.f32 0.0, %v1530
    %v1532 = vpop.f32.mrb[0].mxu0
    %v1533 = vadd.f32 0.0, %v1532
    %1534 = vmatprep.mubr.bf16.mxu0 %v934
    %1535 = vmatmul.mubr.bf16.gmra.mrb[0].mxu0 %v933
    %v1536 = vpop.f32.mrb[0].mxu0
    %v1537 = vadd.f32 0.0, %v1536
    %v1538 = vpop.f32.mrb[0].mxu0
    %v1539 = vadd.f32 0.0, %v1538
    %v1540 = vpop.f32.mrb[0].mxu0
    %v1541 = vadd.f32 0.0, %v1540
    %v1542 = vpop.f32.mrb[0].mxu0
    %v1543 = vadd.f32 0.0, %v1542
    %1544 = vdwg.mxu0
    %v1545 = vadd.f32 %v1354, %v1358
    %v1546 = vadd.f32 %v1545, %v1364
    %v1547 = vadd.f32 %v1546, %v1368
    %v1548 = vadd.f32 %v1547, %v1374
    %v1549 = vadd.f32 %v1548, %v1378
    %v1550 = vadd.f32 %v1549, %v1384
    %v1551 = vadd.f32 %v1550, %v1388
    %v1552 = vadd.f32 %v1551, %v1394
    %v1553 = vadd.f32 %v1552, %v1398
    %v1554 = vadd.f32 %v1553, %v1404
    %v1555 = vadd.f32 %v1554, %v1408
    %v1556 = vadd.f32 %v1555, %v1414
    %v1557 = vadd.f32 %v1556, %v1418
    %v1558 = vadd.f32 %v1557, %v1424
    %v1559 = vadd.f32 %v1558, %v1428
    %v1560 = vrot.slane %v1559, 4
    %v1561 = vadd.f32 %v1559, %v1560
    %v1562 = vrot.slane %v1561, 2
    %v1563 = vadd.f32 %v1561, %v1562
    %v1564 = vrot.slane %v1563, 1
    %v1565 = vadd.f32 %v1563, %v1564
    %v1566 = vadd.f32 %v1356, %v1360
    %v1567 = vadd.f32 %v1566, %v1366
    %v1568 = vadd.f32 %v1567, %v1370
    %v1569 = vadd.f32 %v1568, %v1376
    %v1570 = vadd.f32 %v1569, %v1380
    %v1571 = vadd.f32 %v1570, %v1386
    %v1572 = vadd.f32 %v1571, %v1390
    %v1573 = vadd.f32 %v1572, %v1396
    %v1574 = vadd.f32 %v1573, %v1400
    %v1575 = vadd.f32 %v1574, %v1406
    %v1576 = vadd.f32 %v1575, %v1410
    %v1577 = vadd.f32 %v1576, %v1416
    %v1578 = vadd.f32 %v1577, %v1420
    %v1579 = vadd.f32 %v1578, %v1426
    %v1580 = vadd.f32 %v1579, %v1430
    %v1581 = vrot.slane %v1580, 4
    %v1582 = vadd.f32 %v1580, %v1581
    %v1583 = vrot.slane %v1582, 2
    %v1584 = vadd.f32 %v1582, %v1583
    %v1585 = vrot.slane %v1584, 1
    %v1586 = vadd.f32 %v1584, %v1585
    %v1587 = vadd.f32 %v1467, %v1471
    %v1588 = vadd.f32 %v1587, %v1477
    %v1589 = vadd.f32 %v1588, %v1481
    %v1590 = vadd.f32 %v1589, %v1487
    %v1591 = vadd.f32 %v1590, %v1491
    %v1592 = vadd.f32 %v1591, %v1497
    %v1593 = vadd.f32 %v1592, %v1501
    %v1594 = vadd.f32 %v1593, %v1507
    %v1595 = vadd.f32 %v1594, %v1511
    %v1596 = vadd.f32 %v1595, %v1517
    %v1597 = vadd.f32 %v1596, %v1521
    %v1598 = vadd.f32 %v1597, %v1527
    %v1599 = vadd.f32 %v1598, %v1531
    %v1600 = vadd.f32 %v1599, %v1537
    %v1601 = vadd.f32 %v1600, %v1541
    %v1602 = vrot.slane %v1601, 4
    %v1603 = vadd.f32 %v1601, %v1602
    %v1604 = vrot.slane %v1603, 2
    %v1605 = vadd.f32 %v1603, %v1604
    %v1606 = vrot.slane %v1605, 1
    %v1607 = vadd.f32 %v1605, %v1606
    %v1608 = vadd.f32 %v1469, %v1473
    %v1609 = vadd.f32 %v1608, %v1479
    %v1610 = vadd.f32 %v1609, %v1483
    %v1611 = vadd.f32 %v1610, %v1489
    %v1612 = vadd.f32 %v1611, %v1493
    %v1613 = vadd.f32 %v1612, %v1499
    %v1614 = vadd.f32 %v1613, %v1503
    %v1615 = vadd.f32 %v1614, %v1509
    %v1616 = vadd.f32 %v1615, %v1513
    %v1617 = vadd.f32 %v1616, %v1519
    %v1618 = vadd.f32 %v1617, %v1523
    %v1619 = vadd.f32 %v1618, %v1529
    %v1620 = vadd.f32 %v1619, %v1533
    %v1621 = vadd.f32 %v1620, %v1539
    %v1622 = vadd.f32 %v1621, %v1543
    %v1623 = vrot.slane %v1622, 4
    %v1624 = vadd.f32 %v1622, %v1623
    %v1625 = vrot.slane %v1624, 2
    %v1626 = vadd.f32 %v1624, %v1625
    %v1627 = vrot.slane %v1626, 1
    %v1628 = vadd.f32 %v1626, %v1627
    %v1629 = vmul.f32 %v1565, %v296
    %v1630 = vmul.f32 %v1586, %v296
    %v1631 = vmul.f32 %v1607, %v296
    %v1632 = vmul.f32 %v1628, %v296
    %v1633 = vmul.f32 %v1354, %v1354
    %v1634 = vmul.f32 %v1356, %v1356
    %v1635 = vmul.f32 %v1467, %v1467
    %v1636 = vmul.f32 %v1469, %v1469
    %v1637 = vmul.f32 %v1358, %v1358
    %v1638 = vmul.f32 %v1360, %v1360
    %v1639 = vmul.f32 %v1471, %v1471
    %v1640 = vmul.f32 %v1473, %v1473
    %v1641 = vmul.f32 %v1364, %v1364
    %v1642 = vmul.f32 %v1366, %v1366
    %v1643 = vmul.f32 %v1477, %v1477
    %v1644 = vmul.f32 %v1479, %v1479
    %v1645 = vmul.f32 %v1368, %v1368
    %v1646 = vmul.f32 %v1370, %v1370
    %v1647 = vmul.f32 %v1481, %v1481
    %v1648 = vmul.f32 %v1483, %v1483
    %v1649 = vmul.f32 %v1374, %v1374
    %v1650 = vmul.f32 %v1376, %v1376
    %v1651 = vmul.f32 %v1487, %v1487
    %v1652 = vmul.f32 %v1489, %v1489
    %v1653 = vmul.f32 %v1378, %v1378
    %v1654 = vmul.f32 %v1380, %v1380
    %v1655 = vmul.f32 %v1491, %v1491
    %v1656 = vmul.f32 %v1493, %v1493
    %v1657 = vmul.f32 %v1384, %v1384
    %v1658 = vmul.f32 %v1386, %v1386
    %v1659 = vmul.f32 %v1497, %v1497
    %v1660 = vmul.f32 %v1499, %v1499
    %v1661 = vmul.f32 %v1388, %v1388
    %v1662 = vmul.f32 %v1390, %v1390
    %v1663 = vmul.f32 %v1501, %v1501
    %v1664 = vmul.f32 %v1503, %v1503
    %v1665 = vmul.f32 %v1394, %v1394
    %v1666 = vmul.f32 %v1396, %v1396
    %v1667 = vmul.f32 %v1507, %v1507
    %v1668 = vmul.f32 %v1509, %v1509
    %v1669 = vmul.f32 %v1398, %v1398
    %v1670 = vmul.f32 %v1400, %v1400
    %v1671 = vmul.f32 %v1511, %v1511
    %v1672 = vmul.f32 %v1513, %v1513
    %v1673 = vmul.f32 %v1404, %v1404
    %v1674 = vmul.f32 %v1406, %v1406
    %v1675 = vmul.f32 %v1517, %v1517
    %v1676 = vmul.f32 %v1519, %v1519
    %v1677 = vmul.f32 %v1408, %v1408
    %v1678 = vmul.f32 %v1410, %v1410
    %v1679 = vmul.f32 %v1521, %v1521
    %v1680 = vmul.f32 %v1523, %v1523
    %v1681 = vmul.f32 %v1414, %v1414
    %v1682 = vmul.f32 %v1416, %v1416
    %v1683 = vmul.f32 %v1527, %v1527
    %v1684 = vmul.f32 %v1529, %v1529
    %v1685 = vmul.f32 %v1418, %v1418
    %v1686 = vmul.f32 %v1420, %v1420
    %v1687 = vmul.f32 %v1531, %v1531
    %v1688 = vmul.f32 %v1533, %v1533
    %v1689 = vmul.f32 %v1424, %v1424
    %v1690 = vmul.f32 %v1426, %v1426
    %v1691 = vmul.f32 %v1537, %v1537
    %v1692 = vmul.f32 %v1539, %v1539
    %v1693 = vmul.f32 %v1428, %v1428
    %v1694 = vmul.f32 %v1430, %v1430
    %v1695 = vmul.f32 %v1541, %v1541
    %v1696 = vmul.f32 %v1543, %v1543
    %v1697 = vadd.f32 %v1633, %v1637
    %v1698 = vadd.f32 %v1697, %v1641
    %v1699 = vadd.f32 %v1698, %v1645
    %v1700 = vadd.f32 %v1699, %v1649
    %v1701 = vadd.f32 %v1700, %v1653
    %v1702 = vadd.f32 %v1701, %v1657
    %v1703 = vadd.f32 %v1702, %v1661
    %v1704 = vadd.f32 %v1703, %v1665
    %v1705 = vadd.f32 %v1704, %v1669
    %v1706 = vadd.f32 %v1705, %v1673
    %v1707 = vadd.f32 %v1706, %v1677
    %v1708 = vadd.f32 %v1707, %v1681
    %v1709 = vadd.f32 %v1708, %v1685
    %v1710 = vadd.f32 %v1709, %v1689
    %v1711 = vadd.f32 %v1710, %v1693
    %v1712 = vrot.slane %v1711, 4
    %v1713 = vadd.f32 %v1711, %v1712
    %v1714 = vrot.slane %v1713, 2
    %v1715 = vadd.f32 %v1713, %v1714
    %v1716 = vrot.slane %v1715, 1
    %v1717 = vadd.f32 %v1715, %v1716
    %v1718 = vadd.f32 %v1634, %v1638
    %v1719 = vadd.f32 %v1718, %v1642
    %v1720 = vadd.f32 %v1719, %v1646
    %v1721 = vadd.f32 %v1720, %v1650
    %v1722 = vadd.f32 %v1721, %v1654
    %v1723 = vadd.f32 %v1722, %v1658
    %v1724 = vadd.f32 %v1723, %v1662
    %v1725 = vadd.f32 %v1724, %v1666
    %v1726 = vadd.f32 %v1725, %v1670
    %v1727 = vadd.f32 %v1726, %v1674
    %v1728 = vadd.f32 %v1727, %v1678
    %v1729 = vadd.f32 %v1728, %v1682
    %v1730 = vadd.f32 %v1729, %v1686
    %v1731 = vadd.f32 %v1730, %v1690
    %v1732 = vadd.f32 %v1731, %v1694
    %v1733 = vrot.slane %v1732, 4
    %v1734 = vadd.f32 %v1732, %v1733
    %v1735 = vrot.slane %v1734, 2
    %v1736 = vadd.f32 %v1734, %v1735
    %v1737 = vrot.slane %v1736, 1
    %v1738 = vadd.f32 %v1736, %v1737
    %v1739 = vadd.f32 %v1635, %v1639
    %v1740 = vadd.f32 %v1739, %v1643
    %v1741 = vadd.f32 %v1740, %v1647
    %v1742 = vadd.f32 %v1741, %v1651
    %v1743 = vadd.f32 %v1742, %v1655
    %v1744 = vadd.f32 %v1743, %v1659
    %v1745 = vadd.f32 %v1744, %v1663
    %v1746 = vadd.f32 %v1745, %v1667
    %v1747 = vadd.f32 %v1746, %v1671
    %v1748 = vadd.f32 %v1747, %v1675
    %v1749 = vadd.f32 %v1748, %v1679
    %v1750 = vadd.f32 %v1749, %v1683
    %v1751 = vadd.f32 %v1750, %v1687
    %v1752 = vadd.f32 %v1751, %v1691
    %v1753 = vadd.f32 %v1752, %v1695
    %v1754 = vrot.slane %v1753, 4
    %v1755 = vadd.f32 %v1753, %v1754
    %v1756 = vrot.slane %v1755, 2
    %v1757 = vadd.f32 %v1755, %v1756
    %v1758 = vrot.slane %v1757, 1
    %v1759 = vadd.f32 %v1757, %v1758
    %v1760 = vadd.f32 %v1636, %v1640
    %v1761 = vadd.f32 %v1760, %v1644
    %v1762 = vadd.f32 %v1761, %v1648
    %v1763 = vadd.f32 %v1762, %v1652
    %v1764 = vadd.f32 %v1763, %v1656
    %v1765 = vadd.f32 %v1764, %v1660
    %v1766 = vadd.f32 %v1765, %v1664
    %v1767 = vadd.f32 %v1766, %v1668
    %v1768 = vadd.f32 %v1767, %v1672
    %v1769 = vadd.f32 %v1768, %v1676
    %v1770 = vadd.f32 %v1769, %v1680
    %v1771 = vadd.f32 %v1770, %v1684
    %v1772 = vadd.f32 %v1771, %v1688
    %v1773 = vadd.f32 %v1772, %v1692
    %v1774 = vadd.f32 %v1773, %v1696
    %v1775 = vrot.slane %v1774, 4
    %v1776 = vadd.f32 %v1774, %v1775
    %v1777 = vrot.slane %v1776, 2
    %v1778 = vadd.f32 %v1776, %v1777
    %v1779 = vrot.slane %v1778, 1
    %v1780 = vadd.f32 %v1778, %v1779
    %v1781 = vmul.f32 %v1717, %v296
    %v1782 = vmul.f32 %v1738, %v296
    %v1783 = vmul.f32 %v1759, %v296
    %v1784 = vmul.f32 %v1780, %v296
    %v1785 = vmul.f32 %v1629, %v1629
    %v1786 = vmul.f32 %v1630, %v1630
    %v1787 = vmul.f32 %v1631, %v1631
    %v1788 = vmul.f32 %v1632, %v1632
    %v1789 = vsub.f32 %v1781, %v1785
    %v1790 = vsub.f32 %v1782, %v1786
    %v1791 = vsub.f32 %v1783, %v1787
    %v1792 = vsub.f32 %v1784, %v1788
    %v1793 = vadd.f32 %v1789, 0.8
    %v1794 = vadd.f32 %v1790, 0.8
    %v1795 = vadd.f32 %v1791, 0.8
    %v1796 = vadd.f32 %v1792, 0.8
    %v1797 = vrsqrt.pop %v1793
    %v1798 = vrsqrt.pop %v1794
    %v1799 = vrsqrt.pop %v1795
    %v1800 = vrsqrt.pop %v1796
    %v1801 = vmul.f32 %v74, %v1797
    %v1802 = vmul.f32 %v75, %v1798
    %v1803 = vmul.f32 %v76, %v1799
    %v1804 = vmul.f32 %v77, %v1800
    %v1805 = vmul.f32 %v1629, %v1801
    %v1806 = vmul.f32 %v1630, %v1802
    %v1807 = vmul.f32 %v1631, %v1803
    %v1808 = vmul.f32 %v1632, %v1804
    %v1813 = vrot.slane %v1805, 7
    %v1814 = vrot.slane %v1806, 7
    %v1815 = vrot.slane %v1807, 7
    %v1816 = vrot.slane %v1808, 7
    %v1821 = vsub.f32 %v74, %v1813
    %v1822 = vsub.f32 %v75, %v1814
    %v1823 = vsub.f32 %v76, %v1815
    %v1824 = vsub.f32 %v77, %v1816
    %v1825 = vlaneseq
    %v1826 = vshrl.u32 %v1825, 7
    %v1827 = vsub.s32 4, %v1826
    %v1828 = vrot.slane %v1801, %v1827
    %v1829 = vlaneseq
    %v1830 = vshrl.u32 %v1829, 7
    %v1831 = vsub.s32 4, %v1830
    %v1832 = vrot.slane %v1802, %v1831
    %v1833 = vlaneseq
    %v1834 = vshrl.u32 %v1833, 7
    %v1835 = vsub.s32 4, %v1834
    %v1836 = vrot.slane %v1803, %v1835
    %v1837 = vlaneseq
    %v1838 = vshrl.u32 %v1837, 7
    %v1839 = vsub.s32 4, %v1838
    %v1840 = vrot.slane %v1804, %v1839
    %v1841 = vmul.f32 %v1354, %v1828
    %v1842 = vmul.f32 %v1356, %v1832
    %v1843 = vmul.f32 %v1467, %v1836
    %v1844 = vmul.f32 %v1469, %v1840
    %v1845 = vmul.f32 %v1358, %v1828
    %v1846 = vmul.f32 %v1360, %v1832
    %v1847 = vmul.f32 %v1471, %v1836
    %v1848 = vmul.f32 %v1473, %v1840
    %v1849 = vmul.f32 %v1364, %v1828
    %v1850 = vmul.f32 %v1366, %v1832
    %v1851 = vmul.f32 %v1477, %v1836
    %v1852 = vmul.f32 %v1479, %v1840
    %v1853 = vmul.f32 %v1368, %v1828
    %v1854 = vmul.f32 %v1370, %v1832
    %v1855 = vmul.f32 %v1481, %v1836
    %v1856 = vmul.f32 %v1483, %v1840
    %v1857 = vmul.f32 %v1374, %v1828
    %v1858 = vmul.f32 %v1376, %v1832
    %v1859 = vmul.f32 %v1487, %v1836
    %v1860 = vmul.f32 %v1489, %v1840
    %v1861 = vmul.f32 %v1378, %v1828
    %v1862 = vmul.f32 %v1380, %v1832
    %v1863 = vmul.f32 %v1491, %v1836
    %v1864 = vmul.f32 %v1493, %v1840
    %v1865 = vmul.f32 %v1384, %v1828
    %v1866 = vmul.f32 %v1386, %v1832
    %v1867 = vmul.f32 %v1497, %v1836
    %v1868 = vmul.f32 %v1499, %v1840
    %v1869 = vmul.f32 %v1388, %v1828
    %v1870 = vmul.f32 %v1390, %v1832
    %v1871 = vmul.f32 %v1501, %v1836
    %v1872 = vmul.f32 %v1503, %v1840
    %v1873 = vmul.f32 %v1394, %v1828
    %v1874 = vmul.f32 %v1396, %v1832
    %v1875 = vmul.f32 %v1507, %v1836
    %v1876 = vmul.f32 %v1509, %v1840
    %v1877 = vmul.f32 %v1398, %v1828
    %v1878 = vmul.f32 %v1400, %v1832
    %v1879 = vmul.f32 %v1511, %v1836
    %v1880 = vmul.f32 %v1513, %v1840
    %v1881 = vmul.f32 %v1404, %v1828
    %v1882 = vmul.f32 %v1406, %v1832
    %v1883 = vmul.f32 %v1517, %v1836
    %v1884 = vmul.f32 %v1519, %v1840
    %v1885 = vmul.f32 %v1408, %v1828
    %v1886 = vmul.f32 %v1410, %v1832
    %v1887 = vmul.f32 %v1521, %v1836
    %v1888 = vmul.f32 %v1523, %v1840
    %v1889 = vmul.f32 %v1414, %v1828
    %v1890 = vmul.f32 %v1416, %v1832
    %v1891 = vmul.f32 %v1527, %v1836
    %v1892 = vmul.f32 %v1529, %v1840
    %v1893 = vmul.f32 %v1418, %v1828
    %v1894 = vmul.f32 %v1420, %v1832
    %v1895 = vmul.f32 %v1531, %v1836
    %v1896 = vmul.f32 %v1533, %v1840
    %v1897 = vmul.f32 %v1424, %v1828
    %v1898 = vmul.f32 %v1426, %v1832
    %v1899 = vmul.f32 %v1537, %v1836
    %v1900 = vmul.f32 %v1539, %v1840
    %v1901 = vmul.f32 %v1428, %v1828
    %v1902 = vmul.f32 %v1430, %v1832
    %v1903 = vmul.f32 %v1541, %v1836
    %v1904 = vmul.f32 %v1543, %v1840
    %v1905 = vlaneseq
    %v1906 = vshrl.u32 %v1905, 7
    %v1907 = vsub.s32 5, %v1906
    %v1908 = vrot.slane %v1821, %v1907
    %v1909 = vlaneseq
    %v1910 = vshrl.u32 %v1909, 7
    %v1911 = vsub.s32 5, %v1910
    %v1912 = vrot.slane %v1822, %v1911
    %v1913 = vlaneseq
    %v1914 = vshrl.u32 %v1913, 7
    %v1915 = vsub.s32 5, %v1914
    %v1916 = vrot.slane %v1823, %v1915
    %v1917 = vlaneseq
    %v1918 = vshrl.u32 %v1917, 7
    %v1919 = vsub.s32 5, %v1918
    %v1920 = vrot.slane %v1824, %v1919
    %v1921 = vadd.f32 %v1841, %v1908
    %v1922 = vadd.f32 %v1842, %v1912
    %v1923 = vadd.f32 %v1843, %v1916
    %v1924 = vadd.f32 %v1844, %v1920
    %v1925 = vadd.f32 %v1845, %v1908
    %v1926 = vadd.f32 %v1846, %v1912
    %v1927 = vadd.f32 %v1847, %v1916
    %v1928 = vadd.f32 %v1848, %v1920
    %v1929 = vadd.f32 %v1849, %v1908
    %v1930 = vadd.f32 %v1850, %v1912
    %v1931 = vadd.f32 %v1851, %v1916
    %v1932 = vadd.f32 %v1852, %v1920
    %v1933 = vadd.f32 %v1853, %v1908
    %v1934 = vadd.f32 %v1854, %v1912
    %v1935 = vadd.f32 %v1855, %v1916
    %v1936 = vadd.f32 %v1856, %v1920
    %v1937 = vadd.f32 %v1857, %v1908
    %v1938 = vadd.f32 %v1858, %v1912
    %v1939 = vadd.f32 %v1859, %v1916
    %v1940 = vadd.f32 %v1860, %v1920
    %v1941 = vadd.f32 %v1861, %v1908
    %v1942 = vadd.f32 %v1862, %v1912
    %v1943 = vadd.f32 %v1863, %v1916
    %v1944 = vadd.f32 %v1864, %v1920
    %v1945 = vadd.f32 %v1865, %v1908
    %v1946 = vadd.f32 %v1866, %v1912
    %v1947 = vadd.f32 %v1867, %v1916
    %v1948 = vadd.f32 %v1868, %v1920
    %v1949 = vadd.f32 %v1869, %v1908
    %v1950 = vadd.f32 %v1870, %v1912
    %v1951 = vadd.f32 %v1871, %v1916
    %v1952 = vadd.f32 %v1872, %v1920
    %v1953 = vadd.f32 %v1873, %v1908
    %v1954 = vadd.f32 %v1874, %v1912
    %v1955 = vadd.f32 %v1875, %v1916
    %v1956 = vadd.f32 %v1876, %v1920
    %v1957 = vadd.f32 %v1877, %v1908
    %v1958 = vadd.f32 %v1878, %v1912
    %v1959 = vadd.f32 %v1879, %v1916
    %v1960 = vadd.f32 %v1880, %v1920
    %v1961 = vadd.f32 %v1881, %v1908
    %v1962 = vadd.f32 %v1882, %v1912
    %v1963 = vadd.f32 %v1883, %v1916
    %v1964 = vadd.f32 %v1884, %v1920
    %v1965 = vadd.f32 %v1885, %v1908
    %v1966 = vadd.f32 %v1886, %v1912
    %v1967 = vadd.f32 %v1887, %v1916
    %v1968 = vadd.f32 %v1888, %v1920
    %v1969 = vadd.f32 %v1889, %v1908
    %v1970 = vadd.f32 %v1890, %v1912
    %v1971 = vadd.f32 %v1891, %v1916
    %v1972 = vadd.f32 %v1892, %v1920
    %v1973 = vadd.f32 %v1893, %v1908
    %v1974 = vadd.f32 %v1894, %v1912
    %v1975 = vadd.f32 %v1895, %v1916
    %v1976 = vadd.f32 %v1896, %v1920
    %v1977 = vadd.f32 %v1897, %v1908
    %v1978 = vadd.f32 %v1898, %v1912
    %v1979 = vadd.f32 %v1899, %v1916
    %v1980 = vadd.f32 %v1900, %v1920
    %v1981 = vadd.f32 %v1901, %v1908
    %v1982 = vadd.f32 %v1902, %v1912
    %v1983 = vadd.f32 %v1903, %v1916
    %v1984 = vadd.f32 %v1904, %v1920
    %v1985 = vmul.f32 %v1921, 0.2
    %v1986 = vmul.f32 %v1922, 0.2
    %v1987 = vmul.f32 %v1923, 0.2
    %v1988 = vmul.f32 %v1924, 0.2
    %v1989 = vmul.f32 %v1925, 0.2
    %v1990 = vmul.f32 %v1926, 0.2
    %v1991 = vmul.f32 %v1927, 0.2
    %v1992 = vmul.f32 %v1928, 0.2
    %v1993 = vmul.f32 %v1929, 0.2
    %v1994 = vmul.f32 %v1930, 0.2
    %v1995 = vmul.f32 %v1931, 0.2
    %v1996 = vmul.f32 %v1932, 0.2
    %v1997 = vmul.f32 %v1933, 0.2
    %v1998 = vmul.f32 %v1934, 0.2
    %v1999 = vmul.f32 %v1935, 0.2
    %v2000 = vmul.f32 %v1936, 0.2
    %v2001 = vmul.f32 %v1937, 0.2
    %v2002 = vmul.f32 %v1938, 0.2
    %v2003 = vmul.f32 %v1939, 0.2
    %v2004 = vmul.f32 %v1940, 0.2
    %v2005 = vmul.f32 %v1941, 0.2
    %v2006 = vmul.f32 %v1942, 0.2
    %v2007 = vmul.f32 %v1943, 0.2
    %v2008 = vmul.f32 %v1944, 0.2
    %v2009 = vmul.f32 %v1945, 0.2
    %v2010 = vmul.f32 %v1946, 0.2
    %v2011 = vmul.f32 %v1947, 0.2
    %v2012 = vmul.f32 %v1948, 0.2
    %v2013 = vmul.f32 %v1949, 0.2
    %v2014 = vmul.f32 %v1950, 0.2
    %v2015 = vmul.f32 %v1951, 0.2
    %v2016 = vmul.f32 %v1952, 0.2
    %v2017 = vmul.f32 %v1953, 0.2
    %v2018 = vmul.f32 %v1954, 0.2
    %v2019 = vmul.f32 %v1955, 0.2
    %v2020 = vmul.f32 %v1956, 0.2
    %v2021 = vmul.f32 %v1957, 0.2
    %v2022 = vmul.f32 %v1958, 0.2
    %v2023 = vmul.f32 %v1959, 0.2
    %v2024 = vmul.f32 %v1960, 0.2
    %v2025 = vmul.f32 %v1961, 0.2
    %v2026 = vmul.f32 %v1962, 0.2
    %v2027 = vmul.f32 %v1963, 0.2
    %v2028 = vmul.f32 %v1964, 0.2
    %v2029 = vmul.f32 %v1965, 0.2
    %v2030 = vmul.f32 %v1966, 0.2
    %v2031 = vmul.f32 %v1967, 0.2
    %v2032 = vmul.f32 %v1968, 0.2
    %v2033 = vmul.f32 %v1969, 0.2
    %v2034 = vmul.f32 %v1970, 0.2
    %v2035 = vmul.f32 %v1971, 0.2
    %v2036 = vmul.f32 %v1972, 0.2
    %v2037 = vmul.f32 %v1973, 0.2
    %v2038 = vmul.f32 %v1974, 0.2
    %v2039 = vmul.f32 %v1975, 0.2
    %v2040 = vmul.f32 %v1976, 0.2
    %v2041 = vmul.f32 %v1977, 0.2
    %v2042 = vmul.f32 %v1978, 0.2
    %v2043 = vmul.f32 %v1979, 0.2
    %v2044 = vmul.f32 %v1980, 0.2
    %v2045 = vmul.f32 %v1981, 0.2
    %v2046 = vmul.f32 %v1982, 0.2
    %v2047 = vmul.f32 %v1983, 0.2
    %v2048 = vmul.f32 %v1984, 0.2
    %v2049 = vmax.f32 %v1921, %v1985
    %v2050 = vmax.f32 %v1922, %v1986
    %v2051 = vmax.f32 %v1923, %v1987
    %v2052 = vmax.f32 %v1924, %v1988
    %v2053 = vmax.f32 %v1925, %v1989
    %v2054 = vmax.f32 %v1926, %v1990
    %v2055 = vmax.f32 %v1927, %v1991
    %v2056 = vmax.f32 %v1928, %v1992
    %v2057 = vmax.f32 %v1929, %v1993
    %v2058 = vmax.f32 %v1930, %v1994
    %v2059 = vmax.f32 %v1931, %v1995
    %v2060 = vmax.f32 %v1932, %v1996
    %v2061 = vmax.f32 %v1933, %v1997
    %v2062 = vmax.f32 %v1934, %v1998
    %v2063 = vmax.f32 %v1935, %v1999
    %v2064 = vmax.f32 %v1936, %v2000
    %v2065 = vmax.f32 %v1937, %v2001
    %v2066 = vmax.f32 %v1938, %v2002
    %v2067 = vmax.f32 %v1939, %v2003
    %v2068 = vmax.f32 %v1940, %v2004
    %v2069 = vmax.f32 %v1941, %v2005
    %v2070 = vmax.f32 %v1942, %v2006
    %v2071 = vmax.f32 %v1943, %v2007
    %v2072 = vmax.f32 %v1944, %v2008
    %v2073 = vmax.f32 %v1945, %v2009
    %v2074 = vmax.f32 %v1946, %v2010
    %v2075 = vmax.f32 %v1947, %v2011
    %v2076 = vmax.f32 %v1948, %v2012
    %v2077 = vmax.f32 %v1949, %v2013
    %v2078 = vmax.f32 %v1950, %v2014
    %v2079 = vmax.f32 %v1951, %v2015
    %v2080 = vmax.f32 %v1952, %v2016
    %v2081 = vmax.f32 %v1953, %v2017
    %v2082 = vmax.f32 %v1954, %v2018
    %v2083 = vmax.f32 %v1955, %v2019
    %v2084 = vmax.f32 %v1956, %v2020
    %v2085 = vmax.f32 %v1957, %v2021
    %v2086 = vmax.f32 %v1958, %v2022
    %v2087 = vmax.f32 %v1959, %v2023
    %v2088 = vmax.f32 %v1960, %v2024
    %v2089 = vmax.f32 %v1961, %v2025
    %v2090 = vmax.f32 %v1962, %v2026
    %v2091 = vmax.f32 %v1963, %v2027
    %v2092 = vmax.f32 %v1964, %v2028
    %v2093 = vmax.f32 %v1965, %v2029
    %v2094 = vmax.f32 %v1966, %v2030
    %v2095 = vmax.f32 %v1967, %v2031
    %v2096 = vmax.f32 %v1968, %v2032
    %v2097 = vmax.f32 %v1969, %v2033
    %v2098 = vmax.f32 %v1970, %v2034
    %v2099 = vmax.f32 %v1971, %v2035
    %v2100 = vmax.f32 %v1972, %v2036
    %v2101 = vmax.f32 %v1973, %v2037
    %v2102 = vmax.f32 %v1974, %v2038
    %v2103 = vmax.f32 %v1975, %v2039
    %v2104 = vmax.f32 %v1976, %v2040
    %v2105 = vmax.f32 %v1977, %v2041
    %v2106 = vmax.f32 %v1978, %v2042
    %v2107 = vmax.f32 %v1979, %v2043
    %v2108 = vmax.f32 %v1980, %v2044
    %v2109 = vmax.f32 %v1981, %v2045
    %v2110 = vmax.f32 %v1982, %v2046
    %v2111 = vmax.f32 %v1983, %v2047
    %v2112 = vmax.f32 %v1984, %v2048
    %s2113 = smul.u32 2, 64
    %s2114 = smul.u32 %s2113, 8
    %s2115 = sshll.u32 %s2114, 4
    %2116 = dma.done [#allocation4], %s2115
    %v2117 = vld [vmem:[#allocation2] sm:$0xff]
    %v2118 = vld [vmem:[#allocation2 + $0x8] sm:$0xff]
    %v2119 = vld [vmem:[#allocation2 + $0x10] sm:$0xff]
    %v2120 = vld [vmem:[#allocation2 + $0x18] sm:$0xff]
    %v2121 = vld [vmem:[#allocation2 + $0x20] sm:$0xff]
    %v2122 = vld [vmem:[#allocation2 + $0x28] sm:$0xff]
    %v2123 = vld [vmem:[#allocation2 + $0x30] sm:$0xff]
    %v2124 = vld [vmem:[#allocation2 + $0x38] sm:$0xff]
    %v2125 = vld [vmem:[#allocation2 + $0x40] sm:$0xff]
    %v2126 = vld [vmem:[#allocation2 + $0x48] sm:$0xff]
    %v2127 = vld [vmem:[#allocation2 + $0x50] sm:$0xff]
    %v2128 = vld [vmem:[#allocation2 + $0x58] sm:$0xff]
    %v2129 = vld [vmem:[#allocation2 + $0x60] sm:$0xff]
    %v2130 = vld [vmem:[#allocation2 + $0x68] sm:$0xff]
    %v2131 = vld [vmem:[#allocation2 + $0x70] sm:$0xff]
    %v2132 = vld [vmem:[#allocation2 + $0x78] sm:$0xff]
    %v2133 = vld [vmem:[#allocation2 + $0x80] sm:$0xff]
    %v2134 = vld [vmem:[#allocation2 + $0x88] sm:$0xff]
    %v2135 = vld [vmem:[#allocation2 + $0x90] sm:$0xff]
    %v2136 = vld [vmem:[#allocation2 + $0x98] sm:$0xff]
    %v2137 = vld [vmem:[#allocation2 + $0xa0] sm:$0xff]
    %v2138 = vld [vmem:[#allocation2 + $0xa8] sm:$0xff]
    %v2139 = vld [vmem:[#allocation2 + $0xb0] sm:$0xff]
    %v2140 = vld [vmem:[#allocation2 + $0xb8] sm:$0xff]
    %v2141 = vld [vmem:[#allocation2 + $0xc0] sm:$0xff]
    %v2142 = vld [vmem:[#allocation2 + $0xc8] sm:$0xff]
    %v2143 = vld [vmem:[#allocation2 + $0xd0] sm:$0xff]
    %v2144 = vld [vmem:[#allocation2 + $0xd8] sm:$0xff]
    %v2145 = vld [vmem:[#allocation2 + $0xe0] sm:$0xff]
    %v2146 = vld [vmem:[#allocation2 + $0xe8] sm:$0xff]
    %v2147 = vld [vmem:[#allocation2 + $0xf0] sm:$0xff]
    %v2148 = vld [vmem:[#allocation2 + $0xf8] sm:$0xff]
    %v2149 = vld [vmem:[#allocation2 + $0x100] sm:$0xff]
    %v2150 = vld [vmem:[#allocation2 + $0x108] sm:$0xff]
    %v2151 = vld [vmem:[#allocation2 + $0x110] sm:$0xff]
    %v2152 = vld [vmem:[#allocation2 + $0x118] sm:$0xff]
    %v2153 = vld [vmem:[#allocation2 + $0x120] sm:$0xff]
    %v2154 = vld [vmem:[#allocation2 + $0x128] sm:$0xff]
    %v2155 = vld [vmem:[#allocation2 + $0x130] sm:$0xff]
    %v2156 = vld [vmem:[#allocation2 + $0x138] sm:$0xff]
    %v2157 = vld [vmem:[#allocation2 + $0x140] sm:$0xff]
    %v2158 = vld [vmem:[#allocation2 + $0x148] sm:$0xff]
    %v2159 = vld [vmem:[#allocation2 + $0x150] sm:$0xff]
    %v2160 = vld [vmem:[#allocation2 + $0x158] sm:$0xff]
    %v2161 = vld [vmem:[#allocation2 + $0x160] sm:$0xff]
    %v2162 = vld [vmem:[#allocation2 + $0x168] sm:$0xff]
    %v2163 = vld [vmem:[#allocation2 + $0x170] sm:$0xff]
    %v2164 = vld [vmem:[#allocation2 + $0x178] sm:$0xff]
    %v2165 = vld [vmem:[#allocation2 + $0x180] sm:$0xff]
    %v2166 = vld [vmem:[#allocation2 + $0x188] sm:$0xff]
    %v2167 = vld [vmem:[#allocation2 + $0x190] sm:$0xff]
    %v2168 = vld [vmem:[#allocation2 + $0x198] sm:$0xff]
    %v2169 = vld [vmem:[#allocation2 + $0x1a0] sm:$0xff]
    %v2170 = vld [vmem:[#allocation2 + $0x1a8] sm:$0xff]
    %v2171 = vld [vmem:[#allocation2 + $0x1b0] sm:$0xff]
    %v2172 = vld [vmem:[#allocation2 + $0x1b8] sm:$0xff]
    %v2173 = vld [vmem:[#allocation2 + $0x1c0] sm:$0xff]
    %v2174 = vld [vmem:[#allocation2 + $0x1c8] sm:$0xff]
    %v2175 = vld [vmem:[#allocation2 + $0x1d0] sm:$0xff]
    %v2176 = vld [vmem:[#allocation2 + $0x1d8] sm:$0xff]
    %v2177 = vld [vmem:[#allocation2 + $0x1e0] sm:$0xff]
    %v2178 = vld [vmem:[#allocation2 + $0x1e8] sm:$0xff]
    %v2179 = vld [vmem:[#allocation2 + $0x1f0] sm:$0xff]
    %v2180 = vld [vmem:[#allocation2 + $0x1f8] sm:$0xff]
    %v2181 = vld [vmem:[#allocation2 + $0x200] sm:$0xff]
    %v2182 = vld [vmem:[#allocation2 + $0x208] sm:$0xff]
    %v2183 = vld [vmem:[#allocation2 + $0x210] sm:$0xff]
    %v2184 = vld [vmem:[#allocation2 + $0x218] sm:$0xff]
    %v2185 = vld [vmem:[#allocation2 + $0x220] sm:$0xff]
    %v2186 = vld [vmem:[#allocation2 + $0x228] sm:$0xff]
    %v2187 = vld [vmem:[#allocation2 + $0x230] sm:$0xff]
    %v2188 = vld [vmem:[#allocation2 + $0x238] sm:$0xff]
    %v2189 = vld [vmem:[#allocation2 + $0x240] sm:$0xff]
    %v2190 = vld [vmem:[#allocation2 + $0x248] sm:$0xff]
    %v2191 = vld [vmem:[#allocation2 + $0x250] sm:$0xff]
    %v2192 = vld [vmem:[#allocation2 + $0x258] sm:$0xff]
    %v2193 = vld [vmem:[#allocation2 + $0x260] sm:$0xff]
    %v2194 = vld [vmem:[#allocation2 + $0x268] sm:$0xff]
    %v2195 = vld [vmem:[#allocation2 + $0x270] sm:$0xff]
    %v2196 = vld [vmem:[#allocation2 + $0x278] sm:$0xff]
    %v2197 = vld [vmem:[#allocation2 + $0x280] sm:$0xff]
    %v2198 = vld [vmem:[#allocation2 + $0x288] sm:$0xff]
    %v2199 = vld [vmem:[#allocation2 + $0x290] sm:$0xff]
    %v2200 = vld [vmem:[#allocation2 + $0x298] sm:$0xff]
    %v2201 = vld [vmem:[#allocation2 + $0x2a0] sm:$0xff]
    %v2202 = vld [vmem:[#allocation2 + $0x2a8] sm:$0xff]
    %v2203 = vld [vmem:[#allocation2 + $0x2b0] sm:$0xff]
    %v2204 = vld [vmem:[#allocation2 + $0x2b8] sm:$0xff]
    %v2205 = vld [vmem:[#allocation2 + $0x2c0] sm:$0xff]
    %v2206 = vld [vmem:[#allocation2 + $0x2c8] sm:$0xff]
    %v2207 = vld [vmem:[#allocation2 + $0x2d0] sm:$0xff]
    %v2208 = vld [vmem:[#allocation2 + $0x2d8] sm:$0xff]
    %v2209 = vld [vmem:[#allocation2 + $0x2e0] sm:$0xff]
    %v2210 = vld [vmem:[#allocation2 + $0x2e8] sm:$0xff]
    %v2211 = vld [vmem:[#allocation2 + $0x2f0] sm:$0xff]
    %v2212 = vld [vmem:[#allocation2 + $0x2f8] sm:$0xff]
    %v2213 = vld [vmem:[#allocation2 + $0x300] sm:$0xff]
    %v2214 = vld [vmem:[#allocation2 + $0x308] sm:$0xff]
    %v2215 = vld [vmem:[#allocation2 + $0x310] sm:$0xff]
    %v2216 = vld [vmem:[#allocation2 + $0x318] sm:$0xff]
    %v2217 = vld [vmem:[#allocation2 + $0x320] sm:$0xff]
    %v2218 = vld [vmem:[#allocation2 + $0x328] sm:$0xff]
    %v2219 = vld [vmem:[#allocation2 + $0x330] sm:$0xff]
    %v2220 = vld [vmem:[#allocation2 + $0x338] sm:$0xff]
    %v2221 = vld [vmem:[#allocation2 + $0x340] sm:$0xff]
    %v2222 = vld [vmem:[#allocation2 + $0x348] sm:$0xff]
    %v2223 = vld [vmem:[#allocation2 + $0x350] sm:$0xff]
    %v2224 = vld [vmem:[#allocation2 + $0x358] sm:$0xff]
    %v2225 = vld [vmem:[#allocation2 + $0x360] sm:$0xff]
    %v2226 = vld [vmem:[#allocation2 + $0x368] sm:$0xff]
    %v2227 = vld [vmem:[#allocation2 + $0x370] sm:$0xff]
    %v2228 = vld [vmem:[#allocation2 + $0x378] sm:$0xff]
    %v2229 = vld [vmem:[#allocation2 + $0x380] sm:$0xff]
    %v2230 = vld [vmem:[#allocation2 + $0x388] sm:$0xff]
    %v2231 = vld [vmem:[#allocation2 + $0x390] sm:$0xff]
    %v2232 = vld [vmem:[#allocation2 + $0x398] sm:$0xff]
    %v2233 = vld [vmem:[#allocation2 + $0x3a0] sm:$0xff]
    %v2234 = vld [vmem:[#allocation2 + $0x3a8] sm:$0xff]
    %v2235 = vld [vmem:[#allocation2 + $0x3b0] sm:$0xff]
    %v2236 = vld [vmem:[#allocation2 + $0x3b8] sm:$0xff]
    %v2237 = vld [vmem:[#allocation2 + $0x3c0] sm:$0xff]
    %v2238 = vld [vmem:[#allocation2 + $0x3c8] sm:$0xff]
    %v2239 = vld [vmem:[#allocation2 + $0x3d0] sm:$0xff]
    %v2240 = vld [vmem:[#allocation2 + $0x3d8] sm:$0xff]
    %v2241 = vld [vmem:[#allocation2 + $0x3e0] sm:$0xff]
    %v2242 = vld [vmem:[#allocation2 + $0x3e8] sm:$0xff]
    %v2243 = vld [vmem:[#allocation2 + $0x3f0] sm:$0xff]
    %v2244 = vld [vmem:[#allocation2 + $0x3f8] sm:$0xff]
    %v2245 = vunpack.c.l.s8.bf16 %v2117
    %v2246 = vunpack.c.l.s8.bf16 %v2118
    %v2247 = vunpack.c.l.s8.bf16 %v2119
    %v2248 = vunpack.c.l.s8.bf16 %v2120
    %v2249 = vunpack.c.l.s8.bf16 %v2121
    %v2250 = vunpack.c.l.s8.bf16 %v2122
    %v2251 = vunpack.c.l.s8.bf16 %v2123
    %v2252 = vunpack.c.l.s8.bf16 %v2124
    %v2253 = vunpack.c.h.s8.bf16 %v2117
    %v2254 = vunpack.c.h.s8.bf16 %v2118
    %v2255 = vunpack.c.h.s8.bf16 %v2119
    %v2256 = vunpack.c.h.s8.bf16 %v2120
    %v2257 = vunpack.c.h.s8.bf16 %v2121
    %v2258 = vunpack.c.h.s8.bf16 %v2122
    %v2259 = vunpack.c.h.s8.bf16 %v2123
    %v2260 = vunpack.c.h.s8.bf16 %v2124
    %v2261 = vunpack.c.l.s8.bf16 %v2125
    %v2262 = vunpack.c.l.s8.bf16 %v2126
    %v2263 = vunpack.c.l.s8.bf16 %v2127
    %v2264 = vunpack.c.l.s8.bf16 %v2128
    %v2265 = vunpack.c.l.s8.bf16 %v2129
    %v2266 = vunpack.c.l.s8.bf16 %v2130
    %v2267 = vunpack.c.l.s8.bf16 %v2131
    %v2268 = vunpack.c.l.s8.bf16 %v2132
    %v2269 = vunpack.c.h.s8.bf16 %v2125
    %v2270 = vunpack.c.h.s8.bf16 %v2126
    %v2271 = vunpack.c.h.s8.bf16 %v2127
    %v2272 = vunpack.c.h.s8.bf16 %v2128
    %v2273 = vunpack.c.h.s8.bf16 %v2129
    %v2274 = vunpack.c.h.s8.bf16 %v2130
    %v2275 = vunpack.c.h.s8.bf16 %v2131
    %v2276 = vunpack.c.h.s8.bf16 %v2132
    %v2277 = vunpack.c.l.s8.bf16 %v2133
    %v2278 = vunpack.c.l.s8.bf16 %v2134
    %v2279 = vunpack.c.l.s8.bf16 %v2135
    %v2280 = vunpack.c.l.s8.bf16 %v2136
    %v2281 = vunpack.c.l.s8.bf16 %v2137
    %v2282 = vunpack.c.l.s8.bf16 %v2138
    %v2283 = vunpack.c.l.s8.bf16 %v2139
    %v2284 = vunpack.c.l.s8.bf16 %v2140
    %v2285 = vunpack.c.h.s8.bf16 %v2133
    %v2286 = vunpack.c.h.s8.bf16 %v2134
    %v2287 = vunpack.c.h.s8.bf16 %v2135
    %v2288 = vunpack.c.h.s8.bf16 %v2136
    %v2289 = vunpack.c.h.s8.bf16 %v2137
    %v2290 = vunpack.c.h.s8.bf16 %v2138
    %v2291 = vunpack.c.h.s8.bf16 %v2139
    %v2292 = vunpack.c.h.s8.bf16 %v2140
    %v2293 = vunpack.c.l.s8.bf16 %v2141
    %v2294 = vunpack.c.l.s8.bf16 %v2142
    %v2295 = vunpack.c.l.s8.bf16 %v2143
    %v2296 = vunpack.c.l.s8.bf16 %v2144
    %v2297 = vunpack.c.l.s8.bf16 %v2145
    %v2298 = vunpack.c.l.s8.bf16 %v2146
    %v2299 = vunpack.c.l.s8.bf16 %v2147
    %v2300 = vunpack.c.l.s8.bf16 %v2148
    %v2301 = vunpack.c.h.s8.bf16 %v2141
    %v2302 = vunpack.c.h.s8.bf16 %v2142
    %v2303 = vunpack.c.h.s8.bf16 %v2143
    %v2304 = vunpack.c.h.s8.bf16 %v2144
    %v2305 = vunpack.c.h.s8.bf16 %v2145
    %v2306 = vunpack.c.h.s8.bf16 %v2146
    %v2307 = vunpack.c.h.s8.bf16 %v2147
    %v2308 = vunpack.c.h.s8.bf16 %v2148
    %v2309 = vunpack.c.l.s8.bf16 %v2149
    %v2310 = vunpack.c.l.s8.bf16 %v2150
    %v2311 = vunpack.c.l.s8.bf16 %v2151
    %v2312 = vunpack.c.l.s8.bf16 %v2152
    %v2313 = vunpack.c.l.s8.bf16 %v2153
    %v2314 = vunpack.c.l.s8.bf16 %v2154
    %v2315 = vunpack.c.l.s8.bf16 %v2155
    %v2316 = vunpack.c.l.s8.bf16 %v2156
    %v2317 = vunpack.c.h.s8.bf16 %v2149
    %v2318 = vunpack.c.h.s8.bf16 %v2150
    %v2319 = vunpack.c.h.s8.bf16 %v2151
    %v2320 = vunpack.c.h.s8.bf16 %v2152
    %v2321 = vunpack.c.h.s8.bf16 %v2153
    %v2322 = vunpack.c.h.s8.bf16 %v2154
    %v2323 = vunpack.c.h.s8.bf16 %v2155
    %v2324 = vunpack.c.h.s8.bf16 %v2156
    %v2325 = vunpack.c.l.s8.bf16 %v2157
    %v2326 = vunpack.c.l.s8.bf16 %v2158
    %v2327 = vunpack.c.l.s8.bf16 %v2159
    %v2328 = vunpack.c.l.s8.bf16 %v2160
    %v2329 = vunpack.c.l.s8.bf16 %v2161
    %v2330 = vunpack.c.l.s8.bf16 %v2162
    %v2331 = vunpack.c.l.s8.bf16 %v2163
    %v2332 = vunpack.c.l.s8.bf16 %v2164
    %v2333 = vunpack.c.h.s8.bf16 %v2157
    %v2334 = vunpack.c.h.s8.bf16 %v2158
    %v2335 = vunpack.c.h.s8.bf16 %v2159
    %v2336 = vunpack.c.h.s8.bf16 %v2160
    %v2337 = vunpack.c.h.s8.bf16 %v2161
    %v2338 = vunpack.c.h.s8.bf16 %v2162
    %v2339 = vunpack.c.h.s8.bf16 %v2163
    %v2340 = vunpack.c.h.s8.bf16 %v2164
    %v2341 = vunpack.c.l.s8.bf16 %v2165
    %v2342 = vunpack.c.l.s8.bf16 %v2166
    %v2343 = vunpack.c.l.s8.bf16 %v2167
    %v2344 = vunpack.c.l.s8.bf16 %v2168
    %v2345 = vunpack.c.l.s8.bf16 %v2169
    %v2346 = vunpack.c.l.s8.bf16 %v2170
    %v2347 = vunpack.c.l.s8.bf16 %v2171
    %v2348 = vunpack.c.l.s8.bf16 %v2172
    %v2349 = vunpack.c.h.s8.bf16 %v2165
    %v2350 = vunpack.c.h.s8.bf16 %v2166
    %v2351 = vunpack.c.h.s8.bf16 %v2167
    %v2352 = vunpack.c.h.s8.bf16 %v2168
    %v2353 = vunpack.c.h.s8.bf16 %v2169
    %v2354 = vunpack.c.h.s8.bf16 %v2170
    %v2355 = vunpack.c.h.s8.bf16 %v2171
    %v2356 = vunpack.c.h.s8.bf16 %v2172
    %v2357 = vunpack.c.l.s8.bf16 %v2173
    %v2358 = vunpack.c.l.s8.bf16 %v2174
    %v2359 = vunpack.c.l.s8.bf16 %v2175
    %v2360 = vunpack.c.l.s8.bf16 %v2176
    %v2361 = vunpack.c.l.s8.bf16 %v2177
    %v2362 = vunpack.c.l.s8.bf16 %v2178
    %v2363 = vunpack.c.l.s8.bf16 %v2179
    %v2364 = vunpack.c.l.s8.bf16 %v2180
    %v2365 = vunpack.c.h.s8.bf16 %v2173
    %v2366 = vunpack.c.h.s8.bf16 %v2174
    %v2367 = vunpack.c.h.s8.bf16 %v2175
    %v2368 = vunpack.c.h.s8.bf16 %v2176
    %v2369 = vunpack.c.h.s8.bf16 %v2177
    %v2370 = vunpack.c.h.s8.bf16 %v2178
    %v2371 = vunpack.c.h.s8.bf16 %v2179
    %v2372 = vunpack.c.h.s8.bf16 %v2180
    %v2373 = vunpack.c.l.s8.bf16 %v2181
    %v2374 = vunpack.c.l.s8.bf16 %v2182
    %v2375 = vunpack.c.l.s8.bf16 %v2183
    %v2376 = vunpack.c.l.s8.bf16 %v2184
    %v2377 = vunpack.c.l.s8.bf16 %v2185
    %v2378 = vunpack.c.l.s8.bf16 %v2186
    %v2379 = vunpack.c.l.s8.bf16 %v2187
    %v2380 = vunpack.c.l.s8.bf16 %v2188
    %v2381 = vunpack.c.h.s8.bf16 %v2181
    %v2382 = vunpack.c.h.s8.bf16 %v2182
    %v2383 = vunpack.c.h.s8.bf16 %v2183
    %v2384 = vunpack.c.h.s8.bf16 %v2184
    %v2385 = vunpack.c.h.s8.bf16 %v2185
    %v2386 = vunpack.c.h.s8.bf16 %v2186
    %v2387 = vunpack.c.h.s8.bf16 %v2187
    %v2388 = vunpack.c.h.s8.bf16 %v2188
    %v2389 = vunpack.c.l.s8.bf16 %v2189
    %v2390 = vunpack.c.l.s8.bf16 %v2190
    %v2391 = vunpack.c.l.s8.bf16 %v2191
    %v2392 = vunpack.c.l.s8.bf16 %v2192
    %v2393 = vunpack.c.l.s8.bf16 %v2193
    %v2394 = vunpack.c.l.s8.bf16 %v2194
    %v2395 = vunpack.c.l.s8.bf16 %v2195
    %v2396 = vunpack.c.l.s8.bf16 %v2196
    %v2397 = vunpack.c.h.s8.bf16 %v2189
    %v2398 = vunpack.c.h.s8.bf16 %v2190
    %v2399 = vunpack.c.h.s8.bf16 %v2191
    %v2400 = vunpack.c.h.s8.bf16 %v2192
    %v2401 = vunpack.c.h.s8.bf16 %v2193
    %v2402 = vunpack.c.h.s8.bf16 %v2194
    %v2403 = vunpack.c.h.s8.bf16 %v2195
    %v2404 = vunpack.c.h.s8.bf16 %v2196
    %v2405 = vunpack.c.l.s8.bf16 %v2197
    %v2406 = vunpack.c.l.s8.bf16 %v2198
    %v2407 = vunpack.c.l.s8.bf16 %v2199
    %v2408 = vunpack.c.l.s8.bf16 %v2200
    %v2409 = vunpack.c.l.s8.bf16 %v2201
    %v2410 = vunpack.c.l.s8.bf16 %v2202
    %v2411 = vunpack.c.l.s8.bf16 %v2203
    %v2412 = vunpack.c.l.s8.bf16 %v2204
    %v2413 = vunpack.c.h.s8.bf16 %v2197
    %v2414 = vunpack.c.h.s8.bf16 %v2198
    %v2415 = vunpack.c.h.s8.bf16 %v2199
    %v2416 = vunpack.c.h.s8.bf16 %v2200
    %v2417 = vunpack.c.h.s8.bf16 %v2201
    %v2418 = vunpack.c.h.s8.bf16 %v2202
    %v2419 = vunpack.c.h.s8.bf16 %v2203
    %v2420 = vunpack.c.h.s8.bf16 %v2204
    %v2421 = vunpack.c.l.s8.bf16 %v2205
    %v2422 = vunpack.c.l.s8.bf16 %v2206
    %v2423 = vunpack.c.l.s8.bf16 %v2207
    %v2424 = vunpack.c.l.s8.bf16 %v2208
    %v2425 = vunpack.c.l.s8.bf16 %v2209
    %v2426 = vunpack.c.l.s8.bf16 %v2210
    %v2427 = vunpack.c.l.s8.bf16 %v2211
    %v2428 = vunpack.c.l.s8.bf16 %v2212
    %v2429 = vunpack.c.h.s8.bf16 %v2205
    %v2430 = vunpack.c.h.s8.bf16 %v2206
    %v2431 = vunpack.c.h.s8.bf16 %v2207
    %v2432 = vunpack.c.h.s8.bf16 %v2208
    %v2433 = vunpack.c.h.s8.bf16 %v2209
    %v2434 = vunpack.c.h.s8.bf16 %v2210
    %v2435 = vunpack.c.h.s8.bf16 %v2211
    %v2436 = vunpack.c.h.s8.bf16 %v2212
    %v2437 = vunpack.c.l.s8.bf16 %v2213
    %v2438 = vunpack.c.l.s8.bf16 %v2214
    %v2439 = vunpack.c.l.s8.bf16 %v2215
    %v2440 = vunpack.c.l.s8.bf16 %v2216
    %v2441 = vunpack.c.l.s8.bf16 %v2217
    %v2442 = vunpack.c.l.s8.bf16 %v2218
    %v2443 = vunpack.c.l.s8.bf16 %v2219
    %v2444 = vunpack.c.l.s8.bf16 %v2220
    %v2445 = vunpack.c.h.s8.bf16 %v2213
    %v2446 = vunpack.c.h.s8.bf16 %v2214
    %v2447 = vunpack.c.h.s8.bf16 %v2215
    %v2448 = vunpack.c.h.s8.bf16 %v2216
    %v2449 = vunpack.c.h.s8.bf16 %v2217
    %v2450 = vunpack.c.h.s8.bf16 %v2218
    %v2451 = vunpack.c.h.s8.bf16 %v2219
    %v2452 = vunpack.c.h.s8.bf16 %v2220
    %v2453 = vunpack.c.l.s8.bf16 %v2221
    %v2454 = vunpack.c.l.s8.bf16 %v2222
    %v2455 = vunpack.c.l.s8.bf16 %v2223
    %v2456 = vunpack.c.l.s8.bf16 %v2224
    %v2457 = vunpack.c.l.s8.bf16 %v2225
    %v2458 = vunpack.c.l.s8.bf16 %v2226
    %v2459 = vunpack.c.l.s8.bf16 %v2227
    %v2460 = vunpack.c.l.s8.bf16 %v2228
    %v2461 = vunpack.c.h.s8.bf16 %v2221
    %v2462 = vunpack.c.h.s8.bf16 %v2222
    %v2463 = vunpack.c.h.s8.bf16 %v2223
    %v2464 = vunpack.c.h.s8.bf16 %v2224
    %v2465 = vunpack.c.h.s8.bf16 %v2225
    %v2466 = vunpack.c.h.s8.bf16 %v2226
    %v2467 = vunpack.c.h.s8.bf16 %v2227
    %v2468 = vunpack.c.h.s8.bf16 %v2228
    %v2469 = vunpack.c.l.s8.bf16 %v2229
    %v2470 = vunpack.c.l.s8.bf16 %v2230
    %v2471 = vunpack.c.l.s8.bf16 %v2231
    %v2472 = vunpack.c.l.s8.bf16 %v2232
    %v2473 = vunpack.c.l.s8.bf16 %v2233
    %v2474 = vunpack.c.l.s8.bf16 %v2234
    %v2475 = vunpack.c.l.s8.bf16 %v2235
    %v2476 = vunpack.c.l.s8.bf16 %v2236
    %v2477 = vunpack.c.h.s8.bf16 %v2229
    %v2478 = vunpack.c.h.s8.bf16 %v2230
    %v2479 = vunpack.c.h.s8.bf16 %v2231
    %v2480 = vunpack.c.h.s8.bf16 %v2232
    %v2481 = vunpack.c.h.s8.bf16 %v2233
    %v2482 = vunpack.c.h.s8.bf16 %v2234
    %v2483 = vunpack.c.h.s8.bf16 %v2235
    %v2484 = vunpack.c.h.s8.bf16 %v2236
    %v2485 = vunpack.c.l.s8.bf16 %v2237
    %v2486 = vunpack.c.l.s8.bf16 %v2238
    %v2487 = vunpack.c.l.s8.bf16 %v2239
    %v2488 = vunpack.c.l.s8.bf16 %v2240
    %v2489 = vunpack.c.l.s8.bf16 %v2241
    %v2490 = vunpack.c.l.s8.bf16 %v2242
    %v2491 = vunpack.c.l.s8.bf16 %v2243
    %v2492 = vunpack.c.l.s8.bf16 %v2244
    %v2493 = vunpack.c.h.s8.bf16 %v2237
    %v2494 = vunpack.c.h.s8.bf16 %v2238
    %v2495 = vunpack.c.h.s8.bf16 %v2239
    %v2496 = vunpack.c.h.s8.bf16 %v2240
    %v2497 = vunpack.c.h.s8.bf16 %v2241
    %v2498 = vunpack.c.h.s8.bf16 %v2242
    %v2499 = vunpack.c.h.s8.bf16 %v2243
    %v2500 = vunpack.c.h.s8.bf16 %v2244
    %v2501 = vpack.c.bf16 %v2053, %v2049
    %v2502 = vpack.c.bf16 %v2054, %v2050
    %v2503 = vpack.c.bf16 %v2055, %v2051
    %v2504 = vpack.c.bf16 %v2056, %v2052
    %v2505 = vpack.c.bf16 %v2061, %v2057
    %v2506 = vpack.c.bf16 %v2062, %v2058
    %v2507 = vpack.c.bf16 %v2063, %v2059
    %v2508 = vpack.c.bf16 %v2064, %v2060
    %v2509 = vpack.c.bf16 %v2069, %v2065
    %v2510 = vpack.c.bf16 %v2070, %v2066
    %v2511 = vpack.c.bf16 %v2071, %v2067
    %v2512 = vpack.c.bf16 %v2072, %v2068
    %v2513 = vpack.c.bf16 %v2077, %v2073
    %v2514 = vpack.c.bf16 %v2078, %v2074
    %v2515 = vpack.c.bf16 %v2079, %v2075
    %v2516 = vpack.c.bf16 %v2080, %v2076
    %v2517 = vpack.c.bf16 %v2085, %v2081
    %v2518 = vpack.c.bf16 %v2086, %v2082
    %v2519 = vpack.c.bf16 %v2087, %v2083
    %v2520 = vpack.c.bf16 %v2088, %v2084
    %v2521 = vpack.c.bf16 %v2093, %v2089
    %v2522 = vpack.c.bf16 %v2094, %v2090
    %v2523 = vpack.c.bf16 %v2095, %v2091
    %v2524 = vpack.c.bf16 %v2096, %v2092
    %v2525 = vpack.c.bf16 %v2101, %v2097
    %v2526 = vpack.c.bf16 %v2102, %v2098
    %v2527 = vpack.c.bf16 %v2103, %v2099
    %v2528 = vpack.c.bf16 %v2104, %v2100
    %v2529 = vpack.c.bf16 %v2109, %v2105
    %v2530 = vpack.c.bf16 %v2110, %v2106
    %v2531 = vpack.c.bf16 %v2111, %v2107
    %v2532 = vpack.c.bf16 %v2112, %v2108
    %2533 = vmatprep.subr.bf16.mxu0 %v2246
    %2534 = vmatpush1.bf16.msra.mxu0 %v2245
    %2535 = vmatprep.subr.bf16.mxu0 %v2254
    %2536 = vmatpush1.bf16.msra.mxu0 %v2253
    %2537 = vmatprep.subr.bf16.mxu0 %v2262
    %2538 = vmatpush1.bf16.msra.mxu0 %v2261
    %2539 = vmatprep.subr.bf16.mxu0 %v2270
    %2540 = vmatpush1.bf16.msra.mxu0 %v2269
    %2541 = vmatprep.subr.bf16.mxu0 %v2278
    %2542 = vmatpush1.bf16.msra.mxu0 %v2277
    %2543 = vmatprep.subr.bf16.mxu0 %v2286
    %2544 = vmatpush1.bf16.msra.mxu0 %v2285
    %2545 = vmatprep.subr.bf16.mxu0 %v2294
    %2546 = vmatpush1.bf16.msra.mxu0 %v2293
    %2547 = vmatprep.subr.bf16.mxu0 %v2302
    %2548 = vmatpush1.bf16.msra.mxu0 %v2301
    %2549 = vmatprep.subr.bf16.mxu0 %v2310
    %2550 = vmatpush1.bf16.msra.mxu0 %v2309
    %2551 = vmatprep.subr.bf16.mxu0 %v2318
    %2552 = vmatpush1.bf16.msra.mxu0 %v2317
    %2553 = vmatprep.subr.bf16.mxu0 %v2326
    %2554 = vmatpush1.bf16.msra.mxu0 %v2325
    %2555 = vmatprep.subr.bf16.mxu0 %v2334
    %2556 = vmatpush1.bf16.msra.mxu0 %v2333
    %2557 = vmatprep.subr.bf16.mxu0 %v2342
    %2558 = vmatpush1.bf16.msra.mxu0 %v2341
    %2559 = vmatprep.subr.bf16.mxu0 %v2350
    %2560 = vmatpush1.bf16.msra.mxu0 %v2349
    %2561 = vmatprep.subr.bf16.mxu0 %v2358
    %2562 = vmatpush1.bf16.msra.mxu0 %v2357
    %2563 = vmatprep.subr.bf16.mxu0 %v2366
    %2564 = vmatpush1.bf16.msra.mxu0 %v2365
    %2565 = vmatprep.mubr.bf16.mxu0 %v2502
    %2566 = vmatmul.mubr.bf16.gmra.mrb[0].mxu0 %v2501
    %v2567 = vpop.f32.mrb[0].mxu0
    %v2568 = vadd.f32 0.0, %v2567
    %v2569 = vpop.f32.mrb[0].mxu0
    %v2570 = vadd.f32 0.0, %v2569
    %v2571 = vpop.f32.mrb[0].mxu0
    %v2572 = vadd.f32 0.0, %v2571
    %v2573 = vpop.f32.mrb[0].mxu0
    %v2574 = vadd.f32 0.0, %v2573
    %2575 = vmatprep.mubr.bf16.mxu0 %v2506
    %2576 = vmatmul.mubr.bf16.gmra.mrb[0].mxu0 %v2505
    %v2577 = vpop.f32.mrb[0].mxu0
    %v2578 = vadd.f32 0.0, %v2577
    %v2579 = vpop.f32.mrb[0].mxu0
    %v2580 = vadd.f32 0.0, %v2579
    %v2581 = vpop.f32.mrb[0].mxu0
    %v2582 = vadd.f32 0.0, %v2581
    %v2583 = vpop.f32.mrb[0].mxu0
    %v2584 = vadd.f32 0.0, %v2583
    %2585 = vmatprep.mubr.bf16.mxu0 %v2510
    %2586 = vmatmul.mubr.bf16.gmra.mrb[0].mxu0 %v2509
    %v2587 = vpop.f32.mrb[0].mxu0
    %v2588 = vadd.f32 0.0, %v2587
    %v2589 = vpop.f32.mrb[0].mxu0
    %v2590 = vadd.f32 0.0, %v2589
    %v2591 = vpop.f32.mrb[0].mxu0
    %v2592 = vadd.f32 0.0, %v2591
    %v2593 = vpop.f32.mrb[0].mxu0
    %v2594 = vadd.f32 0.0, %v2593
    %2595 = vmatprep.mubr.bf16.mxu0 %v2514
    %2596 = vmatmul.mubr.bf16.gmra.mrb[0].mxu0 %v2513
    %v2597 = vpop.f32.mrb[0].mxu0
    %v2598 = vadd.f32 0.0, %v2597
    %v2599 = vpop.f32.mrb[0].mxu0
    %v2600 = vadd.f32 0.0, %v2599
    %v2601 = vpop.f32.mrb[0].mxu0
    %v2602 = vadd.f32 0.0, %v2601
    %v2603 = vpop.f32.mrb[0].mxu0
    %v2604 = vadd.f32 0.0, %v2603
    %2605 = vmatprep.mubr.bf16.mxu0 %v2518
    %2606 = vmatmul.mubr.bf16.gmra.mrb[0].mxu0 %v2517
    %v2607 = vpop.f32.mrb[0].mxu0
    %v2608 = vadd.f32 0.0, %v2607
    %v2609 = vpop.f32.mrb[0].mxu0
    %v2610 = vadd.f32 0.0, %v2609
    %v2611 = vpop.f32.mrb[0].mxu0
    %v2612 = vadd.f32 0.0, %v2611
    %v2613 = vpop.f32.mrb[0].mxu0
    %v2614 = vadd.f32 0.0, %v2613
    %2615 = vmatprep.mubr.bf16.mxu0 %v2522
    %2616 = vmatmul.mubr.bf16.gmra.mrb[0].mxu0 %v2521
    %v2617 = vpop.f32.mrb[0].mxu0
    %v2618 = vadd.f32 0.0, %v2617
    %v2619 = vpop.f32.mrb[0].mxu0
    %v2620 = vadd.f32 0.0, %v2619
    %v2621 = vpop.f32.mrb[0].mxu0
    %v2622 = vadd.f32 0.0, %v2621
    %v2623 = vpop.f32.mrb[0].mxu0
    %v2624 = vadd.f32 0.0, %v2623
    %2625 = vmatprep.mubr.bf16.mxu0 %v2526
    %2626 = vmatmul.mubr.bf16.gmra.mrb[0].mxu0 %v2525
    %v2627 = vpop.f32.mrb[0].mxu0
    %v2628 = vadd.f32 0.0, %v2627
    %v2629 = vpop.f32.mrb[0].mxu0
    %v2630 = vadd.f32 0.0, %v2629
    %v2631 = vpop.f32.mrb[0].mxu0
    %v2632 = vadd.f32 0.0, %v2631
    %v2633 = vpop.f32.mrb[0].mxu0
    %v2634 = vadd.f32 0.0, %v2633
    %2635 = vmatprep.mubr.bf16.mxu0 %v2530
    %2636 = vmatmul.mubr.bf16.gmra.mrb[0].mxu0 %v2529
    %v2637 = vpop.f32.mrb[0].mxu0
    %v2638 = vadd.f32 0.0, %v2637
    %v2639 = vpop.f32.mrb[0].mxu0
    %v2640 = vadd.f32 0.0, %v2639
    %v2641 = vpop.f32.mrb[0].mxu0
    %v2642 = vadd.f32 0.0, %v2641
    %v2643 = vpop.f32.mrb[0].mxu0
    %v2644 = vadd.f32 0.0, %v2643
    %2645 = vdwg.mxu0
    %2646 = vmatprep.subr.bf16.mxu0 %v2374
    %2647 = vmatpush1.bf16.msra.mxu0 %v2373
    %2648 = vmatprep.subr.bf16.mxu0 %v2382
    %2649 = vmatpush1.bf16.msra.mxu0 %v2381
    %2650 = vmatprep.subr.bf16.mxu0 %v2390
    %2651 = vmatpush1.bf16.msra.mxu0 %v2389
    %2652 = vmatprep.subr.bf16.mxu0 %v2398
    %2653 = vmatpush1.bf16.msra.mxu0 %v2397
    %2654 = vmatprep.subr.bf16.mxu0 %v2406
    %2655 = vmatpush1.bf16.msra.mxu0 %v2405
    %2656 = vmatprep.subr.bf16.mxu0 %v2414
    %2657 = vmatpush1.bf16.msra.mxu0 %v2413
    %2658 = vmatprep.subr.bf16.mxu0 %v2422
    %2659 = vmatpush1.bf16.msra.mxu0 %v2421
    %2660 = vmatprep.subr.bf16.mxu0 %v2430
    %2661 = vmatpush1.bf16.msra.mxu0 %v2429
    %2662 = vmatprep.subr.bf16.mxu0 %v2438
    %2663 = vmatpush1.bf16.msra.mxu0 %v2437
    %2664 = vmatprep.subr.bf16.mxu0 %v2446
    %2665 = vmatpush1.bf16.msra.mxu0 %v2445
    %2666 = vmatprep.subr.bf16.mxu0 %v2454
    %2667 = vmatpush1.bf16.msra.mxu0 %v2453
    %2668 = vmatprep.subr.bf16.mxu0 %v2462
    %2669 = vmatpush1.bf16.msra.mxu0 %v2461
    %2670 = vmatprep.subr.bf16.mxu0 %v2470
    %2671 = vmatpush1.bf16.msra.mxu0 %v2469
    %2672 = vmatprep.subr.bf16.mxu0 %v2478
    %2673 = vmatpush1.bf16.msra.mxu0 %v2477
    %2674 = vmatprep.subr.bf16.mxu0 %v2486
    %2675 = vmatpush1.bf16.msra.mxu0 %v2485
    %2676 = vmatprep.subr.bf16.mxu0 %v2494
    %2677 = vmatpush1.bf16.msra.mxu0 %v2493
    %2678 = vmatprep.mubr.bf16.mxu0 %v2504
    %2679 = vmatmul.mubr.bf16.gmra.mrb[0].mxu0 %v2503
    %v2680 = vpop.f32.mrb[0].mxu0
    %v2681 = vadd.f32 %v2568, %v2680
    %v2682 = vpop.f32.mrb[0].mxu0
    %v2683 = vadd.f32 %v2570, %v2682
    %v2684 = vpop.f32.mrb[0].mxu0
    %v2685 = vadd.f32 %v2572, %v2684
    %v2686 = vpop.f32.mrb[0].mxu0
    %v2687 = vadd.f32 %v2574, %v2686
    %2688 = vmatprep.mubr.bf16.mxu0 %v2508
    %2689 = vmatmul.mubr.bf16.gmra.mrb[0].mxu0 %v2507
    %v2690 = vpop.f32.mrb[0].mxu0
    %v2691 = vadd.f32 %v2578, %v2690
    %v2692 = vpop.f32.mrb[0].mxu0
    %v2693 = vadd.f32 %v2580, %v2692
    %v2694 = vpop.f32.mrb[0].mxu0
    %v2695 = vadd.f32 %v2582, %v2694
    %v2696 = vpop.f32.mrb[0].mxu0
    %v2697 = vadd.f32 %v2584, %v2696
    %2698 = vmatprep.mubr.bf16.mxu0 %v2512
    %2699 = vmatmul.mubr.bf16.gmra.mrb[0].mxu0 %v2511
    %v2700 = vpop.f32.mrb[0].mxu0
    %v2701 = vadd.f32 %v2588, %v2700
    %v2702 = vpop.f32.mrb[0].mxu0
    %v2703 = vadd.f32 %v2590, %v2702
    %v2704 = vpop.f32.mrb[0].mxu0
    %v2705 = vadd.f32 %v2592, %v2704
    %v2706 = vpop.f32.mrb[0].mxu0
    %v2707 = vadd.f32 %v2594, %v2706
    %2708 = vmatprep.mubr.bf16.mxu0 %v2516
    %2709 = vmatmul.mubr.bf16.gmra.mrb[0].mxu0 %v2515
    %v2710 = vpop.f32.mrb[0].mxu0
    %v2711 = vadd.f32 %v2598, %v2710
    %v2712 = vpop.f32.mrb[0].mxu0
    %v2713 = vadd.f32 %v2600, %v2712
    %v2714 = vpop.f32.mrb[0].mxu0
    %v2715 = vadd.f32 %v2602, %v2714
    %v2716 = vpop.f32.mrb[0].mxu0
    %v2717 = vadd.f32 %v2604, %v2716
    %2718 = vmatprep.mubr.bf16.mxu0 %v2520
    %2719 = vmatmul.mubr.bf16.gmra.mrb[0].mxu0 %v2519
    %v2720 = vpop.f32.mrb[0].mxu0
    %v2721 = vadd.f32 %v2608, %v2720
    %v2722 = vpop.f32.mrb[0].mxu0
    %v2723 = vadd.f32 %v2610, %v2722
    %v2724 = vpop.f32.mrb[0].mxu0
    %v2725 = vadd.f32 %v2612, %v2724
    %v2726 = vpop.f32.mrb[0].mxu0
    %v2727 = vadd.f32 %v2614, %v2726
    %2728 = vmatprep.mubr.bf16.mxu0 %v2524
    %2729 = vmatmul.mubr.bf16.gmra.mrb[0].mxu0 %v2523
    %v2730 = vpop.f32.mrb[0].mxu0
    %v2731 = vadd.f32 %v2618, %v2730
    %v2732 = vpop.f32.mrb[0].mxu0
    %v2733 = vadd.f32 %v2620, %v2732
    %v2734 = vpop.f32.mrb[0].mxu0
    %v2735 = vadd.f32 %v2622, %v2734
    %v2736 = vpop.f32.mrb[0].mxu0
    %v2737 = vadd.f32 %v2624, %v2736
    %2738 = vmatprep.mubr.bf16.mxu0 %v2528
    %2739 = vmatmul.mubr.bf16.gmra.mrb[0].mxu0 %v2527
    %v2740 = vpop.f32.mrb[0].mxu0
    %v2741 = vadd.f32 %v2628, %v2740
    %v2742 = vpop.f32.mrb[0].mxu0
    %v2743 = vadd.f32 %v2630, %v2742
    %v2744 = vpop.f32.mrb[0].mxu0
    %v2745 = vadd.f32 %v2632, %v2744
    %v2746 = vpop.f32.mrb[0].mxu0
    %v2747 = vadd.f32 %v2634, %v2746
    %2748 = vmatprep.mubr.bf16.mxu0 %v2532
    %2749 = vmatmul.mubr.bf16.gmra.mrb[0].mxu0 %v2531
    %v2750 = vpop.f32.mrb[0].mxu0
    %v2751 = vadd.f32 %v2638, %v2750
    %v2752 = vpop.f32.mrb[0].mxu0
    %v2753 = vadd.f32 %v2640, %v2752
    %v2754 = vpop.f32.mrb[0].mxu0
    %v2755 = vadd.f32 %v2642, %v2754
    %v2756 = vpop.f32.mrb[0].mxu0
    %v2757 = vadd.f32 %v2644, %v2756
    %2758 = vdwg.mxu0
    %2759 = vmatprep.subr.bf16.mxu0 %v2248
    %2760 = vmatpush1.bf16.msra.mxu0 %v2247
    %2761 = vmatprep.subr.bf16.mxu0 %v2256
    %2762 = vmatpush1.bf16.msra.mxu0 %v2255
    %2763 = vmatprep.subr.bf16.mxu0 %v2264
    %2764 = vmatpush1.bf16.msra.mxu0 %v2263
    %2765 = vmatprep.subr.bf16.mxu0 %v2272
    %2766 = vmatpush1.bf16.msra.mxu0 %v2271
    %2767 = vmatprep.subr.bf16.mxu0 %v2280
    %2768 = vmatpush1.bf16.msra.mxu0 %v2279
    %2769 = vmatprep.subr.bf16.mxu0 %v2288
    %2770 = vmatpush1.bf16.msra.mxu0 %v2287
    %2771 = vmatprep.subr.bf16.mxu0 %v2296
    %2772 = vmatpush1.bf16.msra.mxu0 %v2295
    %2773 = vmatprep.subr.bf16.mxu0 %v2304
    %2774 = vmatpush1.bf16.msra.mxu0 %v2303
    %2775 = vmatprep.subr.bf16.mxu0 %v2312
    %2776 = vmatpush1.bf16.msra.mxu0 %v2311
    %2777 = vmatprep.subr.bf16.mxu0 %v2320
    %2778 = vmatpush1.bf16.msra.mxu0 %v2319
    %2779 = vmatprep.subr.bf16.mxu0 %v2328
    %2780 = vmatpush1.bf16.msra.mxu0 %v2327
    %2781 = vmatprep.subr.bf16.mxu0 %v2336
    %2782 = vmatpush1.bf16.msra.mxu0 %v2335
    %2783 = vmatprep.subr.bf16.mxu0 %v2344
    %2784 = vmatpush1.bf16.msra.mxu0 %v2343
    %2785 = vmatprep.subr.bf16.mxu0 %v2352
    %2786 = vmatpush1.bf16.msra.mxu0 %v2351
    %2787 = vmatprep.subr.bf16.mxu0 %v2360
    %2788 = vmatpush1.bf16.msra.mxu0 %v2359
    %2789 = vmatprep.subr.bf16.mxu0 %v2368
    %2790 = vmatpush1.bf16.msra.mxu0 %v2367
    %2791 = vmatprep.mubr.bf16.mxu0 %v2502
    %2792 = vmatmul.mubr.bf16.gmra.mrb[0].mxu0 %v2501
    %v2793 = vpop.f32.mrb[0].mxu0
    %v2794 = vadd.f32 0.0, %v2793
    %v2795 = vpop.f32.mrb[0].mxu0
    %v2796 = vadd.f32 0.0, %v2795
    %v2797 = vpop.f32.mrb[0].mxu0
    %v2798 = vadd.f32 0.0, %v2797
    %v2799 = vpop.f32.mrb[0].mxu0
    %v2800 = vadd.f32 0.0, %v2799
    %2801 = vmatprep.mubr.bf16.mxu0 %v2506
    %2802 = vmatmul.mubr.bf16.gmra.mrb[0].mxu0 %v2505
    %v2803 = vpop.f32.mrb[0].mxu0
    %v2804 = vadd.f32 0.0, %v2803
    %v2805 = vpop.f32.mrb[0].mxu0
    %v2806 = vadd.f32 0.0, %v2805
    %v2807 = vpop.f32.mrb[0].mxu0
    %v2808 = vadd.f32 0.0, %v2807
    %v2809 = vpop.f32.mrb[0].mxu0
    %v2810 = vadd.f32 0.0, %v2809
    %2811 = vmatprep.mubr.bf16.mxu0 %v2510
    %2812 = vmatmul.mubr.bf16.gmra.mrb[0].mxu0 %v2509
    %v2813 = vpop.f32.mrb[0].mxu0
    %v2814 = vadd.f32 0.0, %v2813
    %v2815 = vpop.f32.mrb[0].mxu0
    %v2816 = vadd.f32 0.0, %v2815
    %v2817 = vpop.f32.mrb[0].mxu0
    %v2818 = vadd.f32 0.0, %v2817
    %v2819 = vpop.f32.mrb[0].mxu0
    %v2820 = vadd.f32 0.0, %v2819
    %2821 = vmatprep.mubr.bf16.mxu0 %v2514
    %2822 = vmatmul.mubr.bf16.gmra.mrb[0].mxu0 %v2513
    %v2823 = vpop.f32.mrb[0].mxu0
    %v2824 = vadd.f32 0.0, %v2823
    %v2825 = vpop.f32.mrb[0].mxu0
    %v2826 = vadd.f32 0.0, %v2825
    %v2827 = vpop.f32.mrb[0].mxu0
    %v2828 = vadd.f32 0.0, %v2827
    %v2829 = vpop.f32.mrb[0].mxu0
    %v2830 = vadd.f32 0.0, %v2829
    %2831 = vmatprep.mubr.bf16.mxu0 %v2518
    %2832 = vmatmul.mubr.bf16.gmra.mrb[0].mxu0 %v2517
    %v2833 = vpop.f32.mrb[0].mxu0
    %v2834 = vadd.f32 0.0, %v2833
    %v2835 = vpop.f32.mrb[0].mxu0
    %v2836 = vadd.f32 0.0, %v2835
    %v2837 = vpop.f32.mrb[0].mxu0
    %v2838 = vadd.f32 0.0, %v2837
    %v2839 = vpop.f32.mrb[0].mxu0
    %v2840 = vadd.f32 0.0, %v2839
    %2841 = vmatprep.mubr.bf16.mxu0 %v2522
    %2842 = vmatmul.mubr.bf16.gmra.mrb[0].mxu0 %v2521
    %v2843 = vpop.f32.mrb[0].mxu0
    %v2844 = vadd.f32 0.0, %v2843
    %v2845 = vpop.f32.mrb[0].mxu0
    %v2846 = vadd.f32 0.0, %v2845
    %v2847 = vpop.f32.mrb[0].mxu0
    %v2848 = vadd.f32 0.0, %v2847
    %v2849 = vpop.f32.mrb[0].mxu0
    %v2850 = vadd.f32 0.0, %v2849
    %2851 = vmatprep.mubr.bf16.mxu0 %v2526
    %2852 = vmatmul.mubr.bf16.gmra.mrb[0].mxu0 %v2525
    %v2853 = vpop.f32.mrb[0].mxu0
    %v2854 = vadd.f32 0.0, %v2853
    %v2855 = vpop.f32.mrb[0].mxu0
    %v2856 = vadd.f32 0.0, %v2855
    %v2857 = vpop.f32.mrb[0].mxu0
    %v2858 = vadd.f32 0.0, %v2857
    %v2859 = vpop.f32.mrb[0].mxu0
    %v2860 = vadd.f32 0.0, %v2859
    %2861 = vmatprep.mubr.bf16.mxu0 %v2530
    %2862 = vmatmul.mubr.bf16.gmra.mrb[0].mxu0 %v2529
    %v2863 = vpop.f32.mrb[0].mxu0
    %v2864 = vadd.f32 0.0, %v2863
    %v2865 = vpop.f32.mrb[0].mxu0
    %v2866 = vadd.f32 0.0, %v2865
    %v2867 = vpop.f32.mrb[0].mxu0
    %v2868 = vadd.f32 0.0, %v2867
    %v2869 = vpop.f32.mrb[0].mxu0
    %v2870 = vadd.f32 0.0, %v2869
    %2871 = vdwg.mxu0
    %2872 = vmatprep.subr.bf16.mxu0 %v2376
    %2873 = vmatpush1.bf16.msra.mxu0 %v2375
    %2874 = vmatprep.subr.bf16.mxu0 %v2384
    %2875 = vmatpush1.bf16.msra.mxu0 %v2383
    %2876 = vmatprep.subr.bf16.mxu0 %v2392
    %2877 = vmatpush1.bf16.msra.mxu0 %v2391
    %2878 = vmatprep.subr.bf16.mxu0 %v2400
    %2879 = vmatpush1.bf16.msra.mxu0 %v2399
    %2880 = vmatprep.subr.bf16.mxu0 %v2408
    %2881 = vmatpush1.bf16.msra.mxu0 %v2407
    %2882 = vmatprep.subr.bf16.mxu0 %v2416
    %2883 = vmatpush1.bf16.msra.mxu0 %v2415
    %2884 = vmatprep.subr.bf16.mxu0 %v2424
    %2885 = vmatpush1.bf16.msra.mxu0 %v2423
    %2886 = vmatprep.subr.bf16.mxu0 %v2432
    %2887 = vmatpush1.bf16.msra.mxu0 %v2431
    %2888 = vmatprep.subr.bf16.mxu0 %v2440
    %2889 = vmatpush1.bf16.msra.mxu0 %v2439
    %2890 = vmatprep.subr.bf16.mxu0 %v2448
    %2891 = vmatpush1.bf16.msra.mxu0 %v2447
    %2892 = vmatprep.subr.bf16.mxu0 %v2456
    %2893 = vmatpush1.bf16.msra.mxu0 %v2455
    %2894 = vmatprep.subr.bf16.mxu0 %v2464
    %2895 = vmatpush1.bf16.msra.mxu0 %v2463
    %2896 = vmatprep.subr.bf16.mxu0 %v2472
    %2897 = vmatpush1.bf16.msra.mxu0 %v2471
    %2898 = vmatprep.subr.bf16.mxu0 %v2480
    %2899 = vmatpush1.bf16.msra.mxu0 %v2479
    %2900 = vmatprep.subr.bf16.mxu0 %v2488
    %2901 = vmatpush1.bf16.msra.mxu0 %v2487
    %2902 = vmatprep.subr.bf16.mxu0 %v2496
    %2903 = vmatpush1.bf16.msra.mxu0 %v2495
    %2904 = vmatprep.mubr.bf16.mxu0 %v2504
    %2905 = vmatmul.mubr.bf16.gmra.mrb[0].mxu0 %v2503
    %v2906 = vpop.f32.mrb[0].mxu0
    %v2907 = vadd.f32 %v2794, %v2906
    %v2908 = vpop.f32.mrb[0].mxu0
    %v2909 = vadd.f32 %v2796, %v2908
    %v2910 = vpop.f32.mrb[0].mxu0
    %v2911 = vadd.f32 %v2798, %v2910
    %v2912 = vpop.f32.mrb[0].mxu0
    %v2913 = vadd.f32 %v2800, %v2912
    %2914 = vmatprep.mubr.bf16.mxu0 %v2508
    %2915 = vmatmul.mubr.bf16.gmra.mrb[0].mxu0 %v2507
    %v2916 = vpop.f32.mrb[0].mxu0
    %v2917 = vadd.f32 %v2804, %v2916
    %v2918 = vpop.f32.mrb[0].mxu0
    %v2919 = vadd.f32 %v2806, %v2918
    %v2920 = vpop.f32.mrb[0].mxu0
    %v2921 = vadd.f32 %v2808, %v2920
    %v2922 = vpop.f32.mrb[0].mxu0
    %v2923 = vadd.f32 %v2810, %v2922
    %2924 = vmatprep.mubr.bf16.mxu0 %v2512
    %2925 = vmatmul.mubr.bf16.gmra.mrb[0].mxu0 %v2511
    %v2926 = vpop.f32.mrb[0].mxu0
    %v2927 = vadd.f32 %v2814, %v2926
    %v2928 = vpop.f32.mrb[0].mxu0
    %v2929 = vadd.f32 %v2816, %v2928
    %v2930 = vpop.f32.mrb[0].mxu0
    %v2931 = vadd.f32 %v2818, %v2930
    %v2932 = vpop.f32.mrb[0].mxu0
    %v2933 = vadd.f32 %v2820, %v2932
    %2934 = vmatprep.mubr.bf16.mxu0 %v2516
    %2935 = vmatmul.mubr.bf16.gmra.mrb[0].mxu0 %v2515
    %v2936 = vpop.f32.mrb[0].mxu0
    %v2937 = vadd.f32 %v2824, %v2936
    %v2938 = vpop.f32.mrb[0].mxu0
    %v2939 = vadd.f32 %v2826, %v2938
    %v2940 = vpop.f32.mrb[0].mxu0
    %v2941 = vadd.f32 %v2828, %v2940
    %v2942 = vpop.f32.mrb[0].mxu0
    %v2943 = vadd.f32 %v2830, %v2942
    %2944 = vmatprep.mubr.bf16.mxu0 %v2520
    %2945 = vmatmul.mubr.bf16.gmra.mrb[0].mxu0 %v2519
    %v2946 = vpop.f32.mrb[0].mxu0
    %v2947 = vadd.f32 %v2834, %v2946
    %v2948 = vpop.f32.mrb[0].mxu0
    %v2949 = vadd.f32 %v2836, %v2948
    %v2950 = vpop.f32.mrb[0].mxu0
    %v2951 = vadd.f32 %v2838, %v2950
    %v2952 = vpop.f32.mrb[0].mxu0
    %v2953 = vadd.f32 %v2840, %v2952
    %2954 = vmatprep.mubr.bf16.mxu0 %v2524
    %2955 = vmatmul.mubr.bf16.gmra.mrb[0].mxu0 %v2523
    %v2956 = vpop.f32.mrb[0].mxu0
    %v2957 = vadd.f32 %v2844, %v2956
    %v2958 = vpop.f32.mrb[0].mxu0
    %v2959 = vadd.f32 %v2846, %v2958
    %v2960 = vpop.f32.mrb[0].mxu0
    %v2961 = vadd.f32 %v2848, %v2960
    %v2962 = vpop.f32.mrb[0].mxu0
    %v2963 = vadd.f32 %v2850, %v2962
    %2964 = vmatprep.mubr.bf16.mxu0 %v2528
    %2965 = vmatmul.mubr.bf16.gmra.mrb[0].mxu0 %v2527
    %v2966 = vpop.f32.mrb[0].mxu0
    %v2967 = vadd.f32 %v2854, %v2966
    %v2968 = vpop.f32.mrb[0].mxu0
    %v2969 = vadd.f32 %v2856, %v2968
    %v2970 = vpop.f32.mrb[0].mxu0
    %v2971 = vadd.f32 %v2858, %v2970
    %v2972 = vpop.f32.mrb[0].mxu0
    %v2973 = vadd.f32 %v2860, %v2972
    %2974 = vmatprep.mubr.bf16.mxu0 %v2532
    %2975 = vmatmul.mubr.bf16.gmra.mrb[0].mxu0 %v2531
    %v2976 = vpop.f32.mrb[0].mxu0
    %v2977 = vadd.f32 %v2864, %v2976
    %v2978 = vpop.f32.mrb[0].mxu0
    %v2979 = vadd.f32 %v2866, %v2978
    %v2980 = vpop.f32.mrb[0].mxu0
    %v2981 = vadd.f32 %v2868, %v2980
    %v2982 = vpop.f32.mrb[0].mxu0
    %v2983 = vadd.f32 %v2870, %v2982
    %2984 = vdwg.mxu0
    %2985 = vmatprep.subr.bf16.mxu0 %v2250
    %2986 = vmatpush1.bf16.msra.mxu0 %v2249
    %2987 = vmatprep.subr.bf16.mxu0 %v2258
    %2988 = vmatpush1.bf16.msra.mxu0 %v2257
    %2989 = vmatprep.subr.bf16.mxu0 %v2266
    %2990 = vmatpush1.bf16.msra.mxu0 %v2265
    %2991 = vmatprep.subr.bf16.mxu0 %v2274
    %2992 = vmatpush1.bf16.msra.mxu0 %v2273
    %2993 = vmatprep.subr.bf16.mxu0 %v2282
    %2994 = vmatpush1.bf16.msra.mxu0 %v2281
    %2995 = vmatprep.subr.bf16.mxu0 %v2290
    %2996 = vmatpush1.bf16.msra.mxu0 %v2289
    %2997 = vmatprep.subr.bf16.mxu0 %v2298
    %2998 = vmatpush1.bf16.msra.mxu0 %v2297
    %2999 = vmatprep.subr.bf16.mxu0 %v2306
    %3000 = vmatpush1.bf16.msra.mxu0 %v2305
    %3001 = vmatprep.subr.bf16.mxu0 %v2314
    %3002 = vmatpush1.bf16.msra.mxu0 %v2313
    %3003 = vmatprep.subr.bf16.mxu0 %v2322
    %3004 = vmatpush1.bf16.msra.mxu0 %v2321
    %3005 = vmatprep.subr.bf16.mxu0 %v2330
    %3006 = vmatpush1.bf16.msra.mxu0 %v2329
    %3007 = vmatprep.subr.bf16.mxu0 %v2338
    %3008 = vmatpush1.bf16.msra.mxu0 %v2337
    %3009 = vmatprep.subr.bf16.mxu0 %v2346
    %3010 = vmatpush1.bf16.msra.mxu0 %v2345
    %3011 = vmatprep.subr.bf16.mxu0 %v2354
    %3012 = vmatpush1.bf16.msra.mxu0 %v2353
    %3013 = vmatprep.subr.bf16.mxu0 %v2362
    %3014 = vmatpush1.bf16.msra.mxu0 %v2361
    %3015 = vmatprep.subr.bf16.mxu0 %v2370
    %3016 = vmatpush1.bf16.msra.mxu0 %v2369
    %3017 = vmatprep.mubr.bf16.mxu0 %v2502
    %3018 = vmatmul.mubr.bf16.gmra.mrb[0].mxu0 %v2501
    %v3019 = vpop.f32.mrb[0].mxu0
    %v3020 = vadd.f32 0.0, %v3019
    %v3021 = vpop.f32.mrb[0].mxu0
    %v3022 = vadd.f32 0.0, %v3021
    %v3023 = vpop.f32.mrb[0].mxu0
    %v3024 = vadd.f32 0.0, %v3023
    %v3025 = vpop.f32.mrb[0].mxu0
    %v3026 = vadd.f32 0.0, %v3025
    %3027 = vmatprep.mubr.bf16.mxu0 %v2506
    %3028 = vmatmul.mubr.bf16.gmra.mrb[0].mxu0 %v2505
    %v3029 = vpop.f32.mrb[0].mxu0
    %v3030 = vadd.f32 0.0, %v3029
    %v3031 = vpop.f32.mrb[0].mxu0
    %v3032 = vadd.f32 0.0, %v3031
    %v3033 = vpop.f32.mrb[0].mxu0
    %v3034 = vadd.f32 0.0, %v3033
    %v3035 = vpop.f32.mrb[0].mxu0
    %v3036 = vadd.f32 0.0, %v3035
    %3037 = vmatprep.mubr.bf16.mxu0 %v2510
    %3038 = vmatmul.mubr.bf16.gmra.mrb[0].mxu0 %v2509
    %v3039 = vpop.f32.mrb[0].mxu0
    %v3040 = vadd.f32 0.0, %v3039
    %v3041 = vpop.f32.mrb[0].mxu0
    %v3042 = vadd.f32 0.0, %v3041
    %v3043 = vpop.f32.mrb[0].mxu0
    %v3044 = vadd.f32 0.0, %v3043
    %v3045 = vpop.f32.mrb[0].mxu0
    %v3046 = vadd.f32 0.0, %v3045
    %3047 = vmatprep.mubr.bf16.mxu0 %v2514
    %3048 = vmatmul.mubr.bf16.gmra.mrb[0].mxu0 %v2513
    %v3049 = vpop.f32.mrb[0].mxu0
    %v3050 = vadd.f32 0.0, %v3049
    %v3051 = vpop.f32.mrb[0].mxu0
    %v3052 = vadd.f32 0.0, %v3051
    %v3053 = vpop.f32.mrb[0].mxu0
    %v3054 = vadd.f32 0.0, %v3053
    %v3055 = vpop.f32.mrb[0].mxu0
    %v3056 = vadd.f32 0.0, %v3055
    %3057 = vmatprep.mubr.bf16.mxu0 %v2518
    %3058 = vmatmul.mubr.bf16.gmra.mrb[0].mxu0 %v2517
    %v3059 = vpop.f32.mrb[0].mxu0
    %v3060 = vadd.f32 0.0, %v3059
    %v3061 = vpop.f32.mrb[0].mxu0
    %v3062 = vadd.f32 0.0, %v3061
    %v3063 = vpop.f32.mrb[0].mxu0
    %v3064 = vadd.f32 0.0, %v3063
    %v3065 = vpop.f32.mrb[0].mxu0
    %v3066 = vadd.f32 0.0, %v3065
    %3067 = vmatprep.mubr.bf16.mxu0 %v2522
    %3068 = vmatmul.mubr.bf16.gmra.mrb[0].mxu0 %v2521
    %v3069 = vpop.f32.mrb[0].mxu0
    %v3070 = vadd.f32 0.0, %v3069
    %v3071 = vpop.f32.mrb[0].mxu0
    %v3072 = vadd.f32 0.0, %v3071
    %v3073 = vpop.f32.mrb[0].mxu0
    %v3074 = vadd.f32 0.0, %v3073
    %v3075 = vpop.f32.mrb[0].mxu0
    %v3076 = vadd.f32 0.0, %v3075
    %3077 = vmatprep.mubr.bf16.mxu0 %v2526
    %3078 = vmatmul.mubr.bf16.gmra.mrb[0].mxu0 %v2525
    %v3079 = vpop.f32.mrb[0].mxu0
    %v3080 = vadd.f32 0.0, %v3079
    %v3081 = vpop.f32.mrb[0].mxu0
    %v3082 = vadd.f32 0.0, %v3081
    %v3083 = vpop.f32.mrb[0].mxu0
    %v3084 = vadd.f32 0.0, %v3083
    %v3085 = vpop.f32.mrb[0].mxu0
    %v3086 = vadd.f32 0.0, %v3085
    %3087 = vmatprep.mubr.bf16.mxu0 %v2530
    %3088 = vmatmul.mubr.bf16.gmra.mrb[0].mxu0 %v2529
    %v3089 = vpop.f32.mrb[0].mxu0
    %v3090 = vadd.f32 0.0, %v3089
    %v3091 = vpop.f32.mrb[0].mxu0
    %v3092 = vadd.f32 0.0, %v3091
    %v3093 = vpop.f32.mrb[0].mxu0
    %v3094 = vadd.f32 0.0, %v3093
    %v3095 = vpop.f32.mrb[0].mxu0
    %v3096 = vadd.f32 0.0, %v3095
    %3097 = vdwg.mxu0
    %3098 = vmatprep.subr.bf16.mxu0 %v2378
    %3099 = vmatpush1.bf16.msra.mxu0 %v2377
    %3100 = vmatprep.subr.bf16.mxu0 %v2386
    %3101 = vmatpush1.bf16.msra.mxu0 %v2385
    %3102 = vmatprep.subr.bf16.mxu0 %v2394
    %3103 = vmatpush1.bf16.msra.mxu0 %v2393
    %3104 = vmatprep.subr.bf16.mxu0 %v2402
    %3105 = vmatpush1.bf16.msra.mxu0 %v2401
    %3106 = vmatprep.subr.bf16.mxu0 %v2410
    %3107 = vmatpush1.bf16.msra.mxu0 %v2409
    %3108 = vmatprep.subr.bf16.mxu0 %v2418
    %3109 = vmatpush1.bf16.msra.mxu0 %v2417
    %3110 = vmatprep.subr.bf16.mxu0 %v2426
    %3111 = vmatpush1.bf16.msra.mxu0 %v2425
    %3112 = vmatprep.subr.bf16.mxu0 %v2434
    %3113 = vmatpush1.bf16.msra.mxu0 %v2433
    %3114 = vmatprep.subr.bf16.mxu0 %v2442
    %3115 = vmatpush1.bf16.msra.mxu0 %v2441
    %3116 = vmatprep.subr.bf16.mxu0 %v2450
    %3117 = vmatpush1.bf16.msra.mxu0 %v2449
    %3118 = vmatprep.subr.bf16.mxu0 %v2458
    %3119 = vmatpush1.bf16.msra.mxu0 %v2457
    %3120 = vmatprep.subr.bf16.mxu0 %v2466
    %3121 = vmatpush1.bf16.msra.mxu0 %v2465
    %3122 = vmatprep.subr.bf16.mxu0 %v2474
    %3123 = vmatpush1.bf16.msra.mxu0 %v2473
    %3124 = vmatprep.subr.bf16.mxu0 %v2482
    %3125 = vmatpush1.bf16.msra.mxu0 %v2481
    %3126 = vmatprep.subr.bf16.mxu0 %v2490
    %3127 = vmatpush1.bf16.msra.mxu0 %v2489
    %3128 = vmatprep.subr.bf16.mxu0 %v2498
    %3129 = vmatpush1.bf16.msra.mxu0 %v2497
    %3130 = vmatprep.mubr.bf16.mxu0 %v2504
    %3131 = vmatmul.mubr.bf16.gmra.mrb[0].mxu0 %v2503
    %v3132 = vpop.f32.mrb[0].mxu0
    %v3133 = vadd.f32 %v3020, %v3132
    %v3134 = vpop.f32.mrb[0].mxu0
    %v3135 = vadd.f32 %v3022, %v3134
    %v3136 = vpop.f32.mrb[0].mxu0
    %v3137 = vadd.f32 %v3024, %v3136
    %v3138 = vpop.f32.mrb[0].mxu0
    %v3139 = vadd.f32 %v3026, %v3138
    %3140 = vmatprep.mubr.bf16.mxu0 %v2508
    %3141 = vmatmul.mubr.bf16.gmra.mrb[0].mxu0 %v2507
    %v3142 = vpop.f32.mrb[0].mxu0
    %v3143 = vadd.f32 %v3030, %v3142
    %v3144 = vpop.f32.mrb[0].mxu0
    %v3145 = vadd.f32 %v3032, %v3144
    %v3146 = vpop.f32.mrb[0].mxu0
    %v3147 = vadd.f32 %v3034, %v3146
    %v3148 = vpop.f32.mrb[0].mxu0
    %v3149 = vadd.f32 %v3036, %v3148
    %3150 = vmatprep.mubr.bf16.mxu0 %v2512
    %3151 = vmatmul.mubr.bf16.gmra.mrb[0].mxu0 %v2511
    %v3152 = vpop.f32.mrb[0].mxu0
    %v3153 = vadd.f32 %v3040, %v3152
    %v3154 = vpop.f32.mrb[0].mxu0
    %v3155 = vadd.f32 %v3042, %v3154
    %v3156 = vpop.f32.mrb[0].mxu0
    %v3157 = vadd.f32 %v3044, %v3156
    %v3158 = vpop.f32.mrb[0].mxu0
    %v3159 = vadd.f32 %v3046, %v3158
    %3160 = vmatprep.mubr.bf16.mxu0 %v2516
    %3161 = vmatmul.mubr.bf16.gmra.mrb[0].mxu0 %v2515
    %v3162 = vpop.f32.mrb[0].mxu0
    %v3163 = vadd.f32 %v3050, %v3162
    %v3164 = vpop.f32.mrb[0].mxu0
    %v3165 = vadd.f32 %v3052, %v3164
    %v3166 = vpop.f32.mrb[0].mxu0
    %v3167 = vadd.f32 %v3054, %v3166
    %v3168 = vpop.f32.mrb[0].mxu0
    %v3169 = vadd.f32 %v3056, %v3168
    %3170 = vmatprep.mubr.bf16.mxu0 %v2520
    %3171 = vmatmul.mubr.bf16.gmra.mrb[0].mxu0 %v2519
    %v3172 = vpop.f32.mrb[0].mxu0
    %v3173 = vadd.f32 %v3060, %v3172
    %v3174 = vpop.f32.mrb[0].mxu0
    %v3175 = vadd.f32 %v3062, %v3174
    %v3176 = vpop.f32.mrb[0].mxu0
    %v3177 = vadd.f32 %v3064, %v3176
    %v3178 = vpop.f32.mrb[0].mxu0
    %v3179 = vadd.f32 %v3066, %v3178
    %3180 = vmatprep.mubr.bf16.mxu0 %v2524
    %3181 = vmatmul.mubr.bf16.gmra.mrb[0].mxu0 %v2523
    %v3182 = vpop.f32.mrb[0].mxu0
    %v3183 = vadd.f32 %v3070, %v3182
    %v3184 = vpop.f32.mrb[0].mxu0
    %v3185 = vadd.f32 %v3072, %v3184
    %v3186 = vpop.f32.mrb[0].mxu0
    %v3187 = vadd.f32 %v3074, %v3186
    %v3188 = vpop.f32.mrb[0].mxu0
    %v3189 = vadd.f32 %v3076, %v3188
    %3190 = vmatprep.mubr.bf16.mxu0 %v2528
    %3191 = vmatmul.mubr.bf16.gmra.mrb[0].mxu0 %v2527
    %v3192 = vpop.f32.mrb[0].mxu0
    %v3193 = vadd.f32 %v3080, %v3192
    %v3194 = vpop.f32.mrb[0].mxu0
    %v3195 = vadd.f32 %v3082, %v3194
    %v3196 = vpop.f32.mrb[0].mxu0
    %v3197 = vadd.f32 %v3084, %v3196
    %v3198 = vpop.f32.mrb[0].mxu0
    %v3199 = vadd.f32 %v3086, %v3198
    %3200 = vmatprep.mubr.bf16.mxu0 %v2532
    %3201 = vmatmul.mubr.bf16.gmra.mrb[0].mxu0 %v2531
    %v3202 = vpop.f32.mrb[0].mxu0
    %v3203 = vadd.f32 %v3090, %v3202
    %v3204 = vpop.f32.mrb[0].mxu0
    %v3205 = vadd.f32 %v3092, %v3204
    %v3206 = vpop.f32.mrb[0].mxu0
    %v3207 = vadd.f32 %v3094, %v3206
    %v3208 = vpop.f32.mrb[0].mxu0
    %v3209 = vadd.f32 %v3096, %v3208
    %3210 = vdwg.mxu0
    %3211 = vmatprep.subr.bf16.mxu0 %v2252
    %3212 = vmatpush1.bf16.msra.mxu0 %v2251
    %3213 = vmatprep.subr.bf16.mxu0 %v2260
    %3214 = vmatpush1.bf16.msra.mxu0 %v2259
    %3215 = vmatprep.subr.bf16.mxu0 %v2268
    %3216 = vmatpush1.bf16.msra.mxu0 %v2267
    %3217 = vmatprep.subr.bf16.mxu0 %v2276
    %3218 = vmatpush1.bf16.msra.mxu0 %v2275
    %3219 = vmatprep.subr.bf16.mxu0 %v2284
    %3220 = vmatpush1.bf16.msra.mxu0 %v2283
    %3221 = vmatprep.subr.bf16.mxu0 %v2292
    %3222 = vmatpush1.bf16.msra.mxu0 %v2291
    %3223 = vmatprep.subr.bf16.mxu0 %v2300
    %3224 = vmatpush1.bf16.msra.mxu0 %v2299
    %3225 = vmatprep.subr.bf16.mxu0 %v2308
    %3226 = vmatpush1.bf16.msra.mxu0 %v2307
    %3227 = vmatprep.subr.bf16.mxu0 %v2316
    %3228 = vmatpush1.bf16.msra.mxu0 %v2315
    %3229 = vmatprep.subr.bf16.mxu0 %v2324
    %3230 = vmatpush1.bf16.msra.mxu0 %v2323
    %3231 = vmatprep.subr.bf16.mxu0 %v2332
    %3232 = vmatpush1.bf16.msra.mxu0 %v2331
    %3233 = vmatprep.subr.bf16.mxu0 %v2340
    %3234 = vmatpush1.bf16.msra.mxu0 %v2339
    %3235 = vmatprep.subr.bf16.mxu0 %v2348
    %3236 = vmatpush1.bf16.msra.mxu0 %v2347
    %3237 = vmatprep.subr.bf16.mxu0 %v2356
    %3238 = vmatpush1.bf16.msra.mxu0 %v2355
    %3239 = vmatprep.subr.bf16.mxu0 %v2364
    %3240 = vmatpush1.bf16.msra.mxu0 %v2363
    %3241 = vmatprep.subr.bf16.mxu0 %v2372
    %3242 = vmatpush1.bf16.msra.mxu0 %v2371
    %3243 = vmatprep.mubr.bf16.mxu0 %v2502
    %3244 = vmatmul.mubr.bf16.gmra.mrb[0].mxu0 %v2501
    %v3245 = vpop.f32.mrb[0].mxu0
    %v3246 = vadd.f32 0.0, %v3245
    %v3247 = vpop.f32.mrb[0].mxu0
    %v3248 = vadd.f32 0.0, %v3247
    %v3249 = vpop.f32.mrb[0].mxu0
    %v3250 = vadd.f32 0.0, %v3249
    %v3251 = vpop.f32.mrb[0].mxu0
    %v3252 = vadd.f32 0.0, %v3251
    %3253 = vmatprep.mubr.bf16.mxu0 %v2506
    %3254 = vmatmul.mubr.bf16.gmra.mrb[0].mxu0 %v2505
    %v3255 = vpop.f32.mrb[0].mxu0
    %v3256 = vadd.f32 0.0, %v3255
    %v3257 = vpop.f32.mrb[0].mxu0
    %v3258 = vadd.f32 0.0, %v3257
    %v3259 = vpop.f32.mrb[0].mxu0
    %v3260 = vadd.f32 0.0, %v3259
    %v3261 = vpop.f32.mrb[0].mxu0
    %v3262 = vadd.f32 0.0, %v3261
    %3263 = vmatprep.mubr.bf16.mxu0 %v2510
    %3264 = vmatmul.mubr.bf16.gmra.mrb[0].mxu0 %v2509
    %v3265 = vpop.f32.mrb[0].mxu0
    %v3266 = vadd.f32 0.0, %v3265
    %v3267 = vpop.f32.mrb[0].mxu0
    %v3268 = vadd.f32 0.0, %v3267
    %v3269 = vpop.f32.mrb[0].mxu0
    %v3270 = vadd.f32 0.0, %v3269
    %v3271 = vpop.f32.mrb[0].mxu0
    %v3272 = vadd.f32 0.0, %v3271
    %3273 = vmatprep.mubr.bf16.mxu0 %v2514
    %3274 = vmatmul.mubr.bf16.gmra.mrb[0].mxu0 %v2513
    %v3275 = vpop.f32.mrb[0].mxu0
    %v3276 = vadd.f32 0.0, %v3275
    %v3277 = vpop.f32.mrb[0].mxu0
    %v3278 = vadd.f32 0.0, %v3277
    %v3279 = vpop.f32.mrb[0].mxu0
    %v3280 = vadd.f32 0.0, %v3279
    %v3281 = vpop.f32.mrb[0].mxu0
    %v3282 = vadd.f32 0.0, %v3281
    %3283 = vmatprep.mubr.bf16.mxu0 %v2518
    %3284 = vmatmul.mubr.bf16.gmra.mrb[0].mxu0 %v2517
    %v3285 = vpop.f32.mrb[0].mxu0
    %v3286 = vadd.f32 0.0, %v3285
    %v3287 = vpop.f32.mrb[0].mxu0
    %v3288 = vadd.f32 0.0, %v3287
    %v3289 = vpop.f32.mrb[0].mxu0
    %v3290 = vadd.f32 0.0, %v3289
    %v3291 = vpop.f32.mrb[0].mxu0
    %v3292 = vadd.f32 0.0, %v3291
    %3293 = vmatprep.mubr.bf16.mxu0 %v2522
    %3294 = vmatmul.mubr.bf16.gmra.mrb[0].mxu0 %v2521
    %v3295 = vpop.f32.mrb[0].mxu0
    %v3296 = vadd.f32 0.0, %v3295
    %v3297 = vpop.f32.mrb[0].mxu0
    %v3298 = vadd.f32 0.0, %v3297
    %v3299 = vpop.f32.mrb[0].mxu0
    %v3300 = vadd.f32 0.0, %v3299
    %v3301 = vpop.f32.mrb[0].mxu0
    %v3302 = vadd.f32 0.0, %v3301
    %3303 = vmatprep.mubr.bf16.mxu0 %v2526
    %3304 = vmatmul.mubr.bf16.gmra.mrb[0].mxu0 %v2525
    %v3305 = vpop.f32.mrb[0].mxu0
    %v3306 = vadd.f32 0.0, %v3305
    %v3307 = vpop.f32.mrb[0].mxu0
    %v3308 = vadd.f32 0.0, %v3307
    %v3309 = vpop.f32.mrb[0].mxu0
    %v3310 = vadd.f32 0.0, %v3309
    %v3311 = vpop.f32.mrb[0].mxu0
    %v3312 = vadd.f32 0.0, %v3311
    %3313 = vmatprep.mubr.bf16.mxu0 %v2530
    %3314 = vmatmul.mubr.bf16.gmra.mrb[0].mxu0 %v2529
    %v3315 = vpop.f32.mrb[0].mxu0
    %v3316 = vadd.f32 0.0, %v3315
    %v3317 = vpop.f32.mrb[0].mxu0
    %v3318 = vadd.f32 0.0, %v3317
    %v3319 = vpop.f32.mrb[0].mxu0
    %v3320 = vadd.f32 0.0, %v3319
    %v3321 = vpop.f32.mrb[0].mxu0
    %v3322 = vadd.f32 0.0, %v3321
    %3323 = vdwg.mxu0
    %3324 = vmatprep.subr.bf16.mxu0 %v2380
    %3325 = vmatpush1.bf16.msra.mxu0 %v2379
    %3326 = vmatprep.subr.bf16.mxu0 %v2388
    %3327 = vmatpush1.bf16.msra.mxu0 %v2387
    %3328 = vmatprep.subr.bf16.mxu0 %v2396
    %3329 = vmatpush1.bf16.msra.mxu0 %v2395
    %3330 = vmatprep.subr.bf16.mxu0 %v2404
    %3331 = vmatpush1.bf16.msra.mxu0 %v2403
    %3332 = vmatprep.subr.bf16.mxu0 %v2412
    %3333 = vmatpush1.bf16.msra.mxu0 %v2411
    %3334 = vmatprep.subr.bf16.mxu0 %v2420
    %3335 = vmatpush1.bf16.msra.mxu0 %v2419
    %3336 = vmatprep.subr.bf16.mxu0 %v2428
    %3337 = vmatpush1.bf16.msra.mxu0 %v2427
    %3338 = vmatprep.subr.bf16.mxu0 %v2436
    %3339 = vmatpush1.bf16.msra.mxu0 %v2435
    %3340 = vmatprep.subr.bf16.mxu0 %v2444
    %3341 = vmatpush1.bf16.msra.mxu0 %v2443
    %3342 = vmatprep.subr.bf16.mxu0 %v2452
    %3343 = vmatpush1.bf16.msra.mxu0 %v2451
    %3344 = vmatprep.subr.bf16.mxu0 %v2460
    %3345 = vmatpush1.bf16.msra.mxu0 %v2459
    %3346 = vmatprep.subr.bf16.mxu0 %v2468
    %3347 = vmatpush1.bf16.msra.mxu0 %v2467
    %3348 = vmatprep.subr.bf16.mxu0 %v2476
    %3349 = vmatpush1.bf16.msra.mxu0 %v2475
    %3350 = vmatprep.subr.bf16.mxu0 %v2484
    %3351 = vmatpush1.bf16.msra.mxu0 %v2483
    %3352 = vmatprep.subr.bf16.mxu0 %v2492
    %3353 = vmatpush1.bf16.msra.mxu0 %v2491
    %3354 = vmatprep.subr.bf16.mxu0 %v2500
    %3355 = vmatpush1.bf16.msra.mxu0 %v2499
    %3356 = vmatprep.mubr.bf16.mxu0 %v2504
    %3357 = vmatmul.mubr.bf16.gmra.mrb[0].mxu0 %v2503
    %v3358 = vpop.f32.mrb[0].mxu0
    %v3359 = vadd.f32 %v3246, %v3358
    %v3360 = vpop.f32.mrb[0].mxu0
    %v3361 = vadd.f32 %v3248, %v3360
    %v3362 = vpop.f32.mrb[0].mxu0
    %v3363 = vadd.f32 %v3250, %v3362
    %v3364 = vpop.f32.mrb[0].mxu0
    %v3365 = vadd.f32 %v3252, %v3364
    %3366 = vmatprep.mubr.bf16.mxu0 %v2508
    %3367 = vmatmul.mubr.bf16.gmra.mrb[0].mxu0 %v2507
    %v3368 = vpop.f32.mrb[0].mxu0
    %v3369 = vadd.f32 %v3256, %v3368
    %v3370 = vpop.f32.mrb[0].mxu0
    %v3371 = vadd.f32 %v3258, %v3370
    %v3372 = vpop.f32.mrb[0].mxu0
    %v3373 = vadd.f32 %v3260, %v3372
    %v3374 = vpop.f32.mrb[0].mxu0
    %v3375 = vadd.f32 %v3262, %v3374
    %3376 = vmatprep.mubr.bf16.mxu0 %v2512
    %3377 = vmatmul.mubr.bf16.gmra.mrb[0].mxu0 %v2511
    %v3378 = vpop.f32.mrb[0].mxu0
    %v3379 = vadd.f32 %v3266, %v3378
    %v3380 = vpop.f32.mrb[0].mxu0
    %v3381 = vadd.f32 %v3268, %v3380
    %v3382 = vpop.f32.mrb[0].mxu0
    %v3383 = vadd.f32 %v3270, %v3382
    %v3384 = vpop.f32.mrb[0].mxu0
    %v3385 = vadd.f32 %v3272, %v3384
    %3386 = vmatprep.mubr.bf16.mxu0 %v2516
    %3387 = vmatmul.mubr.bf16.gmra.mrb[0].mxu0 %v2515
    %v3388 = vpop.f32.mrb[0].mxu0
    %v3389 = vadd.f32 %v3276, %v3388
    %v3390 = vpop.f32.mrb[0].mxu0
    %v3391 = vadd.f32 %v3278, %v3390
    %v3392 = vpop.f32.mrb[0].mxu0
    %v3393 = vadd.f32 %v3280, %v3392
    %v3394 = vpop.f32.mrb[0].mxu0
    %v3395 = vadd.f32 %v3282, %v3394
    %3396 = vmatprep.mubr.bf16.mxu0 %v2520
    %3397 = vmatmul.mubr.bf16.gmra.mrb[0].mxu0 %v2519
    %v3398 = vpop.f32.mrb[0].mxu0
    %v3399 = vadd.f32 %v3286, %v3398
    %v3400 = vpop.f32.mrb[0].mxu0
    %v3401 = vadd.f32 %v3288, %v3400
    %v3402 = vpop.f32.mrb[0].mxu0
    %v3403 = vadd.f32 %v3290, %v3402
    %v3404 = vpop.f32.mrb[0].mxu0
    %v3405 = vadd.f32 %v3292, %v3404
    %3406 = vmatprep.mubr.bf16.mxu0 %v2524
    %3407 = vmatmul.mubr.bf16.gmra.mrb[0].mxu0 %v2523
    %v3408 = vpop.f32.mrb[0].mxu0
    %v3409 = vadd.f32 %v3296, %v3408
    %v3410 = vpop.f32.mrb[0].mxu0
    %v3411 = vadd.f32 %v3298, %v3410
    %v3412 = vpop.f32.mrb[0].mxu0
    %v3413 = vadd.f32 %v3300, %v3412
    %v3414 = vpop.f32.mrb[0].mxu0
    %v3415 = vadd.f32 %v3302, %v3414
    %3416 = vmatprep.mubr.bf16.mxu0 %v2528
    %3417 = vmatmul.mubr.bf16.gmra.mrb[0].mxu0 %v2527
    %v3418 = vpop.f32.mrb[0].mxu0
    %v3419 = vadd.f32 %v3306, %v3418
    %v3420 = vpop.f32.mrb[0].mxu0
    %v3421 = vadd.f32 %v3308, %v3420
    %v3422 = vpop.f32.mrb[0].mxu0
    %v3423 = vadd.f32 %v3310, %v3422
    %v3424 = vpop.f32.mrb[0].mxu0
    %v3425 = vadd.f32 %v3312, %v3424
    %3426 = vmatprep.mubr.bf16.mxu0 %v2532
    %3427 = vmatmul.mubr.bf16.gmra.mrb[0].mxu0 %v2531
    %v3428 = vpop.f32.mrb[0].mxu0
    %v3429 = vadd.f32 %v3316, %v3428
    %v3430 = vpop.f32.mrb[0].mxu0
    %v3431 = vadd.f32 %v3318, %v3430
    %v3432 = vpop.f32.mrb[0].mxu0
    %v3433 = vadd.f32 %v3320, %v3432
    %v3434 = vpop.f32.mrb[0].mxu0
    %v3435 = vadd.f32 %v3322, %v3434
    %3436 = vdwg.mxu0
    %v3437 = vlaneseq
    %v3438 = vshrl.u32 %v3437, 7
    %v3439 = vsub.s32 1, %v3438
    %v3440 = vrot.slane %v82, %v3439
    %v3441 = vlaneseq
    %v3442 = vshrl.u32 %v3441, 7
    %v3443 = vsub.s32 1, %v3442
    %v3444 = vrot.slane %v83, %v3443
    %v3445 = vlaneseq
    %v3446 = vshrl.u32 %v3445, 7
    %v3447 = vsub.s32 1, %v3446
    %v3448 = vrot.slane %v84, %v3447
    %v3449 = vlaneseq
    %v3450 = vshrl.u32 %v3449, 7
    %v3451 = vsub.s32 1, %v3450
    %v3452 = vrot.slane %v85, %v3451
    %v3453 = vlaneseq
    %v3454 = vshrl.u32 %v3453, 7
    %v3455 = vsub.s32 1, %v3454
    %v3456 = vrot.slane %v86, %v3455
    %v3457 = vlaneseq
    %v3458 = vshrl.u32 %v3457, 7
    %v3459 = vsub.s32 1, %v3458
    %v3460 = vrot.slane %v87, %v3459
    %v3461 = vlaneseq
    %v3462 = vshrl.u32 %v3461, 7
    %v3463 = vsub.s32 1, %v3462
    %v3464 = vrot.slane %v88, %v3463
    %v3465 = vlaneseq
    %v3466 = vshrl.u32 %v3465, 7
    %v3467 = vsub.s32 1, %v3466
    %v3468 = vrot.slane %v89, %v3467
    %v3469 = vmul.f32 %v2681, %v3440
    %v3470 = vmul.f32 %v2683, %v3444
    %v3471 = vmul.f32 %v2907, %v3448
    %v3472 = vmul.f32 %v2909, %v3452
    %v3473 = vmul.f32 %v3133, %v3456
    %v3474 = vmul.f32 %v3135, %v3460
    %v3475 = vmul.f32 %v3359, %v3464
    %v3476 = vmul.f32 %v3361, %v3468
    %v3477 = vmul.f32 %v2685, %v3440
    %v3478 = vmul.f32 %v2687, %v3444
    %v3479 = vmul.f32 %v2911, %v3448
    %v3480 = vmul.f32 %v2913, %v3452
    %v3481 = vmul.f32 %v3137, %v3456
    %v3482 = vmul.f32 %v3139, %v3460
    %v3483 = vmul.f32 %v3363, %v3464
    %v3484 = vmul.f32 %v3365, %v3468
    %v3485 = vmul.f32 %v2691, %v3440
    %v3486 = vmul.f32 %v2693, %v3444
    %v3487 = vmul.f32 %v2917, %v3448
    %v3488 = vmul.f32 %v2919, %v3452
    %v3489 = vmul.f32 %v3143, %v3456
    %v3490 = vmul.f32 %v3145, %v3460
    %v3491 = vmul.f32 %v3369, %v3464
    %v3492 = vmul.f32 %v3371, %v3468
    %v3493 = vmul.f32 %v2695, %v3440
    %v3494 = vmul.f32 %v2697, %v3444
    %v3495 = vmul.f32 %v2921, %v3448
    %v3496 = vmul.f32 %v2923, %v3452
    %v3497 = vmul.f32 %v3147, %v3456
    %v3498 = vmul.f32 %v3149, %v3460
    %v3499 = vmul.f32 %v3373, %v3464
    %v3500 = vmul.f32 %v3375, %v3468
    %v3501 = vmul.f32 %v2701, %v3440
    %v3502 = vmul.f32 %v2703, %v3444
    %v3503 = vmul.f32 %v2927, %v3448
    %v3504 = vmul.f32 %v2929, %v3452
    %v3505 = vmul.f32 %v3153, %v3456
    %v3506 = vmul.f32 %v3155, %v3460
    %v3507 = vmul.f32 %v3379, %v3464
    %v3508 = vmul.f32 %v3381, %v3468
    %v3509 = vmul.f32 %v2705, %v3440
    %v3510 = vmul.f32 %v2707, %v3444
    %v3511 = vmul.f32 %v2931, %v3448
    %v3512 = vmul.f32 %v2933, %v3452
    %v3513 = vmul.f32 %v3157, %v3456
    %v3514 = vmul.f32 %v3159, %v3460
    %v3515 = vmul.f32 %v3383, %v3464
    %v3516 = vmul.f32 %v3385, %v3468
    %v3517 = vmul.f32 %v2711, %v3440
    %v3518 = vmul.f32 %v2713, %v3444
    %v3519 = vmul.f32 %v2937, %v3448
    %v3520 = vmul.f32 %v2939, %v3452
    %v3521 = vmul.f32 %v3163, %v3456
    %v3522 = vmul.f32 %v3165, %v3460
    %v3523 = vmul.f32 %v3389, %v3464
    %v3524 = vmul.f32 %v3391, %v3468
    %v3525 = vmul.f32 %v2715, %v3440
    %v3526 = vmul.f32 %v2717, %v3444
    %v3527 = vmul.f32 %v2941, %v3448
    %v3528 = vmul.f32 %v2943, %v3452
    %v3529 = vmul.f32 %v3167, %v3456
    %v3530 = vmul.f32 %v3169, %v3460
    %v3531 = vmul.f32 %v3393, %v3464
    %v3532 = vmul.f32 %v3395, %v3468
    %v3533 = vmul.f32 %v2721, %v3440
    %v3534 = vmul.f32 %v2723, %v3444
    %v3535 = vmul.f32 %v2947, %v3448
    %v3536 = vmul.f32 %v2949, %v3452
    %v3537 = vmul.f32 %v3173, %v3456
    %v3538 = vmul.f32 %v3175, %v3460
    %v3539 = vmul.f32 %v3399, %v3464
    %v3540 = vmul.f32 %v3401, %v3468
    %v3541 = vmul.f32 %v2725, %v3440
    %v3542 = vmul.f32 %v2727, %v3444
    %v3543 = vmul.f32 %v2951, %v3448
    %v3544 = vmul.f32 %v2953, %v3452
    %v3545 = vmul.f32 %v3177, %v3456
    %v3546 = vmul.f32 %v3179, %v3460
    %v3547 = vmul.f32 %v3403, %v3464
    %v3548 = vmul.f32 %v3405, %v3468
    %v3549 = vmul.f32 %v2731, %v3440
    %v3550 = vmul.f32 %v2733, %v3444
    %v3551 = vmul.f32 %v2957, %v3448
    %v3552 = vmul.f32 %v2959, %v3452
    %v3553 = vmul.f32 %v3183, %v3456
    %v3554 = vmul.f32 %v3185, %v3460
    %v3555 = vmul.f32 %v3409, %v3464
    %v3556 = vmul.f32 %v3411, %v3468
    %v3557 = vmul.f32 %v2735, %v3440
    %v3558 = vmul.f32 %v2737, %v3444
    %v3559 = vmul.f32 %v2961, %v3448
    %v3560 = vmul.f32 %v2963, %v3452
    %v3561 = vmul.f32 %v3187, %v3456
    %v3562 = vmul.f32 %v3189, %v3460
    %v3563 = vmul.f32 %v3413, %v3464
    %v3564 = vmul.f32 %v3415, %v3468
    %v3565 = vmul.f32 %v2741, %v3440
    %v3566 = vmul.f32 %v2743, %v3444
    %v3567 = vmul.f32 %v2967, %v3448
    %v3568 = vmul.f32 %v2969, %v3452
    %v3569 = vmul.f32 %v3193, %v3456
    %v3570 = vmul.f32 %v3195, %v3460
    %v3571 = vmul.f32 %v3419, %v3464
    %v3572 = vmul.f32 %v3421, %v3468
    %v3573 = vmul.f32 %v2745, %v3440
    %v3574 = vmul.f32 %v2747, %v3444
    %v3575 = vmul.f32 %v2971, %v3448
    %v3576 = vmul.f32 %v2973, %v3452
    %v3577 = vmul.f32 %v3197, %v3456
    %v3578 = vmul.f32 %v3199, %v3460
    %v3579 = vmul.f32 %v3423, %v3464
    %v3580 = vmul.f32 %v3425, %v3468
    %v3581 = vmul.f32 %v2751, %v3440
    %v3582 = vmul.f32 %v2753, %v3444
    %v3583 = vmul.f32 %v2977, %v3448
    %v3584 = vmul.f32 %v2979, %v3452
    %v3585 = vmul.f32 %v3203, %v3456
    %v3586 = vmul.f32 %v3205, %v3460
    %v3587 = vmul.f32 %v3429, %v3464
    %v3588 = vmul.f32 %v3431, %v3468
    %v3589 = vmul.f32 %v2755, %v3440
    %v3590 = vmul.f32 %v2757, %v3444
    %v3591 = vmul.f32 %v2981, %v3448
    %v3592 = vmul.f32 %v2983, %v3452
    %v3593 = vmul.f32 %v3207, %v3456
    %v3594 = vmul.f32 %v3209, %v3460
    %v3595 = vmul.f32 %v3433, %v3464
    %v3596 = vmul.f32 %v3435, %v3468
    %v3597 = vadd.f32 %v3469, %v3477
    %v3598 = vadd.f32 %v3597, %v3485
    %v3599 = vadd.f32 %v3598, %v3493
    %v3600 = vadd.f32 %v3599, %v3501
    %v3601 = vadd.f32 %v3600, %v3509
    %v3602 = vadd.f32 %v3601, %v3517
    %v3603 = vadd.f32 %v3602, %v3525
    %v3604 = vadd.f32 %v3603, %v3533
    %v3605 = vadd.f32 %v3604, %v3541
    %v3606 = vadd.f32 %v3605, %v3549
    %v3607 = vadd.f32 %v3606, %v3557
    %v3608 = vadd.f32 %v3607, %v3565
    %v3609 = vadd.f32 %v3608, %v3573
    %v3610 = vadd.f32 %v3609, %v3581
    %v3611 = vadd.f32 %v3610, %v3589
    %v3612 = vrot.slane %v3611, 4
    %v3613 = vadd.f32 %v3611, %v3612
    %v3614 = vrot.slane %v3613, 2
    %v3615 = vadd.f32 %v3613, %v3614
    %v3616 = vrot.slane %v3615, 1
    %v3617 = vadd.f32 %v3615, %v3616
    %v3618 = vadd.f32 %v3470, %v3478
    %v3619 = vadd.f32 %v3618, %v3486
    %v3620 = vadd.f32 %v3619, %v3494
    %v3621 = vadd.f32 %v3620, %v3502
    %v3622 = vadd.f32 %v3621, %v3510
    %v3623 = vadd.f32 %v3622, %v3518
    %v3624 = vadd.f32 %v3623, %v3526
    %v3625 = vadd.f32 %v3624, %v3534
    %v3626 = vadd.f32 %v3625, %v3542
    %v3627 = vadd.f32 %v3626, %v3550
    %v3628 = vadd.f32 %v3627, %v3558
    %v3629 = vadd.f32 %v3628, %v3566
    %v3630 = vadd.f32 %v3629, %v3574
    %v3631 = vadd.f32 %v3630, %v3582
    %v3632 = vadd.f32 %v3631, %v3590
    %v3633 = vrot.slane %v3632, 4
    %v3634 = vadd.f32 %v3632, %v3633
    %v3635 = vrot.slane %v3634, 2
    %v3636 = vadd.f32 %v3634, %v3635
    %v3637 = vrot.slane %v3636, 1
    %v3638 = vadd.f32 %v3636, %v3637
    %v3639 = vadd.f32 %v3471, %v3479
    %v3640 = vadd.f32 %v3639, %v3487
    %v3641 = vadd.f32 %v3640, %v3495
    %v3642 = vadd.f32 %v3641, %v3503
    %v3643 = vadd.f32 %v3642, %v3511
    %v3644 = vadd.f32 %v3643, %v3519
    %v3645 = vadd.f32 %v3644, %v3527
    %v3646 = vadd.f32 %v3645, %v3535
    %v3647 = vadd.f32 %v3646, %v3543
    %v3648 = vadd.f32 %v3647, %v3551
    %v3649 = vadd.f32 %v3648, %v3559
    %v3650 = vadd.f32 %v3649, %v3567
    %v3651 = vadd.f32 %v3650, %v3575
    %v3652 = vadd.f32 %v3651, %v3583
    %v3653 = vadd.f32 %v3652, %v3591
    %v3654 = vrot.slane %v3653, 4
    %v3655 = vadd.f32 %v3653, %v3654
    %v3656 = vrot.slane %v3655, 2
    %v3657 = vadd.f32 %v3655, %v3656
    %v3658 = vrot.slane %v3657, 1
    %v3659 = vadd.f32 %v3657, %v3658
    %v3660 = vadd.f32 %v3472, %v3480
    %v3661 = vadd.f32 %v3660, %v3488
    %v3662 = vadd.f32 %v3661, %v3496
    %v3663 = vadd.f32 %v3662, %v3504
    %v3664 = vadd.f32 %v3663, %v3512
    %v3665 = vadd.f32 %v3664, %v3520
    %v3666 = vadd.f32 %v3665, %v3528
    %v3667 = vadd.f32 %v3666, %v3536
    %v3668 = vadd.f32 %v3667, %v3544
    %v3669 = vadd.f32 %v3668, %v3552
    %v3670 = vadd.f32 %v3669, %v3560
    %v3671 = vadd.f32 %v3670, %v3568
    %v3672 = vadd.f32 %v3671, %v3576
    %v3673 = vadd.f32 %v3672, %v3584
    %v3674 = vadd.f32 %v3673, %v3592
    %v3675 = vrot.slane %v3674, 4
    %v3676 = vadd.f32 %v3674, %v3675
    %v3677 = vrot.slane %v3676, 2
    %v3678 = vadd.f32 %v3676, %v3677
    %v3679 = vrot.slane %v3678, 1
    %v3680 = vadd.f32 %v3678, %v3679
    %v3681 = vadd.f32 %v3473, %v3481
    %v3682 = vadd.f32 %v3681, %v3489
    %v3683 = vadd.f32 %v3682, %v3497
    %v3684 = vadd.f32 %v3683, %v3505
    %v3685 = vadd.f32 %v3684, %v3513
    %v3686 = vadd.f32 %v3685, %v3521
    %v3687 = vadd.f32 %v3686, %v3529
    %v3688 = vadd.f32 %v3687, %v3537
    %v3689 = vadd.f32 %v3688, %v3545
    %v3690 = vadd.f32 %v3689, %v3553
    %v3691 = vadd.f32 %v3690, %v3561
    %v3692 = vadd.f32 %v3691, %v3569
    %v3693 = vadd.f32 %v3692, %v3577
    %v3694 = vadd.f32 %v3693, %v3585
    %v3695 = vadd.f32 %v3694, %v3593
    %v3696 = vrot.slane %v3695, 4
    %v3697 = vadd.f32 %v3695, %v3696
    %v3698 = vrot.slane %v3697, 2
    %v3699 = vadd.f32 %v3697, %v3698
    %v3700 = vrot.slane %v3699, 1
    %v3701 = vadd.f32 %v3699, %v3700
    %v3702 = vadd.f32 %v3474, %v3482
    %v3703 = vadd.f32 %v3702, %v3490
    %v3704 = vadd.f32 %v3703, %v3498
    %v3705 = vadd.f32 %v3704, %v3506
    %v3706 = vadd.f32 %v3705, %v3514
    %v3707 = vadd.f32 %v3706, %v3522
    %v3708 = vadd.f32 %v3707, %v3530
    %v3709 = vadd.f32 %v3708, %v3538
    %v3710 = vadd.f32 %v3709, %v3546
    %v3711 = vadd.f32 %v3710, %v3554
    %v3712 = vadd.f32 %v3711, %v3562
    %v3713 = vadd.f32 %v3712, %v3570
    %v3714 = vadd.f32 %v3713, %v3578
    %v3715 = vadd.f32 %v3714, %v3586
    %v3716 = vadd.f32 %v3715, %v3594
    %v3717 = vrot.slane %v3716, 4
    %v3718 = vadd.f32 %v3716, %v3717
    %v3719 = vrot.slane %v3718, 2
    %v3720 = vadd.f32 %v3718, %v3719
    %v3721 = vrot.slane %v3720, 1
    %v3722 = vadd.f32 %v3720, %v3721
    %v3723 = vadd.f32 %v3475, %v3483
    %v3724 = vadd.f32 %v3723, %v3491
    %v3725 = vadd.f32 %v3724, %v3499
    %v3726 = vadd.f32 %v3725, %v3507
    %v3727 = vadd.f32 %v3726, %v3515
    %v3728 = vadd.f32 %v3727, %v3523
    %v3729 = vadd.f32 %v3728, %v3531
    %v3730 = vadd.f32 %v3729, %v3539
    %v3731 = vadd.f32 %v3730, %v3547
    %v3732 = vadd.f32 %v3731, %v3555
    %v3733 = vadd.f32 %v3732, %v3563
    %v3734 = vadd.f32 %v3733, %v3571
    %v3735 = vadd.f32 %v3734, %v3579
    %v3736 = vadd.f32 %v3735, %v3587
    %v3737 = vadd.f32 %v3736, %v3595
    %v3738 = vrot.slane %v3737, 4
    %v3739 = vadd.f32 %v3737, %v3738
    %v3740 = vrot.slane %v3739, 2
    %v3741 = vadd.f32 %v3739, %v3740
    %v3742 = vrot.slane %v3741, 1
    %v3743 = vadd.f32 %v3741, %v3742
    %v3744 = vadd.f32 %v3476, %v3484
    %v3745 = vadd.f32 %v3744, %v3492
    %v3746 = vadd.f32 %v3745, %v3500
    %v3747 = vadd.f32 %v3746, %v3508
    %v3748 = vadd.f32 %v3747, %v3516
    %v3749 = vadd.f32 %v3748, %v3524
    %v3750 = vadd.f32 %v3749, %v3532
    %v3751 = vadd.f32 %v3750, %v3540
    %v3752 = vadd.f32 %v3751, %v3548
    %v3753 = vadd.f32 %v3752, %v3556
    %v3754 = vadd.f32 %v3753, %v3564
    %v3755 = vadd.f32 %v3754, %v3572
    %v3756 = vadd.f32 %v3755, %v3580
    %v3757 = vadd.f32 %v3756, %v3588
    %v3758 = vadd.f32 %v3757, %v3596
    %v3759 = vrot.slane %v3758, 4
    %v3760 = vadd.f32 %v3758, %v3759
    %v3761 = vrot.slane %v3760, 2
    %v3762 = vadd.f32 %v3760, %v3761
    %v3763 = vrot.slane %v3762, 1
    %v3764 = vadd.f32 %v3762, %v3763
    %v3765 = vmul.f32 %v3617, %v296
    %v3766 = vmul.f32 %v3638, %v296
    %v3767 = vmul.f32 %v3659, %v296
    %v3768 = vmul.f32 %v3680, %v296
    %v3769 = vmul.f32 %v3701, %v296
    %v3770 = vmul.f32 %v3722, %v296
    %v3771 = vmul.f32 %v3743, %v296
    %v3772 = vmul.f32 %v3764, %v296
    %v3773 = vmul.f32 %v3469, %v3469
    %v3774 = vmul.f32 %v3470, %v3470
    %v3775 = vmul.f32 %v3471, %v3471
    %v3776 = vmul.f32 %v3472, %v3472
    %v3777 = vmul.f32 %v3473, %v3473
    %v3778 = vmul.f32 %v3474, %v3474
    %v3779 = vmul.f32 %v3475, %v3475
    %v3780 = vmul.f32 %v3476, %v3476
    %v3781 = vmul.f32 %v3477, %v3477
    %v3782 = vmul.f32 %v3478, %v3478
    %v3783 = vmul.f32 %v3479, %v3479
    %v3784 = vmul.f32 %v3480, %v3480
    %v3785 = vmul.f32 %v3481, %v3481
    %v3786 = vmul.f32 %v3482, %v3482
    %v3787 = vmul.f32 %v3483, %v3483
    %v3788 = vmul.f32 %v3484, %v3484
    %v3789 = vmul.f32 %v3485, %v3485
    %v3790 = vmul.f32 %v3486, %v3486
    %v3791 = vmul.f32 %v3487, %v3487
    %v3792 = vmul.f32 %v3488, %v3488
    %v3793 = vmul.f32 %v3489, %v3489
    %v3794 = vmul.f32 %v3490, %v3490
    %v3795 = vmul.f32 %v3491, %v3491
    %v3796 = vmul.f32 %v3492, %v3492
    %v3797 = vmul.f32 %v3493, %v3493
    %v3798 = vmul.f32 %v3494, %v3494
    %v3799 = vmul.f32 %v3495, %v3495
    %v3800 = vmul.f32 %v3496, %v3496
    %v3801 = vmul.f32 %v3497, %v3497
    %v3802 = vmul.f32 %v3498, %v3498
    %v3803 = vmul.f32 %v3499, %v3499
    %v3804 = vmul.f32 %v3500, %v3500
    %v3805 = vmul.f32 %v3501, %v3501
    %v3806 = vmul.f32 %v3502, %v3502
    %v3807 = vmul.f32 %v3503, %v3503
    %v3808 = vmul.f32 %v3504, %v3504
    %v3809 = vmul.f32 %v3505, %v3505
    %v3810 = vmul.f32 %v3506, %v3506
    %v3811 = vmul.f32 %v3507, %v3507
    %v3812 = vmul.f32 %v3508, %v3508
    %v3813 = vmul.f32 %v3509, %v3509
    %v3814 = vmul.f32 %v3510, %v3510
    %v3815 = vmul.f32 %v3511, %v3511
    %v3816 = vmul.f32 %v3512, %v3512
    %v3817 = vmul.f32 %v3513, %v3513
    %v3818 = vmul.f32 %v3514, %v3514
    %v3819 = vmul.f32 %v3515, %v3515
    %v3820 = vmul.f32 %v3516, %v3516
    %v3821 = vmul.f32 %v3517, %v3517
    %v3822 = vmul.f32 %v3518, %v3518
    %v3823 = vmul.f32 %v3519, %v3519
    %v3824 = vmul.f32 %v3520, %v3520
    %v3825 = vmul.f32 %v3521, %v3521
    %v3826 = vmul.f32 %v3522, %v3522
    %v3827 = vmul.f32 %v3523, %v3523
    %v3828 = vmul.f32 %v3524, %v3524
    %v3829 = vmul.f32 %v3525, %v3525
    %v3830 = vmul.f32 %v3526, %v3526
    %v3831 = vmul.f32 %v3527, %v3527
    %v3832 = vmul.f32 %v3528, %v3528
    %v3833 = vmul.f32 %v3529, %v3529
    %v3834 = vmul.f32 %v3530, %v3530
    %v3835 = vmul.f32 %v3531, %v3531
    %v3836 = vmul.f32 %v3532, %v3532
    %v3837 = vmul.f32 %v3533, %v3533
    %v3838 = vmul.f32 %v3534, %v3534
    %v3839 = vmul.f32 %v3535, %v3535
    %v3840 = vmul.f32 %v3536, %v3536
    %v3841 = vmul.f32 %v3537, %v3537
    %v3842 = vmul.f32 %v3538, %v3538
    %v3843 = vmul.f32 %v3539, %v3539
    %v3844 = vmul.f32 %v3540, %v3540
    %v3845 = vmul.f32 %v3541, %v3541
    %v3846 = vmul.f32 %v3542, %v3542
    %v3847 = vmul.f32 %v3543, %v3543
    %v3848 = vmul.f32 %v3544, %v3544
    %v3849 = vmul.f32 %v3545, %v3545
    %v3850 = vmul.f32 %v3546, %v3546
    %v3851 = vmul.f32 %v3547, %v3547
    %v3852 = vmul.f32 %v3548, %v3548
    %v3853 = vmul.f32 %v3549, %v3549
    %v3854 = vmul.f32 %v3550, %v3550
    %v3855 = vmul.f32 %v3551, %v3551
    %v3856 = vmul.f32 %v3552, %v3552
    %v3857 = vmul.f32 %v3553, %v3553
    %v3858 = vmul.f32 %v3554, %v3554
    %v3859 = vmul.f32 %v3555, %v3555
    %v3860 = vmul.f32 %v3556, %v3556
    %v3861 = vmul.f32 %v3557, %v3557
    %v3862 = vmul.f32 %v3558, %v3558
    %v3863 = vmul.f32 %v3559, %v3559
    %v3864 = vmul.f32 %v3560, %v3560
    %v3865 = vmul.f32 %v3561, %v3561
    %v3866 = vmul.f32 %v3562, %v3562
    %v3867 = vmul.f32 %v3563, %v3563
    %v3868 = vmul.f32 %v3564, %v3564
    %v3869 = vmul.f32 %v3565, %v3565
    %v3870 = vmul.f32 %v3566, %v3566
    %v3871 = vmul.f32 %v3567, %v3567
    %v3872 = vmul.f32 %v3568, %v3568
    %v3873 = vmul.f32 %v3569, %v3569
    %v3874 = vmul.f32 %v3570, %v3570
    %v3875 = vmul.f32 %v3571, %v3571
    %v3876 = vmul.f32 %v3572, %v3572
    %v3877 = vmul.f32 %v3573, %v3573
    %v3878 = vmul.f32 %v3574, %v3574
    %v3879 = vmul.f32 %v3575, %v3575
    %v3880 = vmul.f32 %v3576, %v3576
    %v3881 = vmul.f32 %v3577, %v3577
    %v3882 = vmul.f32 %v3578, %v3578
    %v3883 = vmul.f32 %v3579, %v3579
    %v3884 = vmul.f32 %v3580, %v3580
    %v3885 = vmul.f32 %v3581, %v3581
    %v3886 = vmul.f32 %v3582, %v3582
    %v3887 = vmul.f32 %v3583, %v3583
    %v3888 = vmul.f32 %v3584, %v3584
    %v3889 = vmul.f32 %v3585, %v3585
    %v3890 = vmul.f32 %v3586, %v3586
    %v3891 = vmul.f32 %v3587, %v3587
    %v3892 = vmul.f32 %v3588, %v3588
    %v3893 = vmul.f32 %v3589, %v3589
    %v3894 = vmul.f32 %v3590, %v3590
    %v3895 = vmul.f32 %v3591, %v3591
    %v3896 = vmul.f32 %v3592, %v3592
    %v3897 = vmul.f32 %v3593, %v3593
    %v3898 = vmul.f32 %v3594, %v3594
    %v3899 = vmul.f32 %v3595, %v3595
    %v3900 = vmul.f32 %v3596, %v3596
    %v3901 = vadd.f32 %v3773, %v3781
    %v3902 = vadd.f32 %v3901, %v3789
    %v3903 = vadd.f32 %v3902, %v3797
    %v3904 = vadd.f32 %v3903, %v3805
    %v3905 = vadd.f32 %v3904, %v3813
    %v3906 = vadd.f32 %v3905, %v3821
    %v3907 = vadd.f32 %v3906, %v3829
    %v3908 = vadd.f32 %v3907, %v3837
    %v3909 = vadd.f32 %v3908, %v3845
    %v3910 = vadd.f32 %v3909, %v3853
    %v3911 = vadd.f32 %v3910, %v3861
    %v3912 = vadd.f32 %v3911, %v3869
    %v3913 = vadd.f32 %v3912, %v3877
    %v3914 = vadd.f32 %v3913, %v3885
    %v3915 = vadd.f32 %v3914, %v3893
    %v3916 = vrot.slane %v3915, 4
    %v3917 = vadd.f32 %v3915, %v3916
    %v3918 = vrot.slane %v3917, 2
    %v3919 = vadd.f32 %v3917, %v3918
    %v3920 = vrot.slane %v3919, 1
    %v3921 = vadd.f32 %v3919, %v3920
    %v3922 = vadd.f32 %v3774, %v3782
    %v3923 = vadd.f32 %v3922, %v3790
    %v3924 = vadd.f32 %v3923, %v3798
    %v3925 = vadd.f32 %v3924, %v3806
    %v3926 = vadd.f32 %v3925, %v3814
    %v3927 = vadd.f32 %v3926, %v3822
    %v3928 = vadd.f32 %v3927, %v3830
    %v3929 = vadd.f32 %v3928, %v3838
    %v3930 = vadd.f32 %v3929, %v3846
    %v3931 = vadd.f32 %v3930, %v3854
    %v3932 = vadd.f32 %v3931, %v3862
    %v3933 = vadd.f32 %v3932, %v3870
    %v3934 = vadd.f32 %v3933, %v3878
    %v3935 = vadd.f32 %v3934, %v3886
    %v3936 = vadd.f32 %v3935, %v3894
    %v3937 = vrot.slane %v3936, 4
    %v3938 = vadd.f32 %v3936, %v3937
    %v3939 = vrot.slane %v3938, 2
    %v3940 = vadd.f32 %v3938, %v3939
    %v3941 = vrot.slane %v3940, 1
    %v3942 = vadd.f32 %v3940, %v3941
    %v3943 = vadd.f32 %v3775, %v3783
    %v3944 = vadd.f32 %v3943, %v3791
    %v3945 = vadd.f32 %v3944, %v3799
    %v3946 = vadd.f32 %v3945, %v3807
    %v3947 = vadd.f32 %v3946, %v3815
    %v3948 = vadd.f32 %v3947, %v3823
    %v3949 = vadd.f32 %v3948, %v3831
    %v3950 = vadd.f32 %v3949, %v3839
    %v3951 = vadd.f32 %v3950, %v3847
    %v3952 = vadd.f32 %v3951, %v3855
    %v3953 = vadd.f32 %v3952, %v3863
    %v3954 = vadd.f32 %v3953, %v3871
    %v3955 = vadd.f32 %v3954, %v3879
    %v3956 = vadd.f32 %v3955, %v3887
    %v3957 = vadd.f32 %v3956, %v3895
    %v3958 = vrot.slane %v3957, 4
    %v3959 = vadd.f32 %v3957, %v3958
    %v3960 = vrot.slane %v3959, 2
    %v3961 = vadd.f32 %v3959, %v3960
    %v3962 = vrot.slane %v3961, 1
    %v3963 = vadd.f32 %v3961, %v3962
    %v3964 = vadd.f32 %v3776, %v3784
    %v3965 = vadd.f32 %v3964, %v3792
    %v3966 = vadd.f32 %v3965, %v3800
    %v3967 = vadd.f32 %v3966, %v3808
    %v3968 = vadd.f32 %v3967, %v3816
    %v3969 = vadd.f32 %v3968, %v3824
    %v3970 = vadd.f32 %v3969, %v3832
    %v3971 = vadd.f32 %v3970, %v3840
    %v3972 = vadd.f32 %v3971, %v3848
    %v3973 = vadd.f32 %v3972, %v3856
    %v3974 = vadd.f32 %v3973, %v3864
    %v3975 = vadd.f32 %v3974, %v3872
    %v3976 = vadd.f32 %v3975, %v3880
    %v3977 = vadd.f32 %v3976, %v3888
    %v3978 = vadd.f32 %v3977, %v3896
    %v3979 = vrot.slane %v3978, 4
    %v3980 = vadd.f32 %v3978, %v3979
    %v3981 = vrot.slane %v3980, 2
    %v3982 = vadd.f32 %v3980, %v3981
    %v3983 = vrot.slane %v3982, 1
    %v3984 = vadd.f32 %v3982, %v3983
    %v3985 = vadd.f32 %v3777, %v3785
    %v3986 = vadd.f32 %v3985, %v3793
    %v3987 = vadd.f32 %v3986, %v3801
    %v3988 = vadd.f32 %v3987, %v3809
    %v3989 = vadd.f32 %v3988, %v3817
    %v3990 = vadd.f32 %v3989, %v3825
    %v3991 = vadd.f32 %v3990, %v3833
    %v3992 = vadd.f32 %v3991, %v3841
    %v3993 = vadd.f32 %v3992, %v3849
    %v3994 = vadd.f32 %v3993, %v3857
    %v3995 = vadd.f32 %v3994, %v3865
    %v3996 = vadd.f32 %v3995, %v3873
    %v3997 = vadd.f32 %v3996, %v3881
    %v3998 = vadd.f32 %v3997, %v3889
    %v3999 = vadd.f32 %v3998, %v3897
    %v4000 = vrot.slane %v3999, 4
    %v4001 = vadd.f32 %v3999, %v4000
    %v4002 = vrot.slane %v4001, 2
    %v4003 = vadd.f32 %v4001, %v4002
    %v4004 = vrot.slane %v4003, 1
    %v4005 = vadd.f32 %v4003, %v4004
    %v4006 = vadd.f32 %v3778, %v3786
    %v4007 = vadd.f32 %v4006, %v3794
    %v4008 = vadd.f32 %v4007, %v3802
    %v4009 = vadd.f32 %v4008, %v3810
    %v4010 = vadd.f32 %v4009, %v3818
    %v4011 = vadd.f32 %v4010, %v3826
    %v4012 = vadd.f32 %v4011, %v3834
    %v4013 = vadd.f32 %v4012, %v3842
    %v4014 = vadd.f32 %v4013, %v3850
    %v4015 = vadd.f32 %v4014, %v3858
    %v4016 = vadd.f32 %v4015, %v3866
    %v4017 = vadd.f32 %v4016, %v3874
    %v4018 = vadd.f32 %v4017, %v3882
    %v4019 = vadd.f32 %v4018, %v3890
    %v4020 = vadd.f32 %v4019, %v3898
    %v4021 = vrot.slane %v4020, 4
    %v4022 = vadd.f32 %v4020, %v4021
    %v4023 = vrot.slane %v4022, 2
    %v4024 = vadd.f32 %v4022, %v4023
    %v4025 = vrot.slane %v4024, 1
    %v4026 = vadd.f32 %v4024, %v4025
    %v4027 = vadd.f32 %v3779, %v3787
    %v4028 = vadd.f32 %v4027, %v3795
    %v4029 = vadd.f32 %v4028, %v3803
    %v4030 = vadd.f32 %v4029, %v3811
    %v4031 = vadd.f32 %v4030, %v3819
    %v4032 = vadd.f32 %v4031, %v3827
    %v4033 = vadd.f32 %v4032, %v3835
    %v4034 = vadd.f32 %v4033, %v3843
    %v4035 = vadd.f32 %v4034, %v3851
    %v4036 = vadd.f32 %v4035, %v3859
    %v4037 = vadd.f32 %v4036, %v3867
    %v4038 = vadd.f32 %v4037, %v3875
    %v4039 = vadd.f32 %v4038, %v3883
    %v4040 = vadd.f32 %v4039, %v3891
    %v4041 = vadd.f32 %v4040, %v3899
    %v4042 = vrot.slane %v4041, 4
    %v4043 = vadd.f32 %v4041, %v4042
    %v4044 = vrot.slane %v4043, 2
    %v4045 = vadd.f32 %v4043, %v4044
    %v4046 = vrot.slane %v4045, 1
    %v4047 = vadd.f32 %v4045, %v4046
    %v4048 = vadd.f32 %v3780, %v3788
    %v4049 = vadd.f32 %v4048, %v3796
    %v4050 = vadd.f32 %v4049, %v3804
    %v4051 = vadd.f32 %v4050, %v3812
    %v4052 = vadd.f32 %v4051, %v3820
    %v4053 = vadd.f32 %v4052, %v3828
    %v4054 = vadd.f32 %v4053, %v3836
    %v4055 = vadd.f32 %v4054, %v3844
    %v4056 = vadd.f32 %v4055, %v3852
    %v4057 = vadd.f32 %v4056, %v3860
    %v4058 = vadd.f32 %v4057, %v3868
    %v4059 = vadd.f32 %v4058, %v3876
    %v4060 = vadd.f32 %v4059, %v3884
    %v4061 = vadd.f32 %v4060, %v3892
    %v4062 = vadd.f32 %v4061, %v3900
    %v4063 = vrot.slane %v4062, 4
    %v4064 = vadd.f32 %v4062, %v4063
    %v4065 = vrot.slane %v4064, 2
    %v4066 = vadd.f32 %v4064, %v4065
    %v4067 = vrot.slane %v4066, 1
    %v4068 = vadd.f32 %v4066, %v4067
    %v4069 = vmul.f32 %v3921, %v296
    %v4070 = vmul.f32 %v3942, %v296
    %v4071 = vmul.f32 %v3963, %v296
    %v4072 = vmul.f32 %v3984, %v296
    %v4073 = vmul.f32 %v4005, %v296
    %v4074 = vmul.f32 %v4026, %v296
    %v4075 = vmul.f32 %v4047, %v296
    %v4076 = vmul.f32 %v4068, %v296
    %v4077 = vmul.f32 %v3765, %v3765
    %v4078 = vmul.f32 %v3766, %v3766
    %v4079 = vmul.f32 %v3767, %v3767
    %v4080 = vmul.f32 %v3768, %v3768
    %v4081 = vmul.f32 %v3769, %v3769
    %v4082 = vmul.f32 %v3770, %v3770
    %v4083 = vmul.f32 %v3771, %v3771
    %v4084 = vmul.f32 %v3772, %v3772
    %v4085 = vsub.f32 %v4069, %v4077
    %v4086 = vsub.f32 %v4070, %v4078
    %v4087 = vsub.f32 %v4071, %v4079
    %v4088 = vsub.f32 %v4072, %v4080
    %v4089 = vsub.f32 %v4073, %v4081
    %v4090 = vsub.f32 %v4074, %v4082
    %v4091 = vsub.f32 %v4075, %v4083
    %v4092 = vsub.f32 %v4076, %v4084
    %v4093 = vadd.f32 %v4085, 0.8
    %v4094 = vadd.f32 %v4086, 0.8
    %v4095 = vadd.f32 %v4087, 0.8
    %v4096 = vadd.f32 %v4088, 0.8
    %v4097 = vadd.f32 %v4089, 0.8
    %v4098 = vadd.f32 %v4090, 0.8
    %v4099 = vadd.f32 %v4091, 0.8
    %v4100 = vadd.f32 %v4092, 0.8
    %v4101 = vrsqrt.pop %v4093
    %v4102 = vrsqrt.pop %v4094
    %v4103 = vrsqrt.pop %v4095
    %v4104 = vrsqrt.pop %v4096
    %v4105 = vrsqrt.pop %v4097
    %v4106 = vrsqrt.pop %v4098
    %v4107 = vrsqrt.pop %v4099
    %v4108 = vrsqrt.pop %v4100
    %v4109 = vmul.f32 %v74, %v4101
    %v4110 = vmul.f32 %v75, %v4102
    %v4111 = vmul.f32 %v76, %v4103
    %v4112 = vmul.f32 %v77, %v4104
    %v4113 = vmul.f32 %v78, %v4105
    %v4114 = vmul.f32 %v79, %v4106
    %v4115 = vmul.f32 %v80, %v4107
    %v4116 = vmul.f32 %v81, %v4108
    %v4117 = vmul.f32 %v3765, %v4109
    %v4118 = vmul.f32 %v3766, %v4110
    %v4119 = vmul.f32 %v3767, %v4111
    %v4120 = vmul.f32 %v3768, %v4112
    %v4121 = vmul.f32 %v3769, %v4113
    %v4122 = vmul.f32 %v3770, %v4114
    %v4123 = vmul.f32 %v3771, %v4115
    %v4124 = vmul.f32 %v3772, %v4116
    %v4133 = vrot.slane %v4117, 7
    %v4134 = vrot.slane %v4118, 7
    %v4135 = vrot.slane %v4119, 7
    %v4136 = vrot.slane %v4120, 7
    %v4137 = vrot.slane %v4121, 7
    %v4138 = vrot.slane %v4122, 7
    %v4139 = vrot.slane %v4123, 7
    %v4140 = vrot.slane %v4124, 7
    %v4149 = vsub.f32 %v74, %v4133
    %v4150 = vsub.f32 %v75, %v4134
    %v4151 = vsub.f32 %v76, %v4135
    %v4152 = vsub.f32 %v77, %v4136
    %v4153 = vsub.f32 %v78, %v4137
    %v4154 = vsub.f32 %v79, %v4138
    %v4155 = vsub.f32 %v80, %v4139
    %v4156 = vsub.f32 %v81, %v4140
    %v4157 = vlaneseq
    %v4158 = vshrl.u32 %v4157, 7
    %v4159 = vsub.s32 6, %v4158
    %v4160 = vrot.slane %v4109, %v4159
    %v4161 = vlaneseq
    %v4162 = vshrl.u32 %v4161, 7
    %v4163 = vsub.s32 6, %v4162
    %v4164 = vrot.slane %v4110, %v4163
    %v4165 = vlaneseq
    %v4166 = vshrl.u32 %v4165, 7
    %v4167 = vsub.s32 6, %v4166
    %v4168 = vrot.slane %v4111, %v4167
    %v4169 = vlaneseq
    %v4170 = vshrl.u32 %v4169, 7
    %v4171 = vsub.s32 6, %v4170
    %v4172 = vrot.slane %v4112, %v4171
    %v4173 = vlaneseq
    %v4174 = vshrl.u32 %v4173, 7
    %v4175 = vsub.s32 6, %v4174
    %v4176 = vrot.slane %v4113, %v4175
    %v4177 = vlaneseq
    %v4178 = vshrl.u32 %v4177, 7
    %v4179 = vsub.s32 6, %v4178
    %v4180 = vrot.slane %v4114, %v4179
    %v4181 = vlaneseq
    %v4182 = vshrl.u32 %v4181, 7
    %v4183 = vsub.s32 6, %v4182
    %v4184 = vrot.slane %v4115, %v4183
    %v4185 = vlaneseq
    %v4186 = vshrl.u32 %v4185, 7
    %v4187 = vsub.s32 6, %v4186
    %v4188 = vrot.slane %v4116, %v4187
    %v4189 = vmul.f32 %v3469, %v4160
    %v4190 = vmul.f32 %v3470, %v4164
    %v4191 = vmul.f32 %v3471, %v4168
    %v4192 = vmul.f32 %v3472, %v4172
    %v4193 = vmul.f32 %v3473, %v4176
    %v4194 = vmul.f32 %v3474, %v4180
    %v4195 = vmul.f32 %v3475, %v4184
    %v4196 = vmul.f32 %v3476, %v4188
    %v4197 = vmul.f32 %v3477, %v4160
    %v4198 = vmul.f32 %v3478, %v4164
    %v4199 = vmul.f32 %v3479, %v4168
    %v4200 = vmul.f32 %v3480, %v4172
    %v4201 = vmul.f32 %v3481, %v4176
    %v4202 = vmul.f32 %v3482, %v4180
    %v4203 = vmul.f32 %v3483, %v4184
    %v4204 = vmul.f32 %v3484, %v4188
    %v4205 = vmul.f32 %v3485, %v4160
    %v4206 = vmul.f32 %v3486, %v4164
    %v4207 = vmul.f32 %v3487, %v4168
    %v4208 = vmul.f32 %v3488, %v4172
    %v4209 = vmul.f32 %v3489, %v4176
    %v4210 = vmul.f32 %v3490, %v4180
    %v4211 = vmul.f32 %v3491, %v4184
    %v4212 = vmul.f32 %v3492, %v4188
    %v4213 = vmul.f32 %v3493, %v4160
    %v4214 = vmul.f32 %v3494, %v4164
    %v4215 = vmul.f32 %v3495, %v4168
    %v4216 = vmul.f32 %v3496, %v4172
    %v4217 = vmul.f32 %v3497, %v4176
    %v4218 = vmul.f32 %v3498, %v4180
    %v4219 = vmul.f32 %v3499, %v4184
    %v4220 = vmul.f32 %v3500, %v4188
    %v4221 = vmul.f32 %v3501, %v4160
    %v4222 = vmul.f32 %v3502, %v4164
    %v4223 = vmul.f32 %v3503, %v4168
    %v4224 = vmul.f32 %v3504, %v4172
    %v4225 = vmul.f32 %v3505, %v4176
    %v4226 = vmul.f32 %v3506, %v4180
    %v4227 = vmul.f32 %v3507, %v4184
    %v4228 = vmul.f32 %v3508, %v4188
    %v4229 = vmul.f32 %v3509, %v4160
    %v4230 = vmul.f32 %v3510, %v4164
    %v4231 = vmul.f32 %v3511, %v4168
    %v4232 = vmul.f32 %v3512, %v4172
    %v4233 = vmul.f32 %v3513, %v4176
    %v4234 = vmul.f32 %v3514, %v4180
    %v4235 = vmul.f32 %v3515, %v4184
    %v4236 = vmul.f32 %v3516, %v4188
    %v4237 = vmul.f32 %v3517, %v4160
    %v4238 = vmul.f32 %v3518, %v4164
    %v4239 = vmul.f32 %v3519, %v4168
    %v4240 = vmul.f32 %v3520, %v4172
    %v4241 = vmul.f32 %v3521, %v4176
    %v4242 = vmul.f32 %v3522, %v4180
    %v4243 = vmul.f32 %v3523, %v4184
    %v4244 = vmul.f32 %v3524, %v4188
    %v4245 = vmul.f32 %v3525, %v4160
    %v4246 = vmul.f32 %v3526, %v4164
    %v4247 = vmul.f32 %v3527, %v4168
    %v4248 = vmul.f32 %v3528, %v4172
    %v4249 = vmul.f32 %v3529, %v4176
    %v4250 = vmul.f32 %v3530, %v4180
    %v4251 = vmul.f32 %v3531, %v4184
    %v4252 = vmul.f32 %v3532, %v4188
    %v4253 = vmul.f32 %v3533, %v4160
    %v4254 = vmul.f32 %v3534, %v4164
    %v4255 = vmul.f32 %v3535, %v4168
    %v4256 = vmul.f32 %v3536, %v4172
    %v4257 = vmul.f32 %v3537, %v4176
    %v4258 = vmul.f32 %v3538, %v4180
    %v4259 = vmul.f32 %v3539, %v4184
    %v4260 = vmul.f32 %v3540, %v4188
    %v4261 = vmul.f32 %v3541, %v4160
    %v4262 = vmul.f32 %v3542, %v4164
    %v4263 = vmul.f32 %v3543, %v4168
    %v4264 = vmul.f32 %v3544, %v4172
    %v4265 = vmul.f32 %v3545, %v4176
    %v4266 = vmul.f32 %v3546, %v4180
    %v4267 = vmul.f32 %v3547, %v4184
    %v4268 = vmul.f32 %v3548, %v4188
    %v4269 = vmul.f32 %v3549, %v4160
    %v4270 = vmul.f32 %v3550, %v4164
    %v4271 = vmul.f32 %v3551, %v4168
    %v4272 = vmul.f32 %v3552, %v4172
    %v4273 = vmul.f32 %v3553, %v4176
    %v4274 = vmul.f32 %v3554, %v4180
    %v4275 = vmul.f32 %v3555, %v4184
    %v4276 = vmul.f32 %v3556, %v4188
    %v4277 = vmul.f32 %v3557, %v4160
    %v4278 = vmul.f32 %v3558, %v4164
    %v4279 = vmul.f32 %v3559, %v4168
    %v4280 = vmul.f32 %v3560, %v4172
    %v4281 = vmul.f32 %v3561, %v4176
    %v4282 = vmul.f32 %v3562, %v4180
    %v4283 = vmul.f32 %v3563, %v4184
    %v4284 = vmul.f32 %v3564, %v4188
    %v4285 = vmul.f32 %v3565, %v4160
    %v4286 = vmul.f32 %v3566, %v4164
    %v4287 = vmul.f32 %v3567, %v4168
    %v4288 = vmul.f32 %v3568, %v4172
    %v4289 = vmul.f32 %v3569, %v4176
    %v4290 = vmul.f32 %v3570, %v4180
    %v4291 = vmul.f32 %v3571, %v4184
    %v4292 = vmul.f32 %v3572, %v4188
    %v4293 = vmul.f32 %v3573, %v4160
    %v4294 = vmul.f32 %v3574, %v4164
    %v4295 = vmul.f32 %v3575, %v4168
    %v4296 = vmul.f32 %v3576, %v4172
    %v4297 = vmul.f32 %v3577, %v4176
    %v4298 = vmul.f32 %v3578, %v4180
    %v4299 = vmul.f32 %v3579, %v4184
    %v4300 = vmul.f32 %v3580, %v4188
    %v4301 = vmul.f32 %v3581, %v4160
    %v4302 = vmul.f32 %v3582, %v4164
    %v4303 = vmul.f32 %v3583, %v4168
    %v4304 = vmul.f32 %v3584, %v4172
    %v4305 = vmul.f32 %v3585, %v4176
    %v4306 = vmul.f32 %v3586, %v4180
    %v4307 = vmul.f32 %v3587, %v4184
    %v4308 = vmul.f32 %v3588, %v4188
    %v4309 = vmul.f32 %v3589, %v4160
    %v4310 = vmul.f32 %v3590, %v4164
    %v4311 = vmul.f32 %v3591, %v4168
    %v4312 = vmul.f32 %v3592, %v4172
    %v4313 = vmul.f32 %v3593, %v4176
    %v4314 = vmul.f32 %v3594, %v4180
    %v4315 = vmul.f32 %v3595, %v4184
    %v4316 = vmul.f32 %v3596, %v4188
    %v4317 = vlaneseq
    %v4318 = vshrl.u32 %v4317, 7
    %v4319 = vsub.s32 7, %v4318
    %v4320 = vrot.slane %v4149, %v4319
    %v4321 = vlaneseq
    %v4322 = vshrl.u32 %v4321, 7
    %v4323 = vsub.s32 7, %v4322
    %v4324 = vrot.slane %v4150, %v4323
    %v4325 = vlaneseq
    %v4326 = vshrl.u32 %v4325, 7
    %v4327 = vsub.s32 7, %v4326
    %v4328 = vrot.slane %v4151, %v4327
    %v4329 = vlaneseq
    %v4330 = vshrl.u32 %v4329, 7
    %v4331 = vsub.s32 7, %v4330
    %v4332 = vrot.slane %v4152, %v4331
    %v4333 = vlaneseq
    %v4334 = vshrl.u32 %v4333, 7
    %v4335 = vsub.s32 7, %v4334
    %v4336 = vrot.slane %v4153, %v4335
    %v4337 = vlaneseq
    %v4338 = vshrl.u32 %v4337, 7
    %v4339 = vsub.s32 7, %v4338
    %v4340 = vrot.slane %v4154, %v4339
    %v4341 = vlaneseq
    %v4342 = vshrl.u32 %v4341, 7
    %v4343 = vsub.s32 7, %v4342
    %v4344 = vrot.slane %v4155, %v4343
    %v4345 = vlaneseq
    %v4346 = vshrl.u32 %v4345, 7
    %v4347 = vsub.s32 7, %v4346
    %v4348 = vrot.slane %v4156, %v4347
    %v4349 = vadd.f32 %v4189, %v4320
    %v4350 = vadd.f32 %v4190, %v4324
    %v4351 = vadd.f32 %v4191, %v4328
    %v4352 = vadd.f32 %v4192, %v4332
    %v4353 = vadd.f32 %v4193, %v4336
    %v4354 = vadd.f32 %v4194, %v4340
    %v4355 = vadd.f32 %v4195, %v4344
    %v4356 = vadd.f32 %v4196, %v4348
    %v4357 = vadd.f32 %v4197, %v4320
    %v4358 = vadd.f32 %v4198, %v4324
    %v4359 = vadd.f32 %v4199, %v4328
    %v4360 = vadd.f32 %v4200, %v4332
    %v4361 = vadd.f32 %v4201, %v4336
    %v4362 = vadd.f32 %v4202, %v4340
    %v4363 = vadd.f32 %v4203, %v4344
    %v4364 = vadd.f32 %v4204, %v4348
    %v4365 = vadd.f32 %v4205, %v4320
    %v4366 = vadd.f32 %v4206, %v4324
    %v4367 = vadd.f32 %v4207, %v4328
    %v4368 = vadd.f32 %v4208, %v4332
    %v4369 = vadd.f32 %v4209, %v4336
    %v4370 = vadd.f32 %v4210, %v4340
    %v4371 = vadd.f32 %v4211, %v4344
    %v4372 = vadd.f32 %v4212, %v4348
    %v4373 = vadd.f32 %v4213, %v4320
    %v4374 = vadd.f32 %v4214, %v4324
    %v4375 = vadd.f32 %v4215, %v4328
    %v4376 = vadd.f32 %v4216, %v4332
    %v4377 = vadd.f32 %v4217, %v4336
    %v4378 = vadd.f32 %v4218, %v4340
    %v4379 = vadd.f32 %v4219, %v4344
    %v4380 = vadd.f32 %v4220, %v4348
    %v4381 = vadd.f32 %v4221, %v4320
    %v4382 = vadd.f32 %v4222, %v4324
    %v4383 = vadd.f32 %v4223, %v4328
    %v4384 = vadd.f32 %v4224, %v4332
    %v4385 = vadd.f32 %v4225, %v4336
    %v4386 = vadd.f32 %v4226, %v4340
    %v4387 = vadd.f32 %v4227, %v4344
    %v4388 = vadd.f32 %v4228, %v4348
    %v4389 = vadd.f32 %v4229, %v4320
    %v4390 = vadd.f32 %v4230, %v4324
    %v4391 = vadd.f32 %v4231, %v4328
    %v4392 = vadd.f32 %v4232, %v4332
    %v4393 = vadd.f32 %v4233, %v4336
    %v4394 = vadd.f32 %v4234, %v4340
    %v4395 = vadd.f32 %v4235, %v4344
    %v4396 = vadd.f32 %v4236, %v4348
    %v4397 = vadd.f32 %v4237, %v4320
    %v4398 = vadd.f32 %v4238, %v4324
    %v4399 = vadd.f32 %v4239, %v4328
    %v4400 = vadd.f32 %v4240, %v4332
    %v4401 = vadd.f32 %v4241, %v4336
    %v4402 = vadd.f32 %v4242, %v4340
    %v4403 = vadd.f32 %v4243, %v4344
    %v4404 = vadd.f32 %v4244, %v4348
    %v4405 = vadd.f32 %v4245, %v4320
    %v4406 = vadd.f32 %v4246, %v4324
    %v4407 = vadd.f32 %v4247, %v4328
    %v4408 = vadd.f32 %v4248, %v4332
    %v4409 = vadd.f32 %v4249, %v4336
    %v4410 = vadd.f32 %v4250, %v4340
    %v4411 = vadd.f32 %v4251, %v4344
    %v4412 = vadd.f32 %v4252, %v4348
    %v4413 = vadd.f32 %v4253, %v4320
    %v4414 = vadd.f32 %v4254, %v4324
    %v4415 = vadd.f32 %v4255, %v4328
    %v4416 = vadd.f32 %v4256, %v4332
    %v4417 = vadd.f32 %v4257, %v4336
    %v4418 = vadd.f32 %v4258, %v4340
    %v4419 = vadd.f32 %v4259, %v4344
    %v4420 = vadd.f32 %v4260, %v4348
    %v4421 = vadd.f32 %v4261, %v4320
    %v4422 = vadd.f32 %v4262, %v4324
    %v4423 = vadd.f32 %v4263, %v4328
    %v4424 = vadd.f32 %v4264, %v4332
    %v4425 = vadd.f32 %v4265, %v4336
    %v4426 = vadd.f32 %v4266, %v4340
    %v4427 = vadd.f32 %v4267, %v4344
    %v4428 = vadd.f32 %v4268, %v4348
    %v4429 = vadd.f32 %v4269, %v4320
    %v4430 = vadd.f32 %v4270, %v4324
    %v4431 = vadd.f32 %v4271, %v4328
    %v4432 = vadd.f32 %v4272, %v4332
    %v4433 = vadd.f32 %v4273, %v4336
    %v4434 = vadd.f32 %v4274, %v4340
    %v4435 = vadd.f32 %v4275, %v4344
    %v4436 = vadd.f32 %v4276, %v4348
    %v4437 = vadd.f32 %v4277, %v4320
    %v4438 = vadd.f32 %v4278, %v4324
    %v4439 = vadd.f32 %v4279, %v4328
    %v4440 = vadd.f32 %v4280, %v4332
    %v4441 = vadd.f32 %v4281, %v4336
    %v4442 = vadd.f32 %v4282, %v4340
    %v4443 = vadd.f32 %v4283, %v4344
    %v4444 = vadd.f32 %v4284, %v4348
    %v4445 = vadd.f32 %v4285, %v4320
    %v4446 = vadd.f32 %v4286, %v4324
    %v4447 = vadd.f32 %v4287, %v4328
    %v4448 = vadd.f32 %v4288, %v4332
    %v4449 = vadd.f32 %v4289, %v4336
    %v4450 = vadd.f32 %v4290, %v4340
    %v4451 = vadd.f32 %v4291, %v4344
    %v4452 = vadd.f32 %v4292, %v4348
    %v4453 = vadd.f32 %v4293, %v4320
    %v4454 = vadd.f32 %v4294, %v4324
    %v4455 = vadd.f32 %v4295, %v4328
    %v4456 = vadd.f32 %v4296, %v4332
    %v4457 = vadd.f32 %v4297, %v4336
    %v4458 = vadd.f32 %v4298, %v4340
    %v4459 = vadd.f32 %v4299, %v4344
    %v4460 = vadd.f32 %v4300, %v4348
    %v4461 = vadd.f32 %v4301, %v4320
    %v4462 = vadd.f32 %v4302, %v4324
    %v4463 = vadd.f32 %v4303, %v4328
    %v4464 = vadd.f32 %v4304, %v4332
    %v4465 = vadd.f32 %v4305, %v4336
    %v4466 = vadd.f32 %v4306, %v4340
    %v4467 = vadd.f32 %v4307, %v4344
    %v4468 = vadd.f32 %v4308, %v4348
    %v4469 = vadd.f32 %v4309, %v4320
    %v4470 = vadd.f32 %v4310, %v4324
    %v4471 = vadd.f32 %v4311, %v4328
    %v4472 = vadd.f32 %v4312, %v4332
    %v4473 = vadd.f32 %v4313, %v4336
    %v4474 = vadd.f32 %v4314, %v4340
    %v4475 = vadd.f32 %v4315, %v4344
    %v4476 = vadd.f32 %v4316, %v4348
    %v4477 = vmul.f32 %v4349, 0.2
    %v4478 = vmul.f32 %v4350, 0.2
    %v4479 = vmul.f32 %v4351, 0.2
    %v4480 = vmul.f32 %v4352, 0.2
    %v4481 = vmul.f32 %v4353, 0.2
    %v4482 = vmul.f32 %v4354, 0.2
    %v4483 = vmul.f32 %v4355, 0.2
    %v4484 = vmul.f32 %v4356, 0.2
    %v4485 = vmul.f32 %v4357, 0.2
    %v4486 = vmul.f32 %v4358, 0.2
    %v4487 = vmul.f32 %v4359, 0.2
    %v4488 = vmul.f32 %v4360, 0.2
    %v4489 = vmul.f32 %v4361, 0.2
    %v4490 = vmul.f32 %v4362, 0.2
    %v4491 = vmul.f32 %v4363, 0.2
    %v4492 = vmul.f32 %v4364, 0.2
    %v4493 = vmul.f32 %v4365, 0.2
    %v4494 = vmul.f32 %v4366, 0.2
    %v4495 = vmul.f32 %v4367, 0.2
    %v4496 = vmul.f32 %v4368, 0.2
    %v4497 = vmul.f32 %v4369, 0.2
    %v4498 = vmul.f32 %v4370, 0.2
    %v4499 = vmul.f32 %v4371, 0.2
    %v4500 = vmul.f32 %v4372, 0.2
    %v4501 = vmul.f32 %v4373, 0.2
    %v4502 = vmul.f32 %v4374, 0.2
    %v4503 = vmul.f32 %v4375, 0.2
    %v4504 = vmul.f32 %v4376, 0.2
    %v4505 = vmul.f32 %v4377, 0.2
    %v4506 = vmul.f32 %v4378, 0.2
    %v4507 = vmul.f32 %v4379, 0.2
    %v4508 = vmul.f32 %v4380, 0.2
    %v4509 = vmul.f32 %v4381, 0.2
    %v4510 = vmul.f32 %v4382, 0.2
    %v4511 = vmul.f32 %v4383, 0.2
    %v4512 = vmul.f32 %v4384, 0.2
    %v4513 = vmul.f32 %v4385, 0.2
    %v4514 = vmul.f32 %v4386, 0.2
    %v4515 = vmul.f32 %v4387, 0.2
    %v4516 = vmul.f32 %v4388, 0.2
    %v4517 = vmul.f32 %v4389, 0.2
    %v4518 = vmul.f32 %v4390, 0.2
    %v4519 = vmul.f32 %v4391, 0.2
    %v4520 = vmul.f32 %v4392, 0.2
    %v4521 = vmul.f32 %v4393, 0.2
    %v4522 = vmul.f32 %v4394, 0.2
    %v4523 = vmul.f32 %v4395, 0.2
    %v4524 = vmul.f32 %v4396, 0.2
    %v4525 = vmul.f32 %v4397, 0.2
    %v4526 = vmul.f32 %v4398, 0.2
    %v4527 = vmul.f32 %v4399, 0.2
    %v4528 = vmul.f32 %v4400, 0.2
    %v4529 = vmul.f32 %v4401, 0.2
    %v4530 = vmul.f32 %v4402, 0.2
    %v4531 = vmul.f32 %v4403, 0.2
    %v4532 = vmul.f32 %v4404, 0.2
    %v4533 = vmul.f32 %v4405, 0.2
    %v4534 = vmul.f32 %v4406, 0.2
    %v4535 = vmul.f32 %v4407, 0.2
    %v4536 = vmul.f32 %v4408, 0.2
    %v4537 = vmul.f32 %v4409, 0.2
    %v4538 = vmul.f32 %v4410, 0.2
    %v4539 = vmul.f32 %v4411, 0.2
    %v4540 = vmul.f32 %v4412, 0.2
    %v4541 = vmul.f32 %v4413, 0.2
    %v4542 = vmul.f32 %v4414, 0.2
    %v4543 = vmul.f32 %v4415, 0.2
    %v4544 = vmul.f32 %v4416, 0.2
    %v4545 = vmul.f32 %v4417, 0.2
    %v4546 = vmul.f32 %v4418, 0.2
    %v4547 = vmul.f32 %v4419, 0.2
    %v4548 = vmul.f32 %v4420, 0.2
    %v4549 = vmul.f32 %v4421, 0.2
    %v4550 = vmul.f32 %v4422, 0.2
    %v4551 = vmul.f32 %v4423, 0.2
    %v4552 = vmul.f32 %v4424, 0.2
    %v4553 = vmul.f32 %v4425, 0.2
    %v4554 = vmul.f32 %v4426, 0.2
    %v4555 = vmul.f32 %v4427, 0.2
    %v4556 = vmul.f32 %v4428, 0.2
    %v4557 = vmul.f32 %v4429, 0.2
    %v4558 = vmul.f32 %v4430, 0.2
    %v4559 = vmul.f32 %v4431, 0.2
    %v4560 = vmul.f32 %v4432, 0.2
    %v4561 = vmul.f32 %v4433, 0.2
    %v4562 = vmul.f32 %v4434, 0.2
    %v4563 = vmul.f32 %v4435, 0.2
    %v4564 = vmul.f32 %v4436, 0.2
    %v4565 = vmul.f32 %v4437, 0.2
    %v4566 = vmul.f32 %v4438, 0.2
    %v4567 = vmul.f32 %v4439, 0.2
    %v4568 = vmul.f32 %v4440, 0.2
    %v4569 = vmul.f32 %v4441, 0.2
    %v4570 = vmul.f32 %v4442, 0.2
    %v4571 = vmul.f32 %v4443, 0.2
    %v4572 = vmul.f32 %v4444, 0.2
    %v4573 = vmul.f32 %v4445, 0.2
    %v4574 = vmul.f32 %v4446, 0.2
    %v4575 = vmul.f32 %v4447, 0.2
    %v4576 = vmul.f32 %v4448, 0.2
    %v4577 = vmul.f32 %v4449, 0.2
    %v4578 = vmul.f32 %v4450, 0.2
    %v4579 = vmul.f32 %v4451, 0.2
    %v4580 = vmul.f32 %v4452, 0.2
    %v4581 = vmul.f32 %v4453, 0.2
    %v4582 = vmul.f32 %v4454, 0.2
    %v4583 = vmul.f32 %v4455, 0.2
    %v4584 = vmul.f32 %v4456, 0.2
    %v4585 = vmul.f32 %v4457, 0.2
    %v4586 = vmul.f32 %v4458, 0.2
    %v4587 = vmul.f32 %v4459, 0.2
    %v4588 = vmul.f32 %v4460, 0.2
    %v4589 = vmul.f32 %v4461, 0.2
    %v4590 = vmul.f32 %v4462, 0.2
    %v4591 = vmul.f32 %v4463, 0.2
    %v4592 = vmul.f32 %v4464, 0.2
    %v4593 = vmul.f32 %v4465, 0.2
    %v4594 = vmul.f32 %v4466, 0.2
    %v4595 = vmul.f32 %v4467, 0.2
    %v4596 = vmul.f32 %v4468, 0.2
    %v4597 = vmul.f32 %v4469, 0.2
    %v4598 = vmul.f32 %v4470, 0.2
    %v4599 = vmul.f32 %v4471, 0.2
    %v4600 = vmul.f32 %v4472, 0.2
    %v4601 = vmul.f32 %v4473, 0.2
    %v4602 = vmul.f32 %v4474, 0.2
    %v4603 = vmul.f32 %v4475, 0.2
    %v4604 = vmul.f32 %v4476, 0.2
    %v4605 = vmax.f32 %v4349, %v4477
    %v4606 = vmax.f32 %v4350, %v4478
    %v4607 = vmax.f32 %v4351, %v4479
    %v4608 = vmax.f32 %v4352, %v4480
    %v4609 = vmax.f32 %v4353, %v4481
    %v4610 = vmax.f32 %v4354, %v4482
    %v4611 = vmax.f32 %v4355, %v4483
    %v4612 = vmax.f32 %v4356, %v4484
    %v4613 = vmax.f32 %v4357, %v4485
    %v4614 = vmax.f32 %v4358, %v4486
    %v4615 = vmax.f32 %v4359, %v4487
    %v4616 = vmax.f32 %v4360, %v4488
    %v4617 = vmax.f32 %v4361, %v4489
    %v4618 = vmax.f32 %v4362, %v4490
    %v4619 = vmax.f32 %v4363, %v4491
    %v4620 = vmax.f32 %v4364, %v4492
    %v4621 = vmax.f32 %v4365, %v4493
    %v4622 = vmax.f32 %v4366, %v4494
    %v4623 = vmax.f32 %v4367, %v4495
    %v4624 = vmax.f32 %v4368, %v4496
    %v4625 = vmax.f32 %v4369, %v4497
    %v4626 = vmax.f32 %v4370, %v4498
    %v4627 = vmax.f32 %v4371, %v4499
    %v4628 = vmax.f32 %v4372, %v4500
    %v4629 = vmax.f32 %v4373, %v4501
    %v4630 = vmax.f32 %v4374, %v4502
    %v4631 = vmax.f32 %v4375, %v4503
    %v4632 = vmax.f32 %v4376, %v4504
    %v4633 = vmax.f32 %v4377, %v4505
    %v4634 = vmax.f32 %v4378, %v4506
    %v4635 = vmax.f32 %v4379, %v4507
    %v4636 = vmax.f32 %v4380, %v4508
    %v4637 = vmax.f32 %v4381, %v4509
    %v4638 = vmax.f32 %v4382, %v4510
    %v4639 = vmax.f32 %v4383, %v4511
    %v4640 = vmax.f32 %v4384, %v4512
    %v4641 = vmax.f32 %v4385, %v4513
    %v4642 = vmax.f32 %v4386, %v4514
    %v4643 = vmax.f32 %v4387, %v4515
    %v4644 = vmax.f32 %v4388, %v4516
    %v4645 = vmax.f32 %v4389, %v4517
    %v4646 = vmax.f32 %v4390, %v4518
    %v4647 = vmax.f32 %v4391, %v4519
    %v4648 = vmax.f32 %v4392, %v4520
    %v4649 = vmax.f32 %v4393, %v4521
    %v4650 = vmax.f32 %v4394, %v4522
    %v4651 = vmax.f32 %v4395, %v4523
    %v4652 = vmax.f32 %v4396, %v4524
    %v4653 = vmax.f32 %v4397, %v4525
    %v4654 = vmax.f32 %v4398, %v4526
    %v4655 = vmax.f32 %v4399, %v4527
    %v4656 = vmax.f32 %v4400, %v4528
    %v4657 = vmax.f32 %v4401, %v4529
    %v4658 = vmax.f32 %v4402, %v4530
    %v4659 = vmax.f32 %v4403, %v4531
    %v4660 = vmax.f32 %v4404, %v4532
    %v4661 = vmax.f32 %v4405, %v4533
    %v4662 = vmax.f32 %v4406, %v4534
    %v4663 = vmax.f32 %v4407, %v4535
    %v4664 = vmax.f32 %v4408, %v4536
    %v4665 = vmax.f32 %v4409, %v4537
    %v4666 = vmax.f32 %v4410, %v4538
    %v4667 = vmax.f32 %v4411, %v4539
    %v4668 = vmax.f32 %v4412, %v4540
    %v4669 = vmax.f32 %v4413, %v4541
    %v4670 = vmax.f32 %v4414, %v4542
    %v4671 = vmax.f32 %v4415, %v4543
    %v4672 = vmax.f32 %v4416, %v4544
    %v4673 = vmax.f32 %v4417, %v4545
    %v4674 = vmax.f32 %v4418, %v4546
    %v4675 = vmax.f32 %v4419, %v4547
    %v4676 = vmax.f32 %v4420, %v4548
    %v4677 = vmax.f32 %v4421, %v4549
    %v4678 = vmax.f32 %v4422, %v4550
    %v4679 = vmax.f32 %v4423, %v4551
    %v4680 = vmax.f32 %v4424, %v4552
    %v4681 = vmax.f32 %v4425, %v4553
    %v4682 = vmax.f32 %v4426, %v4554
    %v4683 = vmax.f32 %v4427, %v4555
    %v4684 = vmax.f32 %v4428, %v4556
    %v4685 = vmax.f32 %v4429, %v4557
    %v4686 = vmax.f32 %v4430, %v4558
    %v4687 = vmax.f32 %v4431, %v4559
    %v4688 = vmax.f32 %v4432, %v4560
    %v4689 = vmax.f32 %v4433, %v4561
    %v4690 = vmax.f32 %v4434, %v4562
    %v4691 = vmax.f32 %v4435, %v4563
    %v4692 = vmax.f32 %v4436, %v4564
    %v4693 = vmax.f32 %v4437, %v4565
    %v4694 = vmax.f32 %v4438, %v4566
    %v4695 = vmax.f32 %v4439, %v4567
    %v4696 = vmax.f32 %v4440, %v4568
    %v4697 = vmax.f32 %v4441, %v4569
    %v4698 = vmax.f32 %v4442, %v4570
    %v4699 = vmax.f32 %v4443, %v4571
    %v4700 = vmax.f32 %v4444, %v4572
    %v4701 = vmax.f32 %v4445, %v4573
    %v4702 = vmax.f32 %v4446, %v4574
    %v4703 = vmax.f32 %v4447, %v4575
    %v4704 = vmax.f32 %v4448, %v4576
    %v4705 = vmax.f32 %v4449, %v4577
    %v4706 = vmax.f32 %v4450, %v4578
    %v4707 = vmax.f32 %v4451, %v4579
    %v4708 = vmax.f32 %v4452, %v4580
    %v4709 = vmax.f32 %v4453, %v4581
    %v4710 = vmax.f32 %v4454, %v4582
    %v4711 = vmax.f32 %v4455, %v4583
    %v4712 = vmax.f32 %v4456, %v4584
    %v4713 = vmax.f32 %v4457, %v4585
    %v4714 = vmax.f32 %v4458, %v4586
    %v4715 = vmax.f32 %v4459, %v4587
    %v4716 = vmax.f32 %v4460, %v4588
    %v4717 = vmax.f32 %v4461, %v4589
    %v4718 = vmax.f32 %v4462, %v4590
    %v4719 = vmax.f32 %v4463, %v4591
    %v4720 = vmax.f32 %v4464, %v4592
    %v4721 = vmax.f32 %v4465, %v4593
    %v4722 = vmax.f32 %v4466, %v4594
    %v4723 = vmax.f32 %v4467, %v4595
    %v4724 = vmax.f32 %v4468, %v4596
    %v4725 = vmax.f32 %v4469, %v4597
    %v4726 = vmax.f32 %v4470, %v4598
    %v4727 = vmax.f32 %v4471, %v4599
    %v4728 = vmax.f32 %v4472, %v4600
    %v4729 = vmax.f32 %v4473, %v4601
    %v4730 = vmax.f32 %v4474, %v4602
    %v4731 = vmax.f32 %v4475, %v4603
    %v4732 = vmax.f32 %v4476, %v4604
    %v4733 = vpack.c.bf16 %v4613, %v4605
    %v4734 = vpack.c.bf16 %v4614, %v4606
    %v4735 = vpack.c.bf16 %v4615, %v4607
    %v4736 = vpack.c.bf16 %v4616, %v4608
    %v4737 = vpack.c.bf16 %v4617, %v4609
    %v4738 = vpack.c.bf16 %v4618, %v4610
    %v4739 = vpack.c.bf16 %v4619, %v4611
    %v4740 = vpack.c.bf16 %v4620, %v4612
    %v4741 = vpack.c.bf16 %v4629, %v4621
    %v4742 = vpack.c.bf16 %v4630, %v4622
    %v4743 = vpack.c.bf16 %v4631, %v4623
    %v4744 = vpack.c.bf16 %v4632, %v4624
    %v4745 = vpack.c.bf16 %v4633, %v4625
    %v4746 = vpack.c.bf16 %v4634, %v4626
    %v4747 = vpack.c.bf16 %v4635, %v4627
    %v4748 = vpack.c.bf16 %v4636, %v4628
    %v4749 = vpack.c.bf16 %v4645, %v4637
    %v4750 = vpack.c.bf16 %v4646, %v4638
    %v4751 = vpack.c.bf16 %v4647, %v4639
    %v4752 = vpack.c.bf16 %v4648, %v4640
    %v4753 = vpack.c.bf16 %v4649, %v4641
    %v4754 = vpack.c.bf16 %v4650, %v4642
    %v4755 = vpack.c.bf16 %v4651, %v4643
    %v4756 = vpack.c.bf16 %v4652, %v4644
    %v4757 = vpack.c.bf16 %v4661, %v4653
    %v4758 = vpack.c.bf16 %v4662, %v4654
    %v4759 = vpack.c.bf16 %v4663, %v4655
    %v4760 = vpack.c.bf16 %v4664, %v4656
    %v4761 = vpack.c.bf16 %v4665, %v4657
    %v4762 = vpack.c.bf16 %v4666, %v4658
    %v4763 = vpack.c.bf16 %v4667, %v4659
    %v4764 = vpack.c.bf16 %v4668, %v4660
    %v4765 = vpack.c.bf16 %v4677, %v4669
    %v4766 = vpack.c.bf16 %v4678, %v4670
    %v4767 = vpack.c.bf16 %v4679, %v4671
    %v4768 = vpack.c.bf16 %v4680, %v4672
    %v4769 = vpack.c.bf16 %v4681, %v4673
    %v4770 = vpack.c.bf16 %v4682, %v4674
    %v4771 = vpack.c.bf16 %v4683, %v4675
    %v4772 = vpack.c.bf16 %v4684, %v4676
    %v4773 = vpack.c.bf16 %v4693, %v4685
    %v4774 = vpack.c.bf16 %v4694, %v4686
    %v4775 = vpack.c.bf16 %v4695, %v4687
    %v4776 = vpack.c.bf16 %v4696, %v4688
    %v4777 = vpack.c.bf16 %v4697, %v4689
    %v4778 = vpack.c.bf16 %v4698, %v4690
    %v4779 = vpack.c.bf16 %v4699, %v4691
    %v4780 = vpack.c.bf16 %v4700, %v4692
    %v4781 = vpack.c.bf16 %v4709, %v4701
    %v4782 = vpack.c.bf16 %v4710, %v4702
    %v4783 = vpack.c.bf16 %v4711, %v4703
    %v4784 = vpack.c.bf16 %v4712, %v4704
    %v4785 = vpack.c.bf16 %v4713, %v4705
    %v4786 = vpack.c.bf16 %v4714, %v4706
    %v4787 = vpack.c.bf16 %v4715, %v4707
    %v4788 = vpack.c.bf16 %v4716, %v4708
    %v4789 = vpack.c.bf16 %v4725, %v4717
    %v4790 = vpack.c.bf16 %v4726, %v4718
    %v4791 = vpack.c.bf16 %v4727, %v4719
    %v4792 = vpack.c.bf16 %v4728, %v4720
    %v4793 = vpack.c.bf16 %v4729, %v4721
    %v4794 = vpack.c.bf16 %v4730, %v4722
    %v4795 = vpack.c.bf16 %v4731, %v4723
    %v4796 = vpack.c.bf16 %v4732, %v4724
    %s4797 = smul.u32 2, 128
    %s4798 = smul.u32 %s4797, 1
    %s4799 = sshll.u32 %s4798, 4
    %4800 = dma.done %s48, %s4799
    %v4801 = vld [vmem:[#allocation3] sm:$0xff]
    %v4802 = vld [vmem:[#allocation3 + $0x8] sm:$0xff]
    %v4803 = vld [vmem:[#allocation3 + $0x10] sm:$0xff]
    %v4804 = vld [vmem:[#allocation3 + $0x18] sm:$0xff]
    %v4805 = vld [vmem:[#allocation3 + $0x20] sm:$0xff]
    %v4806 = vld [vmem:[#allocation3 + $0x28] sm:$0xff]
    %v4807 = vld [vmem:[#allocation3 + $0x30] sm:$0xff]
    %v4808 = vld [vmem:[#allocation3 + $0x38] sm:$0xff]
    %v4809 = vld [vmem:[#allocation3 + $0x40] sm:$0xff]
    %v4810 = vld [vmem:[#allocation3 + $0x48] sm:$0xff]
    %v4811 = vld [vmem:[#allocation3 + $0x50] sm:$0xff]
    %v4812 = vld [vmem:[#allocation3 + $0x58] sm:$0xff]
    %v4813 = vld [vmem:[#allocation3 + $0x60] sm:$0xff]
    %v4814 = vld [vmem:[#allocation3 + $0x68] sm:$0xff]
    %v4815 = vld [vmem:[#allocation3 + $0x70] sm:$0xff]
    %v4816 = vld [vmem:[#allocation3 + $0x78] sm:$0xff]
    %v4817 = vld [vmem:[#allocation3 + $0x80] sm:$0xff]
    %v4818 = vld [vmem:[#allocation3 + $0x88] sm:$0xff]
    %v4819 = vld [vmem:[#allocation3 + $0x90] sm:$0xff]
    %v4820 = vld [vmem:[#allocation3 + $0x98] sm:$0xff]
    %v4821 = vld [vmem:[#allocation3 + $0xa0] sm:$0xff]
    %v4822 = vld [vmem:[#allocation3 + $0xa8] sm:$0xff]
    %v4823 = vld [vmem:[#allocation3 + $0xb0] sm:$0xff]
    %v4824 = vld [vmem:[#allocation3 + $0xb8] sm:$0xff]
    %v4825 = vld [vmem:[#allocation3 + $0xc0] sm:$0xff]
    %v4826 = vld [vmem:[#allocation3 + $0xc8] sm:$0xff]
    %v4827 = vld [vmem:[#allocation3 + $0xd0] sm:$0xff]
    %v4828 = vld [vmem:[#allocation3 + $0xd8] sm:$0xff]
    %v4829 = vld [vmem:[#allocation3 + $0xe0] sm:$0xff]
    %v4830 = vld [vmem:[#allocation3 + $0xe8] sm:$0xff]
    %v4831 = vld [vmem:[#allocation3 + $0xf0] sm:$0xff]
    %v4832 = vld [vmem:[#allocation3 + $0xf8] sm:$0xff]
    %v4833 = vunpack.c.l.s8.bf16 %v4801
    %v4834 = vunpack.c.h.s8.bf16 %v4801
    %v4835 = vunpack.c.l.s8.bf16 %v4802
    %v4836 = vunpack.c.h.s8.bf16 %v4802
    %v4837 = vunpack.c.l.s8.bf16 %v4803
    %v4838 = vunpack.c.h.s8.bf16 %v4803
    %v4839 = vunpack.c.l.s8.bf16 %v4804
    %v4840 = vunpack.c.h.s8.bf16 %v4804
    %v4841 = vunpack.c.l.s8.bf16 %v4805
    %v4842 = vunpack.c.h.s8.bf16 %v4805
    %v4843 = vunpack.c.l.s8.bf16 %v4806
    %v4844 = vunpack.c.h.s8.bf16 %v4806
    %v4845 = vunpack.c.l.s8.bf16 %v4807
    %v4846 = vunpack.c.h.s8.bf16 %v4807
    %v4847 = vunpack.c.l.s8.bf16 %v4808
    %v4848 = vunpack.c.h.s8.bf16 %v4808
    %v4849 = vunpack.c.l.s8.bf16 %v4809
    %v4850 = vunpack.c.h.s8.bf16 %v4809
    %v4851 = vunpack.c.l.s8.bf16 %v4810
    %v4852 = vunpack.c.h.s8.bf16 %v4810
    %v4853 = vunpack.c.l.s8.bf16 %v4811
    %v4854 = vunpack.c.h.s8.bf16 %v4811
    %v4855 = vunpack.c.l.s8.bf16 %v4812
    %v4856 = vunpack.c.h.s8.bf16 %v4812
    %v4857 = vunpack.c.l.s8.bf16 %v4813
    %v4858 = vunpack.c.h.s8.bf16 %v4813
    %v4859 = vunpack.c.l.s8.bf16 %v4814
    %v4860 = vunpack.c.h.s8.bf16 %v4814
    %v4861 = vunpack.c.l.s8.bf16 %v4815
    %v4862 = vunpack.c.h.s8.bf16 %v4815
    %v4863 = vunpack.c.l.s8.bf16 %v4816
    %v4864 = vunpack.c.h.s8.bf16 %v4816
    %v4865 = vunpack.c.l.s8.bf16 %v4817
    %v4866 = vunpack.c.h.s8.bf16 %v4817
    %v4867 = vunpack.c.l.s8.bf16 %v4818
    %v4868 = vunpack.c.h.s8.bf16 %v4818
    %v4869 = vunpack.c.l.s8.bf16 %v4819
    %v4870 = vunpack.c.h.s8.bf16 %v4819
    %v4871 = vunpack.c.l.s8.bf16 %v4820
    %v4872 = vunpack.c.h.s8.bf16 %v4820
    %v4873 = vunpack.c.l.s8.bf16 %v4821
    %v4874 = vunpack.c.h.s8.bf16 %v4821
    %v4875 = vunpack.c.l.s8.bf16 %v4822
    %v4876 = vunpack.c.h.s8.bf16 %v4822
    %v4877 = vunpack.c.l.s8.bf16 %v4823
    %v4878 = vunpack.c.h.s8.bf16 %v4823
    %v4879 = vunpack.c.l.s8.bf16 %v4824
    %v4880 = vunpack.c.h.s8.bf16 %v4824
    %v4881 = vunpack.c.l.s8.bf16 %v4825
    %v4882 = vunpack.c.h.s8.bf16 %v4825
    %v4883 = vunpack.c.l.s8.bf16 %v4826
    %v4884 = vunpack.c.h.s8.bf16 %v4826
    %v4885 = vunpack.c.l.s8.bf16 %v4827
    %v4886 = vunpack.c.h.s8.bf16 %v4827
    %v4887 = vunpack.c.l.s8.bf16 %v4828
    %v4888 = vunpack.c.h.s8.bf16 %v4828
    %v4889 = vunpack.c.l.s8.bf16 %v4829
    %v4890 = vunpack.c.h.s8.bf16 %v4829
    %v4891 = vunpack.c.l.s8.bf16 %v4830
    %v4892 = vunpack.c.h.s8.bf16 %v4830
    %v4893 = vunpack.c.l.s8.bf16 %v4831
    %v4894 = vunpack.c.h.s8.bf16 %v4831
    %v4895 = vunpack.c.l.s8.bf16 %v4832
    %v4896 = vunpack.c.h.s8.bf16 %v4832
    %4897 = vmatprep.subr.bf16.mxu0 0
    %4898 = vmatpush1.bf16.msra.mxu0 %v4833
    %4899 = vmatprep.subr.bf16.mxu0 0
    %4900 = vmatpush1.bf16.msra.mxu0 %v4834
    %4901 = vmatprep.subr.bf16.mxu0 0
    %4902 = vmatpush1.bf16.msra.mxu0 %v4835
    %4903 = vmatprep.subr.bf16.mxu0 0
    %4904 = vmatpush1.bf16.msra.mxu0 %v4836
    %4905 = vmatprep.subr.bf16.mxu0 0
    %4906 = vmatpush1.bf16.msra.mxu0 %v4837
    %4907 = vmatprep.subr.bf16.mxu0 0
    %4908 = vmatpush1.bf16.msra.mxu0 %v4838
    %4909 = vmatprep.subr.bf16.mxu0 0
    %4910 = vmatpush1.bf16.msra.mxu0 %v4839
    %4911 = vmatprep.subr.bf16.mxu0 0
    %4912 = vmatpush1.bf16.msra.mxu0 %v4840
    %4913 = vmatprep.subr.bf16.mxu0 0
    %4914 = vmatpush1.bf16.msra.mxu0 %v4841
    %4915 = vmatprep.subr.bf16.mxu0 0
    %4916 = vmatpush1.bf16.msra.mxu0 %v4842
    %4917 = vmatprep.subr.bf16.mxu0 0
    %4918 = vmatpush1.bf16.msra.mxu0 %v4843
    %4919 = vmatprep.subr.bf16.mxu0 0
    %4920 = vmatpush1.bf16.msra.mxu0 %v4844
    %4921 = vmatprep.subr.bf16.mxu0 0
    %4922 = vmatpush1.bf16.msra.mxu0 %v4845
    %4923 = vmatprep.subr.bf16.mxu0 0
    %4924 = vmatpush1.bf16.msra.mxu0 %v4846
    %4925 = vmatprep.subr.bf16.mxu0 0
    %4926 = vmatpush1.bf16.msra.mxu0 %v4847
    %4927 = vmatprep.subr.bf16.mxu0 0
    %4928 = vmatpush1.bf16.msra.mxu0 %v4848
    %4929 = vmatprep.mubr.bf16.mxu0 %v4734
    %4930 = vmatmul.mubr.bf16.gmra.mrb[0].mxu0 %v4733
    %v4931 = vpop.f32.mrb[0].mxu0
    %v4932 = vadd.f32 0.0, %v4931
    %v4933 = vpop.f32.mrb[0].mxu0
    %v4934 = vpop.f32.mrb[0].mxu0
    %v4935 = vadd.f32 0.0, %v4934
    %v4936 = vpop.f32.mrb[0].mxu0
    %4937 = vmatprep.mubr.bf16.mxu0 %v4742
    %4938 = vmatmul.mubr.bf16.gmra.mrb[0].mxu0 %v4741
    %v4939 = vpop.f32.mrb[0].mxu0
    %v4940 = vadd.f32 0.0, %v4939
    %v4941 = vpop.f32.mrb[0].mxu0
    %v4942 = vpop.f32.mrb[0].mxu0
    %v4943 = vadd.f32 0.0, %v4942
    %v4944 = vpop.f32.mrb[0].mxu0
    %4945 = vmatprep.mubr.bf16.mxu0 %v4750
    %4946 = vmatmul.mubr.bf16.gmra.mrb[0].mxu0 %v4749
    %v4947 = vpop.f32.mrb[0].mxu0
    %v4948 = vadd.f32 0.0, %v4947
    %v4949 = vpop.f32.mrb[0].mxu0
    %v4950 = vpop.f32.mrb[0].mxu0
    %v4951 = vadd.f32 0.0, %v4950
    %v4952 = vpop.f32.mrb[0].mxu0
    %4953 = vmatprep.mubr.bf16.mxu0 %v4758
    %4954 = vmatmul.mubr.bf16.gmra.mrb[0].mxu0 %v4757
    %v4955 = vpop.f32.mrb[0].mxu0
    %v4956 = vadd.f32 0.0, %v4955
    %v4957 = vpop.f32.mrb[0].mxu0
    %v4958 = vpop.f32.mrb[0].mxu0
    %v4959 = vadd.f32 0.0, %v4958
    %v4960 = vpop.f32.mrb[0].mxu0
    %4961 = vmatprep.mubr.bf16.mxu0 %v4766
    %4962 = vmatmul.mubr.bf16.gmra.mrb[0].mxu0 %v4765
    %v4963 = vpop.f32.mrb[0].mxu0
    %v4964 = vadd.f32 0.0, %v4963
    %v4965 = vpop.f32.mrb[0].mxu0
    %v4966 = vpop.f32.mrb[0].mxu0
    %v4967 = vadd.f32 0.0, %v4966
    %v4968 = vpop.f32.mrb[0].mxu0
    %4969 = vmatprep.mubr.bf16.mxu0 %v4774
    %4970 = vmatmul.mubr.bf16.gmra.mrb[0].mxu0 %v4773
    %v4971 = vpop.f32.mrb[0].mxu0
    %v4972 = vadd.f32 0.0, %v4971
    %v4973 = vpop.f32.mrb[0].mxu0
    %v4974 = vpop.f32.mrb[0].mxu0
    %v4975 = vadd.f32 0.0, %v4974
    %v4976 = vpop.f32.mrb[0].mxu0
    %4977 = vmatprep.mubr.bf16.mxu0 %v4782
    %4978 = vmatmul.mubr.bf16.gmra.mrb[0].mxu0 %v4781
    %v4979 = vpop.f32.mrb[0].mxu0
    %v4980 = vadd.f32 0.0, %v4979
    %v4981 = vpop.f32.mrb[0].mxu0
    %v4982 = vpop.f32.mrb[0].mxu0
    %v4983 = vadd.f32 0.0, %v4982
    %v4984 = vpop.f32.mrb[0].mxu0
    %4985 = vmatprep.mubr.bf16.mxu0 %v4790
    %4986 = vmatmul.mubr.bf16.gmra.mrb[0].mxu0 %v4789
    %v4987 = vpop.f32.mrb[0].mxu0
    %v4988 = vadd.f32 0.0, %v4987
    %v4989 = vpop.f32.mrb[0].mxu0
    %v4990 = vpop.f32.mrb[0].mxu0
    %v4991 = vadd.f32 0.0, %v4990
    %v4992 = vpop.f32.mrb[0].mxu0
    %4993 = vdwg.mxu0
    %4994 = vmatprep.subr.bf16.mxu0 0
    %4995 = vmatpush1.bf16.msra.mxu0 %v4849
    %4996 = vmatprep.subr.bf16.mxu0 0
    %4997 = vmatpush1.bf16.msra.mxu0 %v4850
    %4998 = vmatprep.subr.bf16.mxu0 0
    %4999 = vmatpush1.bf16.msra.mxu0 %v4851
    %5000 = vmatprep.subr.bf16.mxu0 0
    %5001 = vmatpush1.bf16.msra.mxu0 %v4852
    %5002 = vmatprep.subr.bf16.mxu0 0
    %5003 = vmatpush1.bf16.msra.mxu0 %v4853
    %5004 = vmatprep.subr.bf16.mxu0 0
    %5005 = vmatpush1.bf16.msra.mxu0 %v4854
    %5006 = vmatprep.subr.bf16.mxu0 0
    %5007 = vmatpush1.bf16.msra.mxu0 %v4855
    %5008 = vmatprep.subr.bf16.mxu0 0
    %5009 = vmatpush1.bf16.msra.mxu0 %v4856
    %5010 = vmatprep.subr.bf16.mxu0 0
    %5011 = vmatpush1.bf16.msra.mxu0 %v4857
    %5012 = vmatprep.subr.bf16.mxu0 0
    %5013 = vmatpush1.bf16.msra.mxu0 %v4858
    %5014 = vmatprep.subr.bf16.mxu0 0
    %5015 = vmatpush1.bf16.msra.mxu0 %v4859
    %5016 = vmatprep.subr.bf16.mxu0 0
    %5017 = vmatpush1.bf16.msra.mxu0 %v4860
    %5018 = vmatprep.subr.bf16.mxu0 0
    %5019 = vmatpush1.bf16.msra.mxu0 %v4861
    %5020 = vmatprep.subr.bf16.mxu0 0
    %5021 = vmatpush1.bf16.msra.mxu0 %v4862
    %5022 = vmatprep.subr.bf16.mxu0 0
    %5023 = vmatpush1.bf16.msra.mxu0 %v4863
    %5024 = vmatprep.subr.bf16.mxu0 0
    %5025 = vmatpush1.bf16.msra.mxu0 %v4864
    %5026 = vmatprep.mubr.bf16.mxu0 %v4736
    %5027 = vmatmul.mubr.bf16.gmra.mrb[0].mxu0 %v4735
    %v5028 = vpop.f32.mrb[0].mxu0
    %v5029 = vadd.f32 %v4932, %v5028
    %v5030 = vpop.f32.mrb[0].mxu0
    %v5031 = vpop.f32.mrb[0].mxu0
    %v5032 = vadd.f32 %v4935, %v5031
    %v5033 = vpop.f32.mrb[0].mxu0
    %5034 = vmatprep.mubr.bf16.mxu0 %v4744
    %5035 = vmatmul.mubr.bf16.gmra.mrb[0].mxu0 %v4743
    %v5036 = vpop.f32.mrb[0].mxu0
    %v5037 = vadd.f32 %v4940, %v5036
    %v5038 = vpop.f32.mrb[0].mxu0
    %v5039 = vpop.f32.mrb[0].mxu0
    %v5040 = vadd.f32 %v4943, %v5039
    %v5041 = vpop.f32.mrb[0].mxu0
    %5042 = vmatprep.mubr.bf16.mxu0 %v4752
    %5043 = vmatmul.mubr.bf16.gmra.mrb[0].mxu0 %v4751
    %v5044 = vpop.f32.mrb[0].mxu0
    %v5045 = vadd.f32 %v4948, %v5044
    %v5046 = vpop.f32.mrb[0].mxu0
    %v5047 = vpop.f32.mrb[0].mxu0
    %v5048 = vadd.f32 %v4951, %v5047
    %v5049 = vpop.f32.mrb[0].mxu0
    %5050 = vmatprep.mubr.bf16.mxu0 %v4760
    %5051 = vmatmul.mubr.bf16.gmra.mrb[0].mxu0 %v4759
    %v5052 = vpop.f32.mrb[0].mxu0
    %v5053 = vadd.f32 %v4956, %v5052
    %v5054 = vpop.f32.mrb[0].mxu0
    %v5055 = vpop.f32.mrb[0].mxu0
    %v5056 = vadd.f32 %v4959, %v5055
    %v5057 = vpop.f32.mrb[0].mxu0
    %5058 = vmatprep.mubr.bf16.mxu0 %v4768
    %5059 = vmatmul.mubr.bf16.gmra.mrb[0].mxu0 %v4767
    %v5060 = vpop.f32.mrb[0].mxu0
    %v5061 = vadd.f32 %v4964, %v5060
    %v5062 = vpop.f32.mrb[0].mxu0
    %v5063 = vpop.f32.mrb[0].mxu0
    %v5064 = vadd.f32 %v4967, %v5063
    %v5065 = vpop.f32.mrb[0].mxu0
    %5066 = vmatprep.mubr.bf16.mxu0 %v4776
    %5067 = vmatmul.mubr.bf16.gmra.mrb[0].mxu0 %v4775
    %v5068 = vpop.f32.mrb[0].mxu0
    %v5069 = vadd.f32 %v4972, %v5068
    %v5070 = vpop.f32.mrb[0].mxu0
    %v5071 = vpop.f32.mrb[0].mxu0
    %v5072 = vadd.f32 %v4975, %v5071
    %v5073 = vpop.f32.mrb[0].mxu0
    %5074 = vmatprep.mubr.bf16.mxu0 %v4784
    %5075 = vmatmul.mubr.bf16.gmra.mrb[0].mxu0 %v4783
    %v5076 = vpop.f32.mrb[0].mxu0
    %v5077 = vadd.f32 %v4980, %v5076
    %v5078 = vpop.f32.mrb[0].mxu0
    %v5079 = vpop.f32.mrb[0].mxu0
    %v5080 = vadd.f32 %v4983, %v5079
    %v5081 = vpop.f32.mrb[0].mxu0
    %5082 = vmatprep.mubr.bf16.mxu0 %v4792
    %5083 = vmatmul.mubr.bf16.gmra.mrb[0].mxu0 %v4791
    %v5084 = vpop.f32.mrb[0].mxu0
    %v5085 = vadd.f32 %v4988, %v5084
    %v5086 = vpop.f32.mrb[0].mxu0
    %v5087 = vpop.f32.mrb[0].mxu0
    %v5088 = vadd.f32 %v4991, %v5087
    %v5089 = vpop.f32.mrb[0].mxu0
    %5090 = vdwg.mxu0
    %5091 = vmatprep.subr.bf16.mxu0 0
    %5092 = vmatpush1.bf16.msra.mxu0 %v4865
    %5093 = vmatprep.subr.bf16.mxu0 0
    %5094 = vmatpush1.bf16.msra.mxu0 %v4866
    %5095 = vmatprep.subr.bf16.mxu0 0
    %5096 = vmatpush1.bf16.msra.mxu0 %v4867
    %5097 = vmatprep.subr.bf16.mxu0 0
    %5098 = vmatpush1.bf16.msra.mxu0 %v4868
    %5099 = vmatprep.subr.bf16.mxu0 0
    %5100 = vmatpush1.bf16.msra.mxu0 %v4869
    %5101 = vmatprep.subr.bf16.mxu0 0
    %5102 = vmatpush1.bf16.msra.mxu0 %v4870
    %5103 = vmatprep.subr.bf16.mxu0 0
    %5104 = vmatpush1.bf16.msra.mxu0 %v4871
    %5105 = vmatprep.subr.bf16.mxu0 0
    %5106 = vmatpush1.bf16.msra.mxu0 %v4872
    %5107 = vmatprep.subr.bf16.mxu0 0
    %5108 = vmatpush1.bf16.msra.mxu0 %v4873
    %5109 = vmatprep.subr.bf16.mxu0 0
    %5110 = vmatpush1.bf16.msra.mxu0 %v4874
    %5111 = vmatprep.subr.bf16.mxu0 0
    %5112 = vmatpush1.bf16.msra.mxu0 %v4875
    %5113 = vmatprep.subr.bf16.mxu0 0
    %5114 = vmatpush1.bf16.msra.mxu0 %v4876
    %5115 = vmatprep.subr.bf16.mxu0 0
    %5116 = vmatpush1.bf16.msra.mxu0 %v4877
    %5117 = vmatprep.subr.bf16.mxu0 0
    %5118 = vmatpush1.bf16.msra.mxu0 %v4878
    %5119 = vmatprep.subr.bf16.mxu0 0
    %5120 = vmatpush1.bf16.msra.mxu0 %v4879
    %5121 = vmatprep.subr.bf16.mxu0 0
    %5122 = vmatpush1.bf16.msra.mxu0 %v4880
    %5123 = vmatprep.mubr.bf16.mxu0 %v4738
    %5124 = vmatmul.mubr.bf16.gmra.mrb[0].mxu0 %v4737
    %v5125 = vpop.f32.mrb[0].mxu0
    %v5126 = vadd.f32 %v5029, %v5125
    %v5127 = vpop.f32.mrb[0].mxu0
    %v5128 = vpop.f32.mrb[0].mxu0
    %v5129 = vadd.f32 %v5032, %v5128
    %v5130 = vpop.f32.mrb[0].mxu0
    %5131 = vmatprep.mubr.bf16.mxu0 %v4746
    %5132 = vmatmul.mubr.bf16.gmra.mrb[0].mxu0 %v4745
    %v5133 = vpop.f32.mrb[0].mxu0
    %v5134 = vadd.f32 %v5037, %v5133
    %v5135 = vpop.f32.mrb[0].mxu0
    %v5136 = vpop.f32.mrb[0].mxu0
    %v5137 = vadd.f32 %v5040, %v5136
    %v5138 = vpop.f32.mrb[0].mxu0
    %5139 = vmatprep.mubr.bf16.mxu0 %v4754
    %5140 = vmatmul.mubr.bf16.gmra.mrb[0].mxu0 %v4753
    %v5141 = vpop.f32.mrb[0].mxu0
    %v5142 = vadd.f32 %v5045, %v5141
    %v5143 = vpop.f32.mrb[0].mxu0
    %v5144 = vpop.f32.mrb[0].mxu0
    %v5145 = vadd.f32 %v5048, %v5144
    %v5146 = vpop.f32.mrb[0].mxu0
    %5147 = vmatprep.mubr.bf16.mxu0 %v4762
    %5148 = vmatmul.mubr.bf16.gmra.mrb[0].mxu0 %v4761
    %v5149 = vpop.f32.mrb[0].mxu0
    %v5150 = vadd.f32 %v5053, %v5149
    %v5151 = vpop.f32.mrb[0].mxu0
    %v5152 = vpop.f32.mrb[0].mxu0
    %v5153 = vadd.f32 %v5056, %v5152
    %v5154 = vpop.f32.mrb[0].mxu0
    %5155 = vmatprep.mubr.bf16.mxu0 %v4770
    %5156 = vmatmul.mubr.bf16.gmra.mrb[0].mxu0 %v4769
    %v5157 = vpop.f32.mrb[0].mxu0
    %v5158 = vadd.f32 %v5061, %v5157
    %v5159 = vpop.f32.mrb[0].mxu0
    %v5160 = vpop.f32.mrb[0].mxu0
    %v5161 = vadd.f32 %v5064, %v5160
    %v5162 = vpop.f32.mrb[0].mxu0
    %5163 = vmatprep.mubr.bf16.mxu0 %v4778
    %5164 = vmatmul.mubr.bf16.gmra.mrb[0].mxu0 %v4777
    %v5165 = vpop.f32.mrb[0].mxu0
    %v5166 = vadd.f32 %v5069, %v5165
    %v5167 = vpop.f32.mrb[0].mxu0
    %v5168 = vpop.f32.mrb[0].mxu0
    %v5169 = vadd.f32 %v5072, %v5168
    %v5170 = vpop.f32.mrb[0].mxu0
    %5171 = vmatprep.mubr.bf16.mxu0 %v4786
    %5172 = vmatmul.mubr.bf16.gmra.mrb[0].mxu0 %v4785
    %v5173 = vpop.f32.mrb[0].mxu0
    %v5174 = vadd.f32 %v5077, %v5173
    %v5175 = vpop.f32.mrb[0].mxu0
    %v5176 = vpop.f32.mrb[0].mxu0
    %v5177 = vadd.f32 %v5080, %v5176
    %v5178 = vpop.f32.mrb[0].mxu0
    %5179 = vmatprep.mubr.bf16.mxu0 %v4794
    %5180 = vmatmul.mubr.bf16.gmra.mrb[0].mxu0 %v4793
    %v5181 = vpop.f32.mrb[0].mxu0
    %v5182 = vadd.f32 %v5085, %v5181
    %v5183 = vpop.f32.mrb[0].mxu0
    %v5184 = vpop.f32.mrb[0].mxu0
    %v5185 = vadd.f32 %v5088, %v5184
    %v5186 = vpop.f32.mrb[0].mxu0
    %5187 = vdwg.mxu0
    %5188 = vmatprep.subr.bf16.mxu0 0
    %5189 = vmatpush1.bf16.msra.mxu0 %v4881
    %5190 = vmatprep.subr.bf16.mxu0 0
    %5191 = vmatpush1.bf16.msra.mxu0 %v4882
    %5192 = vmatprep.subr.bf16.mxu0 0
    %5193 = vmatpush1.bf16.msra.mxu0 %v4883
    %5194 = vmatprep.subr.bf16.mxu0 0
    %5195 = vmatpush1.bf16.msra.mxu0 %v4884
    %5196 = vmatprep.subr.bf16.mxu0 0
    %5197 = vmatpush1.bf16.msra.mxu0 %v4885
    %5198 = vmatprep.subr.bf16.mxu0 0
    %5199 = vmatpush1.bf16.msra.mxu0 %v4886
    %5200 = vmatprep.subr.bf16.mxu0 0
    %5201 = vmatpush1.bf16.msra.mxu0 %v4887
    %5202 = vmatprep.subr.bf16.mxu0 0
    %5203 = vmatpush1.bf16.msra.mxu0 %v4888
    %5204 = vmatprep.subr.bf16.mxu0 0
    %5205 = vmatpush1.bf16.msra.mxu0 %v4889
    %5206 = vmatprep.subr.bf16.mxu0 0
    %5207 = vmatpush1.bf16.msra.mxu0 %v4890
    %5208 = vmatprep.subr.bf16.mxu0 0
    %5209 = vmatpush1.bf16.msra.mxu0 %v4891
    %5210 = vmatprep.subr.bf16.mxu0 0
    %5211 = vmatpush1.bf16.msra.mxu0 %v4892
    %5212 = vmatprep.subr.bf16.mxu0 0
    %5213 = vmatpush1.bf16.msra.mxu0 %v4893
    %5214 = vmatprep.subr.bf16.mxu0 0
    %5215 = vmatpush1.bf16.msra.mxu0 %v4894
    %5216 = vmatprep.subr.bf16.mxu0 0
    %5217 = vmatpush1.bf16.msra.mxu0 %v4895
    %5218 = vmatprep.subr.bf16.mxu0 0
    %5219 = vmatpush1.bf16.msra.mxu0 %v4896
    %5220 = vmatprep.mubr.bf16.mxu0 %v4740
    %5221 = vmatmul.mubr.bf16.gmra.mrb[0].mxu0 %v4739
    %v5222 = vpop.f32.mrb[0].mxu0
    %v5223 = vadd.f32 %v5126, %v5222
    %v5224 = vpop.f32.mrb[0].mxu0
    %v5225 = vpop.f32.mrb[0].mxu0
    %v5226 = vadd.f32 %v5129, %v5225
    %v5227 = vpop.f32.mrb[0].mxu0
    %5228 = vmatprep.mubr.bf16.mxu0 %v4748
    %5229 = vmatmul.mubr.bf16.gmra.mrb[0].mxu0 %v4747
    %v5230 = vpop.f32.mrb[0].mxu0
    %v5231 = vadd.f32 %v5134, %v5230
    %v5232 = vpop.f32.mrb[0].mxu0
    %v5233 = vpop.f32.mrb[0].mxu0
    %v5234 = vadd.f32 %v5137, %v5233
    %v5235 = vpop.f32.mrb[0].mxu0
    %5236 = vmatprep.mubr.bf16.mxu0 %v4756
    %5237 = vmatmul.mubr.bf16.gmra.mrb[0].mxu0 %v4755
    %v5238 = vpop.f32.mrb[0].mxu0
    %v5239 = vadd.f32 %v5142, %v5238
    %v5240 = vpop.f32.mrb[0].mxu0
    %v5241 = vpop.f32.mrb[0].mxu0
    %v5242 = vadd.f32 %v5145, %v5241
    %v5243 = vpop.f32.mrb[0].mxu0
    %5244 = vmatprep.mubr.bf16.mxu0 %v4764
    %5245 = vmatmul.mubr.bf16.gmra.mrb[0].mxu0 %v4763
    %v5246 = vpop.f32.mrb[0].mxu0
    %v5247 = vadd.f32 %v5150, %v5246
    %v5248 = vpop.f32.mrb[0].mxu0
    %v5249 = vpop.f32.mrb[0].mxu0
    %v5250 = vadd.f32 %v5153, %v5249
    %v5251 = vpop.f32.mrb[0].mxu0
    %5252 = vmatprep.mubr.bf16.mxu0 %v4772
    %5253 = vmatmul.mubr.bf16.gmra.mrb[0].mxu0 %v4771
    %v5254 = vpop.f32.mrb[0].mxu0
    %v5255 = vadd.f32 %v5158, %v5254
    %v5256 = vpop.f32.mrb[0].mxu0
    %v5257 = vpop.f32.mrb[0].mxu0
    %v5258 = vadd.f32 %v5161, %v5257
    %v5259 = vpop.f32.mrb[0].mxu0
    %5260 = vmatprep.mubr.bf16.mxu0 %v4780
    %5261 = vmatmul.mubr.bf16.gmra.mrb[0].mxu0 %v4779
    %v5262 = vpop.f32.mrb[0].mxu0
    %v5263 = vadd.f32 %v5166, %v5262
    %v5264 = vpop.f32.mrb[0].mxu0
    %v5265 = vpop.f32.mrb[0].mxu0
    %v5266 = vadd.f32 %v5169, %v5265
    %v5267 = vpop.f32.mrb[0].mxu0
    %5268 = vmatprep.mubr.bf16.mxu0 %v4788
    %5269 = vmatmul.mubr.bf16.gmra.mrb[0].mxu0 %v4787
    %v5270 = vpop.f32.mrb[0].mxu0
    %v5271 = vadd.f32 %v5174, %v5270
    %v5272 = vpop.f32.mrb[0].mxu0
    %v5273 = vpop.f32.mrb[0].mxu0
    %v5274 = vadd.f32 %v5177, %v5273
    %v5275 = vpop.f32.mrb[0].mxu0
    %5276 = vmatprep.mubr.bf16.mxu0 %v4796
    %5277 = vmatmul.mubr.bf16.gmra.mrb[0].mxu0 %v4795
    %v5278 = vpop.f32.mrb[0].mxu0
    %v5279 = vadd.f32 %v5182, %v5278
    %v5280 = vpop.f32.mrb[0].mxu0
    %v5281 = vpop.f32.mrb[0].mxu0
    %v5282 = vadd.f32 %v5185, %v5281
    %v5283 = vpop.f32.mrb[0].mxu0
    %5284 = vdwg.mxu0
    %v5285 = vlaneseq
    %v5286 = vshrl.u32 %v5285, 7
    %v5287 = vsub.s32 2, %v5286
    %v5288 = vrot.slane %v82, %v5287
    %v5289 = vmul.f32 %v5223, %v5288
    %v5290 = vmul.f32 %v5226, %v5288
    %v5291 = vmul.f32 %v5231, %v5288
    %v5292 = vmul.f32 %v5234, %v5288
    %v5293 = vmul.f32 %v5239, %v5288
    %v5294 = vmul.f32 %v5242, %v5288
    %v5295 = vmul.f32 %v5247, %v5288
    %v5296 = vmul.f32 %v5250, %v5288
    %v5297 = vmul.f32 %v5255, %v5288
    %v5298 = vmul.f32 %v5258, %v5288
    %v5299 = vmul.f32 %v5263, %v5288
    %v5300 = vmul.f32 %v5266, %v5288
    %v5301 = vmul.f32 %v5271, %v5288
    %v5302 = vmul.f32 %v5274, %v5288
    %v5303 = vmul.f32 %v5279, %v5288
    %v5304 = vmul.f32 %v5282, %v5288
    %v5305 = vlaneseq
    %v5306 = vshrl.u32 %v5305, 7
    %v5307 = vsub.s32 0, %v5306
    %v5308 = vrot.slane %v82, %v5307
    %v5309 = vadd.f32 %v5289, %v5308
    %v5310 = vadd.f32 %v5290, %v5308
    %v5311 = vadd.f32 %v5291, %v5308
    %v5312 = vadd.f32 %v5292, %v5308
    %v5313 = vadd.f32 %v5293, %v5308
    %v5314 = vadd.f32 %v5294, %v5308
    %v5315 = vadd.f32 %v5295, %v5308
    %v5316 = vadd.f32 %v5296, %v5308
    %v5317 = vadd.f32 %v5297, %v5308
    %v5318 = vadd.f32 %v5298, %v5308
    %v5319 = vadd.f32 %v5299, %v5308
    %v5320 = vadd.f32 %v5300, %v5308
    %v5321 = vadd.f32 %v5301, %v5308
    %v5322 = vadd.f32 %v5302, %v5308
    %v5323 = vadd.f32 %v5303, %v5308
    %v5324 = vadd.f32 %v5304, %v5308
    %v5325 = vtanh.pop %v5309
    %v5326 = vtanh.pop %v5310
    %v5327 = vtanh.pop %v5311
    %v5328 = vtanh.pop %v5312
    %v5329 = vtanh.pop %v5313
    %v5330 = vtanh.pop %v5314
    %v5331 = vtanh.pop %v5315
    %v5332 = vtanh.pop %v5316
    %v5333 = vtanh.pop %v5317
    %v5334 = vtanh.pop %v5318
    %v5335 = vtanh.pop %v5319
    %v5336 = vtanh.pop %v5320
    %v5337 = vtanh.pop %v5321
    %v5338 = vtanh.pop %v5322
    %v5339 = vtanh.pop %v5323
    %v5340 = vtanh.pop %v5324
    %5341 = vst [vmem:[%s7] sm:$0xff] %v5325
    %5342 = vst [vmem:[%s7 + $0x10] sm:$0xff] %v5326
    %5343 = vst [vmem:[%s7 + $0x20] sm:$0xff] %v5327
    %5344 = vst [vmem:[%s7 + $0x30] sm:$0xff] %v5328
    %5345 = vst [vmem:[%s7 + $0x40] sm:$0xff] %v5329
    %5346 = vst [vmem:[%s7 + $0x50] sm:$0xff] %v5330
    %5347 = vst [vmem:[%s7 + $0x60] sm:$0xff] %v5331
    %5348 = vst [vmem:[%s7 + $0x70] sm:$0xff] %v5332
    %5349 = vst [vmem:[%s7 + $0x80] sm:$0xff] %v5333
    %5350 = vst [vmem:[%s7 + $0x90] sm:$0xff] %v5334
    %5351 = vst [vmem:[%s7 + $0xa0] sm:$0xff] %v5335
    %5352 = vst [vmem:[%s7 + $0xb0] sm:$0xff] %v5336
    %5353 = vst [vmem:[%s7 + $0xc0] sm:$0xff] %v5337
    %5354 = vst [vmem:[%s7 + $0xd0] sm:$0xff] %v5338
    %5355 = vst [vmem:[%s7 + $0xe0] sm:$0xff] %v5339
    %5356 = vst [vmem:[%s7 + $0xf0] sm:$0xff] %v5340
    %s5357 = sshll.u32 %s4798, 4
    %5358 = dma.done %s62, %s5357
    %v5359 = vld [vmem:[%s61] sm:$0xff]
    %v5360 = vld [vmem:[%s61 + $0x8] sm:$0xff]
    %v5361 = vld [vmem:[%s61 + $0x10] sm:$0xff]
    %v5362 = vld [vmem:[%s61 + $0x18] sm:$0xff]
    %v5363 = vld [vmem:[%s61 + $0x20] sm:$0xff]
    %v5364 = vld [vmem:[%s61 + $0x28] sm:$0xff]
    %v5365 = vld [vmem:[%s61 + $0x30] sm:$0xff]
    %v5366 = vld [vmem:[%s61 + $0x38] sm:$0xff]
    %v5367 = vld [vmem:[%s61 + $0x40] sm:$0xff]
    %v5368 = vld [vmem:[%s61 + $0x48] sm:$0xff]
    %v5369 = vld [vmem:[%s61 + $0x50] sm:$0xff]
    %v5370 = vld [vmem:[%s61 + $0x58] sm:$0xff]
    %v5371 = vld [vmem:[%s61 + $0x60] sm:$0xff]
    %v5372 = vld [vmem:[%s61 + $0x68] sm:$0xff]
    %v5373 = vld [vmem:[%s61 + $0x70] sm:$0xff]
    %v5374 = vld [vmem:[%s61 + $0x78] sm:$0xff]
    %v5375 = vld [vmem:[%s61 + $0x80] sm:$0xff]
    %v5376 = vld [vmem:[%s61 + $0x88] sm:$0xff]
    %v5377 = vld [vmem:[%s61 + $0x90] sm:$0xff]
    %v5378 = vld [vmem:[%s61 + $0x98] sm:$0xff]
    %v5379 = vld [vmem:[%s61 + $0xa0] sm:$0xff]
    %v5380 = vld [vmem:[%s61 + $0xa8] sm:$0xff]
    %v5381 = vld [vmem:[%s61 + $0xb0] sm:$0xff]
    %v5382 = vld [vmem:[%s61 + $0xb8] sm:$0xff]
    %v5383 = vld [vmem:[%s61 + $0xc0] sm:$0xff]
    %v5384 = vld [vmem:[%s61 + $0xc8] sm:$0xff]
    %v5385 = vld [vmem:[%s61 + $0xd0] sm:$0xff]
    %v5386 = vld [vmem:[%s61 + $0xd8] sm:$0xff]
    %v5387 = vld [vmem:[%s61 + $0xe0] sm:$0xff]
    %v5388 = vld [vmem:[%s61 + $0xe8] sm:$0xff]
    %v5389 = vld [vmem:[%s61 + $0xf0] sm:$0xff]
    %v5390 = vld [vmem:[%s61 + $0xf8] sm:$0xff]
    %v5391 = vunpack.c.l.s8.bf16 %v5359
    %v5392 = vunpack.c.h.s8.bf16 %v5359
    %v5393 = vunpack.c.l.s8.bf16 %v5360
    %v5394 = vunpack.c.h.s8.bf16 %v5360
    %v5395 = vunpack.c.l.s8.bf16 %v5361
    %v5396 = vunpack.c.h.s8.bf16 %v5361
    %v5397 = vunpack.c.l.s8.bf16 %v5362
    %v5398 = vunpack.c.h.s8.bf16 %v5362
    %v5399 = vunpack.c.l.s8.bf16 %v5363
    %v5400 = vunpack.c.h.s8.bf16 %v5363
    %v5401 = vunpack.c.l.s8.bf16 %v5364
    %v5402 = vunpack.c.h.s8.bf16 %v5364
    %v5403 = vunpack.c.l.s8.bf16 %v5365
    %v5404 = vunpack.c.h.s8.bf16 %v5365
    %v5405 = vunpack.c.l.s8.bf16 %v5366
    %v5406 = vunpack.c.h.s8.bf16 %v5366
    %v5407 = vunpack.c.l.s8.bf16 %v5367
    %v5408 = vunpack.c.h.s8.bf16 %v5367
    %v5409 = vunpack.c.l.s8.bf16 %v5368
    %v5410 = vunpack.c.h.s8.bf16 %v5368
    %v5411 = vunpack.c.l.s8.bf16 %v5369
    %v5412 = vunpack.c.h.s8.bf16 %v5369
    %v5413 = vunpack.c.l.s8.bf16 %v5370
    %v5414 = vunpack.c.h.s8.bf16 %v5370
    %v5415 = vunpack.c.l.s8.bf16 %v5371
    %v5416 = vunpack.c.h.s8.bf16 %v5371
    %v5417 = vunpack.c.l.s8.bf16 %v5372
    %v5418 = vunpack.c.h.s8.bf16 %v5372
    %v5419 = vunpack.c.l.s8.bf16 %v5373
    %v5420 = vunpack.c.h.s8.bf16 %v5373
    %v5421 = vunpack.c.l.s8.bf16 %v5374
    %v5422 = vunpack.c.h.s8.bf16 %v5374
    %v5423 = vunpack.c.l.s8.bf16 %v5375
    %v5424 = vunpack.c.h.s8.bf16 %v5375
    %v5425 = vunpack.c.l.s8.bf16 %v5376
    %v5426 = vunpack.c.h.s8.bf16 %v5376
    %v5427 = vunpack.c.l.s8.bf16 %v5377
    %v5428 = vunpack.c.h.s8.bf16 %v5377
    %v5429 = vunpack.c.l.s8.bf16 %v5378
    %v5430 = vunpack.c.h.s8.bf16 %v5378
    %v5431 = vunpack.c.l.s8.bf16 %v5379
    %v5432 = vunpack.c.h.s8.bf16 %v5379
    %v5433 = vunpack.c.l.s8.bf16 %v5380
    %v5434 = vunpack.c.h.s8.bf16 %v5380
    %v5435 = vunpack.c.l.s8.bf16 %v5381
    %v5436 = vunpack.c.h.s8.bf16 %v5381
    %v5437 = vunpack.c.l.s8.bf16 %v5382
    %v5438 = vunpack.c.h.s8.bf16 %v5382
    %v5439 = vunpack.c.l.s8.bf16 %v5383
    %v5440 = vunpack.c.h.s8.bf16 %v5383
    %v5441 = vunpack.c.l.s8.bf16 %v5384
    %v5442 = vunpack.c.h.s8.bf16 %v5384
    %v5443 = vunpack.c.l.s8.bf16 %v5385
    %v5444 = vunpack.c.h.s8.bf16 %v5385
    %v5445 = vunpack.c.l.s8.bf16 %v5386
    %v5446 = vunpack.c.h.s8.bf16 %v5386
    %v5447 = vunpack.c.l.s8.bf16 %v5387
    %v5448 = vunpack.c.h.s8.bf16 %v5387
    %v5449 = vunpack.c.l.s8.bf16 %v5388
    %v5450 = vunpack.c.h.s8.bf16 %v5388
    %v5451 = vunpack.c.l.s8.bf16 %v5389
    %v5452 = vunpack.c.h.s8.bf16 %v5389
    %v5453 = vunpack.c.l.s8.bf16 %v5390
    %v5454 = vunpack.c.h.s8.bf16 %v5390
    %5455 = vmatprep.subr.bf16.mxu0 0
    %5456 = vmatpush1.bf16.msra.mxu0 %v5391
    %5457 = vmatprep.subr.bf16.mxu0 0
    %5458 = vmatpush1.bf16.msra.mxu0 %v5392
    %5459 = vmatprep.subr.bf16.mxu0 0
    %5460 = vmatpush1.bf16.msra.mxu0 %v5393
    %5461 = vmatprep.subr.bf16.mxu0 0
    %5462 = vmatpush1.bf16.msra.mxu0 %v5394
    %5463 = vmatprep.subr.bf16.mxu0 0
    %5464 = vmatpush1.bf16.msra.mxu0 %v5395
    %5465 = vmatprep.subr.bf16.mxu0 0
    %5466 = vmatpush1.bf16.msra.mxu0 %v5396
    %5467 = vmatprep.subr.bf16.mxu0 0
    %5468 = vmatpush1.bf16.msra.mxu0 %v5397
    %5469 = vmatprep.subr.bf16.mxu0 0
    %5470 = vmatpush1.bf16.msra.mxu0 %v5398
    %5471 = vmatprep.subr.bf16.mxu0 0
    %5472 = vmatpush1.bf16.msra.mxu0 %v5399
    %5473 = vmatprep.subr.bf16.mxu0 0
    %5474 = vmatpush1.bf16.msra.mxu0 %v5400
    %5475 = vmatprep.subr.bf16.mxu0 0
    %5476 = vmatpush1.bf16.msra.mxu0 %v5401
    %5477 = vmatprep.subr.bf16.mxu0 0
    %5478 = vmatpush1.bf16.msra.mxu0 %v5402
    %5479 = vmatprep.subr.bf16.mxu0 0
    %5480 = vmatpush1.bf16.msra.mxu0 %v5403
    %5481 = vmatprep.subr.bf16.mxu0 0
    %5482 = vmatpush1.bf16.msra.mxu0 %v5404
    %5483 = vmatprep.subr.bf16.mxu0 0
    %5484 = vmatpush1.bf16.msra.mxu0 %v5405
    %5485 = vmatprep.subr.bf16.mxu0 0
    %5486 = vmatpush1.bf16.msra.mxu0 %v5406
    %5487 = vmatprep.mubr.bf16.mxu0 %v4734
    %5488 = vmatmul.mubr.bf16.gmra.mrb[0].mxu0 %v4733
    %v5489 = vpop.f32.mrb[0].mxu0
    %v5490 = vadd.f32 0.0, %v5489
    %v5491 = vpop.f32.mrb[0].mxu0
    %v5492 = vpop.f32.mrb[0].mxu0
    %v5493 = vadd.f32 0.0, %v5492
    %v5494 = vpop.f32.mrb[0].mxu0
    %5495 = vmatprep.mubr.bf16.mxu0 %v4742
    %5496 = vmatmul.mubr.bf16.gmra.mrb[0].mxu0 %v4741
    %v5497 = vpop.f32.mrb[0].mxu0
    %v5498 = vadd.f32 0.0, %v5497
    %v5499 = vpop.f32.mrb[0].mxu0
    %v5500 = vpop.f32.mrb[0].mxu0
    %v5501 = vadd.f32 0.0, %v5500
    %v5502 = vpop.f32.mrb[0].mxu0
    %5503 = vmatprep.mubr.bf16.mxu0 %v4750
    %5504 = vmatmul.mubr.bf16.gmra.mrb[0].mxu0 %v4749
    %v5505 = vpop.f32.mrb[0].mxu0
    %v5506 = vadd.f32 0.0, %v5505
    %v5507 = vpop.f32.mrb[0].mxu0
    %v5508 = vpop.f32.mrb[0].mxu0
    %v5509 = vadd.f32 0.0, %v5508
    %v5510 = vpop.f32.mrb[0].mxu0
    %5511 = vmatprep.mubr.bf16.mxu0 %v4758
    %5512 = vmatmul.mubr.bf16.gmra.mrb[0].mxu0 %v4757
    %v5513 = vpop.f32.mrb[0].mxu0
    %v5514 = vadd.f32 0.0, %v5513
    %v5515 = vpop.f32.mrb[0].mxu0
    %v5516 = vpop.f32.mrb[0].mxu0
    %v5517 = vadd.f32 0.0, %v5516
    %v5518 = vpop.f32.mrb[0].mxu0
    %5519 = vmatprep.mubr.bf16.mxu0 %v4766
    %5520 = vmatmul.mubr.bf16.gmra.mrb[0].mxu0 %v4765
    %v5521 = vpop.f32.mrb[0].mxu0
    %v5522 = vadd.f32 0.0, %v5521
    %v5523 = vpop.f32.mrb[0].mxu0
    %v5524 = vpop.f32.mrb[0].mxu0
    %v5525 = vadd.f32 0.0, %v5524
    %v5526 = vpop.f32.mrb[0].mxu0
    %5527 = vmatprep.mubr.bf16.mxu0 %v4774
    %5528 = vmatmul.mubr.bf16.gmra.mrb[0].mxu0 %v4773
    %v5529 = vpop.f32.mrb[0].mxu0
    %v5530 = vadd.f32 0.0, %v5529
    %v5531 = vpop.f32.mrb[0].mxu0
    %v5532 = vpop.f32.mrb[0].mxu0
    %v5533 = vadd.f32 0.0, %v5532
    %v5534 = vpop.f32.mrb[0].mxu0
    %5535 = vmatprep.mubr.bf16.mxu0 %v4782
    %5536 = vmatmul.mubr.bf16.gmra.mrb[0].mxu0 %v4781
    %v5537 = vpop.f32.mrb[0].mxu0
    %v5538 = vadd.f32 0.0, %v5537
    %v5539 = vpop.f32.mrb[0].mxu0
    %v5540 = vpop.f32.mrb[0].mxu0
    %v5541 = vadd.f32 0.0, %v5540
    %v5542 = vpop.f32.mrb[0].mxu0
    %5543 = vmatprep.mubr.bf16.mxu0 %v4790
    %5544 = vmatmul.mubr.bf16.gmra.mrb[0].mxu0 %v4789
    %v5545 = vpop.f32.mrb[0].mxu0
    %v5546 = vadd.f32 0.0, %v5545
    %v5547 = vpop.f32.mrb[0].mxu0
    %v5548 = vpop.f32.mrb[0].mxu0
    %v5549 = vadd.f32 0.0, %v5548
    %v5550 = vpop.f32.mrb[0].mxu0
    %5551 = vdwg.mxu0
    %5552 = vmatprep.subr.bf16.mxu0 0
    %5553 = vmatpush1.bf16.msra.mxu0 %v5407
    %5554 = vmatprep.subr.bf16.mxu0 0
    %5555 = vmatpush1.bf16.msra.mxu0 %v5408
    %5556 = vmatprep.subr.bf16.mxu0 0
    %5557 = vmatpush1.bf16.msra.mxu0 %v5409
    %5558 = vmatprep.subr.bf16.mxu0 0
    %5559 = vmatpush1.bf16.msra.mxu0 %v5410
    %5560 = vmatprep.subr.bf16.mxu0 0
    %5561 = vmatpush1.bf16.msra.mxu0 %v5411
    %5562 = vmatprep.subr.bf16.mxu0 0
    %5563 = vmatpush1.bf16.msra.mxu0 %v5412
    %5564 = vmatprep.subr.bf16.mxu0 0
    %5565 = vmatpush1.bf16.msra.mxu0 %v5413
    %5566 = vmatprep.subr.bf16.mxu0 0
    %5567 = vmatpush1.bf16.msra.mxu0 %v5414
    %5568 = vmatprep.subr.bf16.mxu0 0
    %5569 = vmatpush1.bf16.msra.mxu0 %v5415
    %5570 = vmatprep.subr.bf16.mxu0 0
    %5571 = vmatpush1.bf16.msra.mxu0 %v5416
    %5572 = vmatprep.subr.bf16.mxu0 0
    %5573 = vmatpush1.bf16.msra.mxu0 %v5417
    %5574 = vmatprep.subr.bf16.mxu0 0
    %5575 = vmatpush1.bf16.msra.mxu0 %v5418
    %5576 = vmatprep.subr.bf16.mxu0 0
    %5577 = vmatpush1.bf16.msra.mxu0 %v5419
    %5578 = vmatprep.subr.bf16.mxu0 0
    %5579 = vmatpush1.bf16.msra.mxu0 %v5420
    %5580 = vmatprep.subr.bf16.mxu0 0
    %5581 = vmatpush1.bf16.msra.mxu0 %v5421
    %5582 = vmatprep.subr.bf16.mxu0 0
    %5583 = vmatpush1.bf16.msra.mxu0 %v5422
    %5584 = vmatprep.mubr.bf16.mxu0 %v4736
    %5585 = vmatmul.mubr.bf16.gmra.mrb[0].mxu0 %v4735
    %v5586 = vpop.f32.mrb[0].mxu0
    %v5587 = vadd.f32 %v5490, %v5586
    %v5588 = vpop.f32.mrb[0].mxu0
    %v5589 = vpop.f32.mrb[0].mxu0
    %v5590 = vadd.f32 %v5493, %v5589
    %v5591 = vpop.f32.mrb[0].mxu0
    %5592 = vmatprep.mubr.bf16.mxu0 %v4744
    %5593 = vmatmul.mubr.bf16.gmra.mrb[0].mxu0 %v4743
    %v5594 = vpop.f32.mrb[0].mxu0
    %v5595 = vadd.f32 %v5498, %v5594
    %v5596 = vpop.f32.mrb[0].mxu0
    %v5597 = vpop.f32.mrb[0].mxu0
    %v5598 = vadd.f32 %v5501, %v5597
    %v5599 = vpop.f32.mrb[0].mxu0
    %5600 = vmatprep.mubr.bf16.mxu0 %v4752
    %5601 = vmatmul.mubr.bf16.gmra.mrb[0].mxu0 %v4751
    %v5602 = vpop.f32.mrb[0].mxu0
    %v5603 = vadd.f32 %v5506, %v5602
    %v5604 = vpop.f32.mrb[0].mxu0
    %v5605 = vpop.f32.mrb[0].mxu0
    %v5606 = vadd.f32 %v5509, %v5605
    %v5607 = vpop.f32.mrb[0].mxu0
    %5608 = vmatprep.mubr.bf16.mxu0 %v4760
    %5609 = vmatmul.mubr.bf16.gmra.mrb[0].mxu0 %v4759
    %v5610 = vpop.f32.mrb[0].mxu0
    %v5611 = vadd.f32 %v5514, %v5610
    %v5612 = vpop.f32.mrb[0].mxu0
    %v5613 = vpop.f32.mrb[0].mxu0
    %v5614 = vadd.f32 %v5517, %v5613
    %v5615 = vpop.f32.mrb[0].mxu0
    %5616 = vmatprep.mubr.bf16.mxu0 %v4768
    %5617 = vmatmul.mubr.bf16.gmra.mrb[0].mxu0 %v4767
    %v5618 = vpop.f32.mrb[0].mxu0
    %v5619 = vadd.f32 %v5522, %v5618
    %v5620 = vpop.f32.mrb[0].mxu0
    %v5621 = vpop.f32.mrb[0].mxu0
    %v5622 = vadd.f32 %v5525, %v5621
    %v5623 = vpop.f32.mrb[0].mxu0
    %5624 = vmatprep.mubr.bf16.mxu0 %v4776
    %5625 = vmatmul.mubr.bf16.gmra.mrb[0].mxu0 %v4775
    %v5626 = vpop.f32.mrb[0].mxu0
    %v5627 = vadd.f32 %v5530, %v5626
    %v5628 = vpop.f32.mrb[0].mxu0
    %v5629 = vpop.f32.mrb[0].mxu0
    %v5630 = vadd.f32 %v5533, %v5629
    %v5631 = vpop.f32.mrb[0].mxu0
    %5632 = vmatprep.mubr.bf16.mxu0 %v4784
    %5633 = vmatmul.mubr.bf16.gmra.mrb[0].mxu0 %v4783
    %v5634 = vpop.f32.mrb[0].mxu0
    %v5635 = vadd.f32 %v5538, %v5634
    %v5636 = vpop.f32.mrb[0].mxu0
    %v5637 = vpop.f32.mrb[0].mxu0
    %v5638 = vadd.f32 %v5541, %v5637
    %v5639 = vpop.f32.mrb[0].mxu0
    %5640 = vmatprep.mubr.bf16.mxu0 %v4792
    %5641 = vmatmul.mubr.bf16.gmra.mrb[0].mxu0 %v4791
    %v5642 = vpop.f32.mrb[0].mxu0
    %v5643 = vadd.f32 %v5546, %v5642
    %v5644 = vpop.f32.mrb[0].mxu0
    %v5645 = vpop.f32.mrb[0].mxu0
    %v5646 = vadd.f32 %v5549, %v5645
    %v5647 = vpop.f32.mrb[0].mxu0
    %5648 = vdwg.mxu0
    %5649 = vmatprep.subr.bf16.mxu0 0
    %5650 = vmatpush1.bf16.msra.mxu0 %v5423
    %5651 = vmatprep.subr.bf16.mxu0 0
    %5652 = vmatpush1.bf16.msra.mxu0 %v5424
    %5653 = vmatprep.subr.bf16.mxu0 0
    %5654 = vmatpush1.bf16.msra.mxu0 %v5425
    %5655 = vmatprep.subr.bf16.mxu0 0
    %5656 = vmatpush1.bf16.msra.mxu0 %v5426
    %5657 = vmatprep.subr.bf16.mxu0 0
    %5658 = vmatpush1.bf16.msra.mxu0 %v5427
    %5659 = vmatprep.subr.bf16.mxu0 0
    %5660 = vmatpush1.bf16.msra.mxu0 %v5428
    %5661 = vmatprep.subr.bf16.mxu0 0
    %5662 = vmatpush1.bf16.msra.mxu0 %v5429
    %5663 = vmatprep.subr.bf16.mxu0 0
    %5664 = vmatpush1.bf16.msra.mxu0 %v5430
    %5665 = vmatprep.subr.bf16.mxu0 0
    %5666 = vmatpush1.bf16.msra.mxu0 %v5431
    %5667 = vmatprep.subr.bf16.mxu0 0
    %5668 = vmatpush1.bf16.msra.mxu0 %v5432
    %5669 = vmatprep.subr.bf16.mxu0 0
    %5670 = vmatpush1.bf16.msra.mxu0 %v5433
    %5671 = vmatprep.subr.bf16.mxu0 0
    %5672 = vmatpush1.bf16.msra.mxu0 %v5434
    %5673 = vmatprep.subr.bf16.mxu0 0
    %5674 = vmatpush1.bf16.msra.mxu0 %v5435
    %5675 = vmatprep.subr.bf16.mxu0 0
    %5676 = vmatpush1.bf16.msra.mxu0 %v5436
    %5677 = vmatprep.subr.bf16.mxu0 0
    %5678 = vmatpush1.bf16.msra.mxu0 %v5437
    %5679 = vmatprep.subr.bf16.mxu0 0
    %5680 = vmatpush1.bf16.msra.mxu0 %v5438
    %5681 = vmatprep.mubr.bf16.mxu0 %v4738
    %5682 = vmatmul.mubr.bf16.gmra.mrb[0].mxu0 %v4737
    %v5683 = vpop.f32.mrb[0].mxu0
    %v5684 = vadd.f32 %v5587, %v5683
    %v5685 = vpop.f32.mrb[0].mxu0
    %v5686 = vpop.f32.mrb[0].mxu0
    %v5687 = vadd.f32 %v5590, %v5686
    %v5688 = vpop.f32.mrb[0].mxu0
    %5689 = vmatprep.mubr.bf16.mxu0 %v4746
    %5690 = vmatmul.mubr.bf16.gmra.mrb[0].mxu0 %v4745
    %v5691 = vpop.f32.mrb[0].mxu0
    %v5692 = vadd.f32 %v5595, %v5691
    %v5693 = vpop.f32.mrb[0].mxu0
    %v5694 = vpop.f32.mrb[0].mxu0
    %v5695 = vadd.f32 %v5598, %v5694
    %v5696 = vpop.f32.mrb[0].mxu0
    %5697 = vmatprep.mubr.bf16.mxu0 %v4754
    %5698 = vmatmul.mubr.bf16.gmra.mrb[0].mxu0 %v4753
    %v5699 = vpop.f32.mrb[0].mxu0
    %v5700 = vadd.f32 %v5603, %v5699
    %v5701 = vpop.f32.mrb[0].mxu0
    %v5702 = vpop.f32.mrb[0].mxu0
    %v5703 = vadd.f32 %v5606, %v5702
    %v5704 = vpop.f32.mrb[0].mxu0
    %5705 = vmatprep.mubr.bf16.mxu0 %v4762
    %5706 = vmatmul.mubr.bf16.gmra.mrb[0].mxu0 %v4761
    %v5707 = vpop.f32.mrb[0].mxu0
    %v5708 = vadd.f32 %v5611, %v5707
    %v5709 = vpop.f32.mrb[0].mxu0
    %v5710 = vpop.f32.mrb[0].mxu0
    %v5711 = vadd.f32 %v5614, %v5710
    %v5712 = vpop.f32.mrb[0].mxu0
    %5713 = vmatprep.mubr.bf16.mxu0 %v4770
    %5714 = vmatmul.mubr.bf16.gmra.mrb[0].mxu0 %v4769
    %v5715 = vpop.f32.mrb[0].mxu0
    %v5716 = vadd.f32 %v5619, %v5715
    %v5717 = vpop.f32.mrb[0].mxu0
    %v5718 = vpop.f32.mrb[0].mxu0
    %v5719 = vadd.f32 %v5622, %v5718
    %v5720 = vpop.f32.mrb[0].mxu0
    %5721 = vmatprep.mubr.bf16.mxu0 %v4778
    %5722 = vmatmul.mubr.bf16.gmra.mrb[0].mxu0 %v4777
    %v5723 = vpop.f32.mrb[0].mxu0
    %v5724 = vadd.f32 %v5627, %v5723
    %v5725 = vpop.f32.mrb[0].mxu0
    %v5726 = vpop.f32.mrb[0].mxu0
    %v5727 = vadd.f32 %v5630, %v5726
    %v5728 = vpop.f32.mrb[0].mxu0
    %5729 = vmatprep.mubr.bf16.mxu0 %v4786
    %5730 = vmatmul.mubr.bf16.gmra.mrb[0].mxu0 %v4785
    %v5731 = vpop.f32.mrb[0].mxu0
    %v5732 = vadd.f32 %v5635, %v5731
    %v5733 = vpop.f32.mrb[0].mxu0
    %v5734 = vpop.f32.mrb[0].mxu0
    %v5735 = vadd.f32 %v5638, %v5734
    %v5736 = vpop.f32.mrb[0].mxu0
    %5737 = vmatprep.mubr.bf16.mxu0 %v4794
    %5738 = vmatmul.mubr.bf16.gmra.mrb[0].mxu0 %v4793
    %v5739 = vpop.f32.mrb[0].mxu0
    %v5740 = vadd.f32 %v5643, %v5739
    %v5741 = vpop.f32.mrb[0].mxu0
    %v5742 = vpop.f32.mrb[0].mxu0
    %v5743 = vadd.f32 %v5646, %v5742
    %v5744 = vpop.f32.mrb[0].mxu0
    %5745 = vdwg.mxu0
    %5746 = vmatprep.subr.bf16.mxu0 0
    %5747 = vmatpush1.bf16.msra.mxu0 %v5439
    %5748 = vmatprep.subr.bf16.mxu0 0
    %5749 = vmatpush1.bf16.msra.mxu0 %v5440
    %5750 = vmatprep.subr.bf16.mxu0 0
    %5751 = vmatpush1.bf16.msra.mxu0 %v5441
    %5752 = vmatprep.subr.bf16.mxu0 0
    %5753 = vmatpush1.bf16.msra.mxu0 %v5442
    %5754 = vmatprep.subr.bf16.mxu0 0
    %5755 = vmatpush1.bf16.msra.mxu0 %v5443
    %5756 = vmatprep.subr.bf16.mxu0 0
    %5757 = vmatpush1.bf16.msra.mxu0 %v5444
    %5758 = vmatprep.subr.bf16.mxu0 0
    %5759 = vmatpush1.bf16.msra.mxu0 %v5445
    %5760 = vmatprep.subr.bf16.mxu0 0
    %5761 = vmatpush1.bf16.msra.mxu0 %v5446
    %5762 = vmatprep.subr.bf16.mxu0 0
    %5763 = vmatpush1.bf16.msra.mxu0 %v5447
    %5764 = vmatprep.subr.bf16.mxu0 0
    %5765 = vmatpush1.bf16.msra.mxu0 %v5448
    %5766 = vmatprep.subr.bf16.mxu0 0
    %5767 = vmatpush1.bf16.msra.mxu0 %v5449
    %5768 = vmatprep.subr.bf16.mxu0 0
    %5769 = vmatpush1.bf16.msra.mxu0 %v5450
    %5770 = vmatprep.subr.bf16.mxu0 0
    %5771 = vmatpush1.bf16.msra.mxu0 %v5451
    %5772 = vmatprep.subr.bf16.mxu0 0
    %5773 = vmatpush1.bf16.msra.mxu0 %v5452
    %5774 = vmatprep.subr.bf16.mxu0 0
    %5775 = vmatpush1.bf16.msra.mxu0 %v5453
    %5776 = vmatprep.subr.bf16.mxu0 0
    %5777 = vmatpush1.bf16.msra.mxu0 %v5454
    %5778 = vmatprep.mubr.bf16.mxu0 %v4740
    %5779 = vmatmul.mubr.bf16.gmra.mrb[0].mxu0 %v4739
    %v5780 = vpop.f32.mrb[0].mxu0
    %v5781 = vadd.f32 %v5684, %v5780
    %v5782 = vpop.f32.mrb[0].mxu0
    %v5783 = vpop.f32.mrb[0].mxu0
    %v5784 = vadd.f32 %v5687, %v5783
    %v5785 = vpop.f32.mrb[0].mxu0
    %5786 = vmatprep.mubr.bf16.mxu0 %v4748
    %5787 = vmatmul.mubr.bf16.gmra.mrb[0].mxu0 %v4747
    %v5788 = vpop.f32.mrb[0].mxu0
    %v5789 = vadd.f32 %v5692, %v5788
    %v5790 = vpop.f32.mrb[0].mxu0
    %v5791 = vpop.f32.mrb[0].mxu0
    %v5792 = vadd.f32 %v5695, %v5791
    %v5793 = vpop.f32.mrb[0].mxu0
    %5794 = vmatprep.mubr.bf16.mxu0 %v4756
    %5795 = vmatmul.mubr.bf16.gmra.mrb[0].mxu0 %v4755
    %v5796 = vpop.f32.mrb[0].mxu0
    %v5797 = vadd.f32 %v5700, %v5796
    %v5798 = vpop.f32.mrb[0].mxu0
    %v5799 = vpop.f32.mrb[0].mxu0
    %v5800 = vadd.f32 %v5703, %v5799
    %v5801 = vpop.f32.mrb[0].mxu0
    %5802 = vmatprep.mubr.bf16.mxu0 %v4764
    %5803 = vmatmul.mubr.bf16.gmra.mrb[0].mxu0 %v4763
    %v5804 = vpop.f32.mrb[0].mxu0
    %v5805 = vadd.f32 %v5708, %v5804
    %v5806 = vpop.f32.mrb[0].mxu0
    %v5807 = vpop.f32.mrb[0].mxu0
    %v5808 = vadd.f32 %v5711, %v5807
    %v5809 = vpop.f32.mrb[0].mxu0
    %5810 = vmatprep.mubr.bf16.mxu0 %v4772
    %5811 = vmatmul.mubr.bf16.gmra.mrb[0].mxu0 %v4771
    %v5812 = vpop.f32.mrb[0].mxu0
    %v5813 = vadd.f32 %v5716, %v5812
    %v5814 = vpop.f32.mrb[0].mxu0
    %v5815 = vpop.f32.mrb[0].mxu0
    %v5816 = vadd.f32 %v5719, %v5815
    %v5817 = vpop.f32.mrb[0].mxu0
    %5818 = vmatprep.mubr.bf16.mxu0 %v4780
    %5819 = vmatmul.mubr.bf16.gmra.mrb[0].mxu0 %v4779
    %v5820 = vpop.f32.mrb[0].mxu0
    %v5821 = vadd.f32 %v5724, %v5820
    %v5822 = vpop.f32.mrb[0].mxu0
    %v5823 = vpop.f32.mrb[0].mxu0
    %v5824 = vadd.f32 %v5727, %v5823
    %v5825 = vpop.f32.mrb[0].mxu0
    %5826 = vmatprep.mubr.bf16.mxu0 %v4788
    %5827 = vmatmul.mubr.bf16.gmra.mrb[0].mxu0 %v4787
    %v5828 = vpop.f32.mrb[0].mxu0
    %v5829 = vadd.f32 %v5732, %v5828
    %v5830 = vpop.f32.mrb[0].mxu0
    %v5831 = vpop.f32.mrb[0].mxu0
    %v5832 = vadd.f32 %v5735, %v5831
    %v5833 = vpop.f32.mrb[0].mxu0
    %5834 = vmatprep.mubr.bf16.mxu0 %v4796
    %5835 = vmatmul.mubr.bf16.gmra.mrb[0].mxu0 %v4795
    %v5836 = vpop.f32.mrb[0].mxu0
    %v5837 = vadd.f32 %v5740, %v5836
    %v5838 = vpop.f32.mrb[0].mxu0
    %v5839 = vpop.f32.mrb[0].mxu0
    %v5840 = vadd.f32 %v5743, %v5839
    %v5841 = vpop.f32.mrb[0].mxu0
    %5842 = vdwg.mxu0
    %v5843 = vlaneseq
    %v5844 = vshrl.u32 %v5843, 7
    %v5845 = vsub.s32 2, %v5844
    %v5846 = vrot.slane %v83, %v5845
    %v5847 = vmul.f32 %v5781, %v5846
    %v5848 = vmul.f32 %v5784, %v5846
    %v5849 = vmul.f32 %v5789, %v5846
    %v5850 = vmul.f32 %v5792, %v5846
    %v5851 = vmul.f32 %v5797, %v5846
    %v5852 = vmul.f32 %v5800, %v5846
    %v5853 = vmul.f32 %v5805, %v5846
    %v5854 = vmul.f32 %v5808, %v5846
    %v5855 = vmul.f32 %v5813, %v5846
    %v5856 = vmul.f32 %v5816, %v5846
    %v5857 = vmul.f32 %v5821, %v5846
    %v5858 = vmul.f32 %v5824, %v5846
    %v5859 = vmul.f32 %v5829, %v5846
    %v5860 = vmul.f32 %v5832, %v5846
    %v5861 = vmul.f32 %v5837, %v5846
    %v5862 = vmul.f32 %v5840, %v5846
    %v5863 = vlaneseq
    %v5864 = vshrl.u32 %v5863, 7
    %v5865 = vsub.s32 0, %v5864
    %v5866 = vrot.slane %v83, %v5865
    %v5867 = vadd.f32 %v5847, %v5866
    %v5868 = vadd.f32 %v5848, %v5866
    %v5869 = vadd.f32 %v5849, %v5866
    %v5870 = vadd.f32 %v5850, %v5866
    %v5871 = vadd.f32 %v5851, %v5866
    %v5872 = vadd.f32 %v5852, %v5866
    %v5873 = vadd.f32 %v5853, %v5866
    %v5874 = vadd.f32 %v5854, %v5866
    %v5875 = vadd.f32 %v5855, %v5866
    %v5876 = vadd.f32 %v5856, %v5866
    %v5877 = vadd.f32 %v5857, %v5866
    %v5878 = vadd.f32 %v5858, %v5866
    %v5879 = vadd.f32 %v5859, %v5866
    %v5880 = vadd.f32 %v5860, %v5866
    %v5881 = vadd.f32 %v5861, %v5866
    %v5882 = vadd.f32 %v5862, %v5866
    %v5883 = vtanh.pop %v5867
    %v5884 = vtanh.pop %v5868
    %v5885 = vtanh.pop %v5869
    %v5886 = vtanh.pop %v5870
    %v5887 = vtanh.pop %v5871
    %v5888 = vtanh.pop %v5872
    %v5889 = vtanh.pop %v5873
    %v5890 = vtanh.pop %v5874
    %v5891 = vtanh.pop %v5875
    %v5892 = vtanh.pop %v5876
    %v5893 = vtanh.pop %v5877
    %v5894 = vtanh.pop %v5878
    %v5895 = vtanh.pop %v5879
    %v5896 = vtanh.pop %v5880
    %v5897 = vtanh.pop %v5881
    %v5898 = vtanh.pop %v5882
    %5899 = vst [vmem:[%s7 + $0x8] sm:$0xff] %v5883
    %5900 = vst [vmem:[%s7 + $0x18] sm:$0xff] %v5884
    %5901 = vst [vmem:[%s7 + $0x28] sm:$0xff] %v5885
    %5902 = vst [vmem:[%s7 + $0x38] sm:$0xff] %v5886
    %5903 = vst [vmem:[%s7 + $0x48] sm:$0xff] %v5887
    %5904 = vst [vmem:[%s7 + $0x58] sm:$0xff] %v5888
    %5905 = vst [vmem:[%s7 + $0x68] sm:$0xff] %v5889
    %5906 = vst [vmem:[%s7 + $0x78] sm:$0xff] %v5890
    %5907 = vst [vmem:[%s7 + $0x88] sm:$0xff] %v5891
    %5908 = vst [vmem:[%s7 + $0x98] sm:$0xff] %v5892
    %5909 = vst [vmem:[%s7 + $0xa8] sm:$0xff] %v5893
    %5910 = vst [vmem:[%s7 + $0xb8] sm:$0xff] %v5894
    %5911 = vst [vmem:[%s7 + $0xc8] sm:$0xff] %v5895
    %5912 = vst [vmem:[%s7 + $0xd8] sm:$0xff] %v5896
    %5913 = vst [vmem:[%s7 + $0xe8] sm:$0xff] %v5897
    %5914 = vst [vmem:[%s7 + $0xf8] sm:$0xff] %v5898
    // Predicated region
    $region38: #{generator_forward.1} parent=1 // pred_check
      _
    $region39: #{generator_forward.1} parent=1 // pred_check_branch
      %5916 = sbr.rel (0) target = $region41
    $region40: #{generator_forward.1} parent=1 // pred_region
      _
    $region41: #{generator_forward.1} parent=1 // pred_fallthru
      _
    // Predicated region
    $region42: #{generator_forward.1} parent=1 // pred_check
      _
    $region43: #{generator_forward.1} parent=1 // pred_check_branch
      %5918 = sbr.rel (0) target = $region45
    $region44: #{generator_forward.1} parent=1 // pred_region
      _
    $region45: #{generator_forward.1} parent=1 // pred_fallthru
      _
    %5919 = vsyncpa [#allocation6], 1
  %5920 = vsyncmov [#allocation4]
  %s5921 = vpop.sfrf %5920
  %p5922 = scmp.eq.s32.totalorder %s5921, 0
  %p5923 = pneg %p5922
  %5925 = shalt.err (%p5923)
  %s5926 = scalar_lea.sflag [#allocation4], 1
  %5927 = vsyncmov %s5926
  %s5928 = vpop.sfrf %5927
  %p5929 = scmp.eq.s32.totalorder %s5928, 0
  %p5930 = pneg %p5929
  %5932 = shalt.err (%p5930)
  %s5933 = scalar_lea.sflag [#allocation4], 2
  %5934 = vsyncmov %s5933
  %s5935 = vpop.sfrf %5934
  %p5936 = scmp.eq.s32.totalorder %s5935, 0
  %p5937 = pneg %p5936
  %5939 = shalt.err (%p5937)

</llo_original>
